<compile_context>
chip_gen: v7x
topology: tpu7x:2x2x1
jax: 0.10.0
libtpu: 0.0.40
codegen_flags: <defaults>
</compile_context>

<pallas_src>
import functools

import jax
import jax.numpy as jnp
from jax import lax
from jax.experimental import pallas as pl
from jax.experimental.pallas import tpu as pltpu


def _round_up(v, m):
    return (v + m - 1) // m * m


def _gated_attn_kernel(x_ref, wab_ref, bab_ref, wct_ref, bct_ref, out_ref, *,
                       epilogue_dtype):
    """One row-tile of the gated attention head.

    x_ref:   (TM, L)       native dtype (f32), cast to bf16 in-kernel
    wab_ref: (L, 2D)       bf16 -- [Wa | Wb] fused
    bab_ref: (1, 2D)       f32  -- [ba | bb] fused
    wct_ref: (C8, D)       bf16 -- Wc^T padded to C8 = round_up(C, 8) rows
    bct_ref: (C8, 1)       f32
    out_ref: (C8, TM)      f32  -- A^T tile (transposed, lane-dense)
    """
    d = wab_ref.shape[1] // 2

    # Cast in-kernel so x is read from HBM exactly once.
    x = x_ref[...].astype(wab_ref.dtype)                              # (TM, L) bf16

    # Single MXU pass for both branches, f32 accumulation, f32 bias add.
    ab = jnp.dot(x, wab_ref[...],
                 preferred_element_type=jnp.float32) + bab_ref[...]   # (TM, 2D) f32

    # bf16 epilogue (EUP/VPU bf16 on v6e/v7x; halves the intermediate footprint).
    ab = ab.astype(epilogue_dtype)
    a = jnp.tanh(ab[:, :d])                                           # (TM, D)
    b = jax.nn.sigmoid(ab[:, d:])                                     # (TM, D)
    gated = (a * b).astype(wct_ref.dtype)                             # (TM, D) bf16

    # (C8, D) . (TM, D) contracted on D -> (C8, TM): A^T directly, no transpose,
    # no wasted padded output lanes.
    out_t = lax.dot_general(
        wct_ref[...], gated,
        dimension_numbers=(((1,), (1,)), ((), ())),
        preferred_element_type=jnp.float32) + bct_ref[...]            # (C8, TM) f32
    out_ref[...] = out_t.astype(out_ref.dtype)


def prepare_attn_params(wa, ba, wb, bb, wc, bc, *, compute_dtype=jnp.bfloat16):
    """One-time weight prep. Hoist this out of the per-call path when serving."""
    L, D = wa.shape
    C = wc.shape[1]
    c_sub = _round_up(C, 8)

    # Fused [Wa | Wb] -> one (L, 2D) matmul fills the wide MXU.
    wab = jnp.concatenate([wa, wb], axis=1).astype(compute_dtype)          # (L, 2D)
    bab = jnp.concatenate([ba, bb], axis=0).reshape(1, 2 * D).astype(jnp.float32)

    # Wc^T padded to round_up(C, 8) rows (extra rows are zero, sliced off later).
    wct = jnp.zeros((c_sub, D), compute_dtype).at[:C, :].set(
        wc.T.astype(compute_dtype))
    bct = jnp.zeros((c_sub, 1), jnp.float32).at[:C, 0].set(
        bc.astype(jnp.float32))

    return dict(wab=wab, bab=bab, wct=wct, bct=bct, L=L, D=D, C=C, c_sub=c_sub)


def attn_net_gated_apply(x, params, *, tile_m=1024, epilogue_dtype=jnp.bfloat16):
    """Pallas implementation of Attn_Net_Gated.forward (eval mode).

    Args:
      x: (N, L) features (native dtype; cast to bf16 inside the kernel).
      params: output of prepare_attn_params().
    Returns:
      (A, x) with A of shape (N, C), mirroring the PyTorch module.
    """
    N, L = x.shape
    D, C, c_sub = params["D"], params["C"], params["c_sub"]

    # Row tile: multiple of 128 (it is also the lane dim of the A^T output
    # block), capped so the 'parallel' grid has >= 4 steps when N allows it.
    tm = min(tile_m, max(128, _round_up(pl.cdiv(N, 4), 128)))
    tm = min(tm, _round_up(N, 128))
    grid = (pl.cdiv(N, tm),)   # ragged last block handled by Pallas (no jnp.pad)

    # --- honest VMEM budget (headroom-safe on v7x's 64 MiB, v5e/v6e 128 MiB) ---
    itemx = jnp.dtype(x.dtype).itemsize
    itemw = jnp.dtype(params["wab"].dtype).itemsize
    est_vmem = (
        2 * tm * L * itemx                       # double-buffered x tile
        + 2 * c_sub * tm * 4                     # double-buffered A^T tile
        + 2 * (L * 2 * D + c_sub * D) * itemw    # weights (worst-case 2 copies)
        + 2 * (2 * D + c_sub) * 4                # biases
        + tm * (2 * L + 6 * 2 * D + 2 * D)       # in-kernel temporaries
    )
    vmem_limit = int(min(max(4 * est_vmem, 16 * 1024 * 1024), 48 * 1024 * 1024))

    kernel = functools.partial(_gated_attn_kernel, epilogue_dtype=epilogue_dtype)

    a_t = pl.pallas_call(
        kernel,
        out_shape=jax.ShapeDtypeStruct((c_sub, N), jnp.float32),
        grid_spec=pltpu.PrefetchScalarGridSpec(
            num_scalar_prefetch=0,
            grid=grid,
            in_specs=[
                pl.BlockSpec((tm, L), lambda i: (i, 0)),       # x row tile
                pl.BlockSpec((L, 2 * D), lambda i: (0, 0)),    # [Wa|Wb] (resident)
                pl.BlockSpec((1, 2 * D), lambda i: (0, 0)),    # [ba|bb]
                pl.BlockSpec((c_sub, D), lambda i: (0, 0)),    # Wc^T (8-row padded)
                pl.BlockSpec((c_sub, 1), lambda i: (0, 0)),    # bc
            ],
            out_specs=pl.BlockSpec((c_sub, tm), lambda i: (0, i)),   # A^T tile
        ),
        compiler_params=pltpu.CompilerParams(
            dimension_semantics=("parallel",),
            vmem_limit_bytes=vmem_limit),
    )(x, params["wab"], params["bab"], params["wct"], params["bct"])

    # Slice off the class-row padding and undo the transpose (tiny (C, N) array).
    return a_t[:C, :].T, x


def attn_net_gated(x, wa, ba, wb, bb, wc, bc, *,
                   tile_m=1024, epilogue_dtype=jnp.bfloat16):
    """Convenience wrapper matching the original signature."""
    params = prepare_attn_params(wa, ba, wb, bb, wc, bc)
    return attn_net_gated_apply(x, params, tile_m=tile_m,
                                epilogue_dtype=epilogue_dtype)


def _reference(x, wa, ba, wb, bb, wc, bc):
    a = jnp.tanh(x @ wa + ba)
    b = jax.nn.sigmoid(x @ wb + bb)
    return (a * b) @ wc + bc


if __name__ == "__main__":
    # Module-default feature dims (L=1024, D=256, n_classes=1), small bag size.
    # N not a tile multiple -> exercises the ragged last block.
    N, L, D, C = 1000, 1024, 256, 1

    key = jax.random.PRNGKey(0)
    kx, ka, kba, kb, kbb, kc, kbc = jax.random.split(key, 7)

    x  = jax.random.normal(kx,  (N, L), dtype=jnp.float32)
    wa = jax.random.normal(ka,  (L, D), dtype=jnp.float32) * 0.02
    ba = jax.random.normal(kba, (D,),   dtype=jnp.float32) * 0.02
    wb = jax.random.normal(kb,  (L, D), dtype=jnp.float32) * 0.02
    bb = jax.random.normal(kbb, (D,),   dtype=jnp.float32) * 0.02
    wc = jax.random.normal(kc,  (D, C), dtype=jnp.float32) * 0.02
    bc = jax.random.normal(kbc, (C,),   dtype=jnp.float32) * 0.02

    params = prepare_attn_params(wa, ba, wb, bb, wc, bc)   # hoisted weight prep
    A, x_out = attn_net_gated_apply(x, params)
    jax.block_until_ready((A, x_out))

    A_ref = _reference(x, wa, ba, wb, bb, wc, bc)
    assert A.shape == (N, C), f"bad output shape {A.shape}"
    # bf16 matmul inputs + bf16 epilogue (f32 accumulation) -> looser tolerance
    # vs the f32 reference; deliberate inference-precision trade.
    assert jnp.allclose(A, A_ref, atol=3e-2, rtol=3e-2), "mismatch vs reference"
    assert jnp.array_equal(x_out, x), "x passthrough mismatch"

    print("KERNEL_OK")
</pallas_src>

<mosaic_0001>
module attributes {stable_mosaic.version = 11 : i64} {
  func.func @_gated_attn_kernel(%arg0: i32, %arg1: memref<256x1024xf32, #tpu.memory_space<vmem>>, %arg2: memref<1024x512xbf16, #tpu.memory_space<vmem>>, %arg3: memref<1x512xf32, #tpu.memory_space<vmem>>, %arg4: memref<8x256xbf16, #tpu.memory_space<vmem>>, %arg5: memref<8x1xf32, #tpu.memory_space<vmem>>, %arg6: memref<8x256xf32, #tpu.memory_space<vmem>>) attributes {dimension_semantics = [#tpu.dimension_semantics<parallel>], iteration_bounds = array<i64: 4>, scalar_prefetch = 0 : i64, scratch_operands = 0 : i64, tpu.core_type = #tpu.core_type<tc>, window_params = [{transform_indices = @transform_0, window_bounds = array<i64: 256, 1024>}, {pipeline_mode = #tpu.pipeline_mode<synchronous>, transform_indices = @transform_1, window_bounds = array<i64: 1024, 512>}, {pipeline_mode = #tpu.pipeline_mode<synchronous>, transform_indices = @transform_2, window_bounds = array<i64: 1, 512>}, {pipeline_mode = #tpu.pipeline_mode<synchronous>, transform_indices = @transform_3, window_bounds = array<i64: 8, 256>}, {pipeline_mode = #tpu.pipeline_mode<synchronous>, transform_indices = @transform_4, window_bounds = array<i64: 8, 1>}, {transform_indices = @transform_5, window_bounds = array<i64: 8, 256>}]} {
    %c0 = arith.constant 0 : index
    %c0_0 = arith.constant 0 : index
    %0 = vector.load %arg1[%c0, %c0_0] : memref<256x1024xf32, #tpu.memory_space<vmem>>, vector<256x1024xf32>
    %1 = arith.truncf %0 : vector<256x1024xf32> to vector<256x1024xbf16>
    %c0_1 = arith.constant 0 : index
    %c0_2 = arith.constant 0 : index
    %2 = vector.load %arg2[%c0_1, %c0_2] : memref<1024x512xbf16, #tpu.memory_space<vmem>>, vector<1024x512xbf16>
    %cst = arith.constant dense<0.000000e+00> : vector<256x512xf32>
    %3 = tpu.matmul %1, %2, %cst {dimension_numbers = #tpu.dot_dimension_numbers<[1], [0], [0], [1], [0, 0, 1, 1], [], []>} : vector<256x1024xbf16>, vector<1024x512xbf16>, vector<256x512xf32> -> vector<256x512xf32>
    %c0_3 = arith.constant 0 : index
    %c0_4 = arith.constant 0 : index
    %4 = vector.load %arg3[%c0_3, %c0_4] : memref<1x512xf32, #tpu.memory_space<vmem>>, vector<1x512xf32>
    %5 = vector.broadcast %4 : vector<1x512xf32> to vector<256x512xf32>
    %6 = arith.addf %3, %5 : vector<256x512xf32>
    %7 = arith.truncf %6 : vector<256x512xf32> to vector<256x512xbf16>
    %8 = vector.extract_strided_slice %7 {offsets = [0, 0], sizes = [256, 256], strides = [1, 1]} : vector<256x512xbf16> to vector<256x256xbf16>
    %9 = math.tanh %8 : vector<256x256xbf16>
    %10 = vector.extract_strided_slice %7 {offsets = [0, 256], sizes = [256, 256], strides = [1, 1]} : vector<256x512xbf16> to vector<256x256xbf16>
    %11 = arith.negf %10 : vector<256x256xbf16>
    %12 = math.exp %11 : vector<256x256xbf16>
    %cst_5 = arith.constant 1.000000e+00 : bf16
    %13 = vector.broadcast %cst_5 : bf16 to vector<256x256xbf16>
    %14 = arith.addf %13, %12 : vector<256x256xbf16>
    %15 = arith.divf %13, %14 : vector<256x256xbf16>
    %16 = arith.mulf %9, %15 : vector<256x256xbf16>
    %c0_6 = arith.constant 0 : index
    %c0_7 = arith.constant 0 : index
    %17 = vector.load %arg4[%c0_6, %c0_7] : memref<8x256xbf16, #tpu.memory_space<vmem>>, vector<8x256xbf16>
    %cst_8 = arith.constant dense<0.000000e+00> : vector<8x256xf32>
    %18 = tpu.matmul %17, %16, %cst_8 {dimension_numbers = #tpu.dot_dimension_numbers<[1], [1], [0], [0], [0, 0, 1, 0], [], []>} : vector<8x256xbf16>, vector<256x256xbf16>, vector<8x256xf32> -> vector<8x256xf32>
    %c0_9 = arith.constant 0 : index
    %c0_10 = arith.constant 0 : index
    %19 = vector.load %arg5[%c0_9, %c0_10] : memref<8x1xf32, #tpu.memory_space<vmem>>, vector<8x1xf32>
    %20 = vector.broadcast %19 : vector<8x1xf32> to vector<8x256xf32>
    %21 = arith.addf %18, %20 : vector<8x256xf32>
    %c0_11 = arith.constant 0 : index
    %c0_12 = arith.constant 0 : index
    %22 = vector.load %arg6[%c0_11, %c0_12] : memref<8x256xf32, #tpu.memory_space<vmem>>, vector<8x256xf32>
    tpu.vector_store %arg6[%c0_11, %c0_12], %21 {strides = array<i32>} : memref<8x256xf32, #tpu.memory_space<vmem>>, vector<8x256xf32>,
    return
  }
  func.func @transform_0(%arg0: i32) -> (i32, i32) {
    %c0_i32 = arith.constant 0 : i32
    %c0_i32_0 = arith.constant 0 : i32
    return %arg0, %c0_i32 : i32, i32
  }
  func.func @transform_1(%arg0: i32) -> (i32, i32) {
    %c0_i32 = arith.constant 0 : i32
    %c0_i32_0 = arith.constant 0 : i32
    %c0_i32_1 = arith.constant 0 : i32
    return %c0_i32, %c0_i32_0 : i32, i32
  }
  func.func @transform_2(%arg0: i32) -> (i32, i32) {
    %c0_i32 = arith.constant 0 : i32
    %c0_i32_0 = arith.constant 0 : i32
    %c0_i32_1 = arith.constant 0 : i32
    return %c0_i32, %c0_i32_0 : i32, i32
  }
  func.func @transform_3(%arg0: i32) -> (i32, i32) {
    %c0_i32 = arith.constant 0 : i32
    %c0_i32_0 = arith.constant 0 : i32
    %c0_i32_1 = arith.constant 0 : i32
    return %c0_i32, %c0_i32_0 : i32, i32
  }
  func.func @transform_4(%arg0: i32) -> (i32, i32) {
    %c0_i32 = arith.constant 0 : i32
    %c0_i32_0 = arith.constant 0 : i32
    %c0_i32_1 = arith.constant 0 : i32
    return %c0_i32, %c0_i32_0 : i32, i32
  }
  func.func @transform_5(%arg0: i32) -> (i32, i32) {
    %c0_i32 = arith.constant 0 : i32
    %c0_i32_0 = arith.constant 0 : i32
    return %c0_i32, %arg0 : i32, i32
  }
}

</mosaic_0001>

<llo_original>
// kernel: tpu_custom_call.1
$region0: #{tpu_custom_call.1}
  #allocation0 [shape = 'u32[]', space=smem, size = 0x4, offset = 0x4, fixed_abs, tag = 'smem constant byte address 0x4 - core index']
  #allocation1 [shape = 'u32[144,128]{1,0:T(1,128)}', space=vmem, size = 0x12000, scoped, tag = 'internal scratch']
  %s0 = inlined_call_operand.hbm [shape: f32[1000,1024], index: 0, kind: input, shape index: {}]
  %s1 = inlined_call_operand.hbm [shape: bf16[1024,512], index: 1, kind: input, shape index: {}]
  %s2 = inlined_call_operand.hbm [shape: f32[1,512], index: 2, kind: input, shape index: {}]
  %s3 = inlined_call_operand.hbm [shape: bf16[8,256], index: 3, kind: input, shape index: {}]
  %s4 = inlined_call_operand.vmem [shape: f32[8,1], index: 4, kind: input, shape index: {}]
  %s5 = inlined_call_operand.hbm [shape: f32[8,1000], index: 5, kind: output, shape index: {}]
  %s6 = sld [smem:[#allocation0]]
  $region69: #{tpu_custom_call.1} parent=0
    _
  %s8 = ssub.s32 1, %s6
  %s9 = scalar_select 0, %s8, %s6
  $region1: #{tpu_custom_call.1} parent=0
    #allocation2 [shape = 'u8[2097152]{0}', space=vmem, size = 0x200000, scoped, tag = 'input window, operand 0']
    #allocation3 [shape = 's32[2]{0}', space=sflag, size = 0x8, scoped, tag = 'scoped memory for tpu_custom_call.1']
    #allocation4 [shape = 's32[2]{0}', space=sflag, size = 0x8, scoped, tag = 'scoped memory for tpu_custom_call.1']
    #allocation5 [shape = 'u8[1048576]{0}', space=vmem, size = 0x100000, scoped, tag = 'input window, operand 1, single buffered']
    #allocation6 [shape = 's32[1]{0}', space=sflag, size = 0x4, scoped, tag = 'scoped memory for tpu_custom_call.1']
    #allocation7 [shape = 'u8[2048]{0}', space=vmem, size = 0x800, scoped, tag = 'input window, operand 2, single buffered']
    #allocation8 [shape = 'u8[4096]{0}', space=vmem, size = 0x1000, scoped, tag = 'input window, operand 3, single buffered']
    #allocation9 [shape = 's32[1]{0}', space=sflag, size = 0x4, scoped, tag = 'scoped memory for tpu_custom_call.1']
    #allocation10 [shape = 'u8[16384]{0}', space=vmem, size = 0x4000, scoped, tag = 'output window, operand 0']
    %10 = vsyncpa [#allocation3], 0
    %s11 = scalar_lea.sflag [#allocation3], 1
    %12 = vsyncpa %s11, 0
    %13 = vsyncpa [#allocation6], 0
    %14 = vsyncpa [#allocation9], 0
    %15 = vsyncpa [#allocation4], 0
    %s16 = scalar_lea.sflag [#allocation4], 1
    %17 = vsyncpa %s16, 0
    loop: start=0, step=1, limit=6
    $region2: #{tpu_custom_call.1} parent=1 // loop_pre_header
      _
    $region3: #{tpu_custom_call.1} parent=1 // loop_header
      %s19 = sphi 0, %s23
      %p20 = scmp.ge.s32.totalorder %s19, 6
      %s29 = sphi 0, %s31
      %s32 = sphi 0, %s29
      %s33 = sphi 0, %s32
      %s49 = sphi 0, %s33
      %s53 = sphi 0, %s53
      %s55 = sphi 0, %s53
      %s56 = sphi 0, %s55
      %s70 = sphi 0, %s56
      %s74 = sphi 0, %s74
      %s76 = sphi 0, %s74
      %s77 = sphi 0, %s76
      %s91 = sphi 0, %s77
      %s95 = sphi 0, %s95
      %s97 = sphi 0, %s95
      %s98 = sphi 0, %s97
      %s112 = sphi 0, %s98
      %s116 = sphi 0, %s116
      %s118 = sphi 0, %s116
      %s119 = sphi 0, %s118
      %s133 = sphi 0, %s119
      %s139 = sphi 0, %s141
      %s142 = sphi 0, %s139
      %s143 = sphi 0, %s142
      %s159 = sphi 0, %s143
    $region4: #{tpu_custom_call.1} parent=1 // loop_header_branch
      %22 = sbr.rel (%p20) target = $region8
    $region5: #{tpu_custom_call.1} parent=1 // loop_body
      %s24 = ssub.s32 %s19, 1
      %s25 = ssub.s32 %s19, 2
      %s26 = sadd.s32 %s19, 1
      %s27 = ssub.s32 %s19, %s26
      %p28 = scmp.eq.s32.totalorder %s27, 0
      %s30 = sadd.s32 %s29, 1
      %s31 = scalar_select %p28, %s29, %s30
      %p34 = pneg %p28
      %p35 = scmp.eq.s32.totalorder %s19, 3
      %p36 = por %p34, %p35
      %p37 = scmp.ne.s32.totalorder %s29, %s32
      %p38 = scmp.eq.s32.totalorder %s19, 0
      %p39 = por %p37, %p38
      %p40 = scmp.ne.s32.totalorder %s29, %s32
      %p41 = scmp.eq.s32.totalorder %s24, 3
      %p42 = por %p40, %p41
      %p43 = scmp.ne.s32.totalorder %s32, %s33
      %p44 = scmp.eq.s32.totalorder %s24, 0
      %p45 = por %p43, %p44
      %p46 = scmp.ne.s32.totalorder %s32, %s33
      %p47 = scmp.eq.s32.totalorder %s25, 3
      %p48 = por %p46, %p47
      %p50 = scmp.ne.s32.totalorder %s33, %s49
      %p51 = scmp.eq.s32.totalorder %s25, 0
      %p52 = por %p50, %p51
      %s54 = sadd.s32 %s53, 1
      %p57 = scmp.eq.s32.totalorder %s19, 3
      %p58 = scmp.ne.s32.totalorder %s53, %s55
      %p59 = scmp.eq.s32.totalorder %s19, 0
      %p60 = por %p58, %p59
      %p61 = scmp.ne.s32.totalorder %s53, %s55
      %p62 = scmp.eq.s32.totalorder %s24, 3
      %p63 = por %p61, %p62
      %p64 = scmp.ne.s32.totalorder %s55, %s56
      %p65 = scmp.eq.s32.totalorder %s24, 0
      %p66 = por %p64, %p65
      %p67 = scmp.ne.s32.totalorder %s55, %s56
      %p68 = scmp.eq.s32.totalorder %s25, 3
      %p69 = por %p67, %p68
      %p71 = scmp.ne.s32.totalorder %s56, %s70
      %p72 = scmp.eq.s32.totalorder %s25, 0
      %p73 = por %p71, %p72
      %s75 = sadd.s32 %s74, 1
      %p78 = scmp.eq.s32.totalorder %s19, 3
      %p79 = scmp.ne.s32.totalorder %s74, %s76
      %p80 = scmp.eq.s32.totalorder %s19, 0
      %p81 = por %p79, %p80
      %p82 = scmp.ne.s32.totalorder %s74, %s76
      %p83 = scmp.eq.s32.totalorder %s24, 3
      %p84 = por %p82, %p83
      %p85 = scmp.ne.s32.totalorder %s76, %s77
      %p86 = scmp.eq.s32.totalorder %s24, 0
      %p87 = por %p85, %p86
      %p88 = scmp.ne.s32.totalorder %s76, %s77
      %p89 = scmp.eq.s32.totalorder %s25, 3
      %p90 = por %p88, %p89
      %p92 = scmp.ne.s32.totalorder %s77, %s91
      %p93 = scmp.eq.s32.totalorder %s25, 0
      %p94 = por %p92, %p93
      %s96 = sadd.s32 %s95, 1
      %p99 = scmp.eq.s32.totalorder %s19, 3
      %p100 = scmp.ne.s32.totalorder %s95, %s97
      %p101 = scmp.eq.s32.totalorder %s19, 0
      %p102 = por %p100, %p101
      %p103 = scmp.ne.s32.totalorder %s95, %s97
      %p104 = scmp.eq.s32.totalorder %s24, 3
      %p105 = por %p103, %p104
      %p106 = scmp.ne.s32.totalorder %s97, %s98
      %p107 = scmp.eq.s32.totalorder %s24, 0
      %p108 = por %p106, %p107
      %p109 = scmp.ne.s32.totalorder %s97, %s98
      %p110 = scmp.eq.s32.totalorder %s25, 3
      %p111 = por %p109, %p110
      %p113 = scmp.ne.s32.totalorder %s98, %s112
      %p114 = scmp.eq.s32.totalorder %s25, 0
      %p115 = por %p113, %p114
      %s117 = sadd.s32 %s116, 1
      %p120 = scmp.eq.s32.totalorder %s19, 3
      %p121 = scmp.ne.s32.totalorder %s116, %s118
      %p122 = scmp.eq.s32.totalorder %s19, 0
      %p123 = por %p121, %p122
      %p124 = scmp.ne.s32.totalorder %s116, %s118
      %p125 = scmp.eq.s32.totalorder %s24, 3
      %p126 = por %p124, %p125
      %p127 = scmp.ne.s32.totalorder %s118, %s119
      %p128 = scmp.eq.s32.totalorder %s24, 0
      %p129 = por %p127, %p128
      %p130 = scmp.ne.s32.totalorder %s118, %s119
      %p131 = scmp.eq.s32.totalorder %s25, 3
      %p132 = por %p130, %p131
      %p134 = scmp.ne.s32.totalorder %s119, %s133
      %p135 = scmp.eq.s32.totalorder %s25, 0
      %p136 = por %p134, %p135
      %s137 = ssub.s32 %s19, %s26
      %p138 = scmp.eq.s32.totalorder %s137, 0
      %s140 = sadd.s32 %s139, 1
      %s141 = scalar_select %p138, %s139, %s140
      %p144 = pneg %p138
      %p145 = scmp.eq.s32.totalorder %s19, 3
      %p146 = por %p144, %p145
      %p147 = scmp.ne.s32.totalorder %s139, %s142
      %p148 = scmp.eq.s32.totalorder %s19, 0
      %p149 = por %p147, %p148
      %p150 = scmp.ne.s32.totalorder %s139, %s142
      %p151 = scmp.eq.s32.totalorder %s24, 3
      %p152 = por %p150, %p151
      %p153 = scmp.ne.s32.totalorder %s142, %s143
      %p154 = scmp.eq.s32.totalorder %s24, 0
      %p155 = por %p153, %p154
      %p156 = scmp.ne.s32.totalorder %s142, %s143
      %p157 = scmp.eq.s32.totalorder %s25, 3
      %p158 = por %p156, %p157
      %p160 = scmp.ne.s32.totalorder %s143, %s159
      %p161 = scmp.eq.s32.totalorder %s25, 0
      %p162 = por %p160, %p161
      %p163 = scmp.le.s32.totalorder 1, %s19
      %p164 = scmp.lt.s32.totalorder %s19, 5
      %p165 = pnand %p163, %p164
      %p166 = pneg %p165
      // Predicated region
      $region9: #{tpu_custom_call.1} parent=5 // pred_check
        _
      $region10: #{tpu_custom_call.1} parent=5 // pred_check_branch
        %168 = sbr.rel (%p165) target = $region12
      $region11: #{tpu_custom_call.1} parent=5 // pred_region
        %s169 = ssub.s32 %s19, 1
        // Predicated region
        $region13: #{tpu_custom_call.1} parent=11 // pred_check
          %p170 = pneg %p66
        $region14: #{tpu_custom_call.1} parent=11 // pred_check_branch
          %172 = sbr.rel (%p170) target = $region16
        $region15: #{tpu_custom_call.1} parent=11 // pred_region
          %s174 = ssub.s32 32768, 32768
          %175 = vsyncadd [#allocation6], %s174
          %s176 = sshll.u32 [#allocation5], 4
          %s177 = int_to_ptr.vmem [resolvable:$true] %s176
          %182 = dma.hbm_to_vmem [thread:$0]  %s1, 32768, %s177, [#allocation6], 256, 256, 16
        $region16: #{tpu_custom_call.1} parent=11 // pred_fallthru
          _
        // Predicated region
        $region17: #{tpu_custom_call.1} parent=11 // pred_check
          %p183 = pneg %p87
        $region18: #{tpu_custom_call.1} parent=11 // pred_check_branch
          %185 = sbr.rel (%p183) target = $region20
        $region19: #{tpu_custom_call.1} parent=11 // pred_region
          %s187 = ssub.s32 64, 64
          %188 = vsyncadd [#allocation6], %s187
          %s190 = sshll.u32 [#allocation7], 4
          %s191 = int_to_ptr.vmem [resolvable:$true] %s190
          %193 = dma.hbm_to_vmem [thread:$0]  %s2, 64, %s191, [#allocation6]
        $region20: #{tpu_custom_call.1} parent=11 // pred_fallthru
          _
        // Predicated region
        $region21: #{tpu_custom_call.1} parent=11 // pred_check
          %p194 = pneg %p108
        $region22: #{tpu_custom_call.1} parent=11 // pred_check_branch
          %196 = sbr.rel (%p194) target = $region24
        $region23: #{tpu_custom_call.1} parent=11 // pred_region
          %s198 = ssub.s32 128, 128
          %199 = vsyncadd [#allocation9], %s198
          %s201 = sshll.u32 [#allocation8], 4
          %s202 = int_to_ptr.vmem [resolvable:$true] %s201
          %204 = dma.hbm_to_vmem [thread:$0]  %s3, 128, %s202, [#allocation9]
        $region24: #{tpu_custom_call.1} parent=11 // pred_fallthru
          _
        // Predicated region
        $region25: #{tpu_custom_call.1} parent=11 // pred_check
          %p205 = pneg %p129
        $region26: #{tpu_custom_call.1} parent=11 // pred_check_branch
          %207 = sbr.rel (%p205) target = $region28
        $region27: #{tpu_custom_call.1} parent=11 // pred_region
          _
        $region28: #{tpu_custom_call.1} parent=11 // pred_fallthru
          _
      $region12: #{tpu_custom_call.1} parent=5 // pred_fallthru
        _
      %p208 = scmp.lt.s32.totalorder %s19, 4
      // Predicated region
      $region29: #{tpu_custom_call.1} parent=5 // pred_check
        %p209 = pneg %p208
      $region30: #{tpu_custom_call.1} parent=5 // pred_check_branch
        %211 = sbr.rel (%p209) target = $region32
      $region31: #{tpu_custom_call.1} parent=5 // pred_region
        // Predicated region
        $region33: #{tpu_custom_call.1} parent=31 // pred_check
          %p212 = pneg %p39
        $region34: #{tpu_custom_call.1} parent=31 // pred_check_branch
          %214 = sbr.rel (%p212) target = $region36
        $region35: #{tpu_custom_call.1} parent=31 // pred_region
          %s215 = sand.u32 %s29, 1
          %s216 = scalar_lea.sflag [#allocation3], %s215
          %s217 = sand.u32 %s29, 1
          %s218 = smul.addr %s217, 2048
          %s219 = scalar_lea.vmem [#allocation2], %s218
          %s220 = smul.u32 32, %s19
          %s221 = ssub.s32 125, %s220
          %p222 = scmp.lt.s32.totalorder %s221, 32
          %s223 = scalar_select %p222, %s221, 32
          %s224 = smul.u32 128, %s223
          %s225 = smul.u32 %s224, 8
          %s227 = ssub.s32 32768, %s225
          %228 = vsyncadd %s216, %s227
          %p229 = scmp.ne.s32.totalorder 0, %s225
          %s230 = smul.addr %s220, 8
          %s231 = smul.addr %s230, 128
          %s232 = scalar_lea.hbm %s0, %s231
          %s233 = smul.u32 64, %s223
          %s234 = sshll.u32 %s219, 4
          %s235 = int_to_ptr.vmem [resolvable:$true] %s234
          %s236 = sshll.u32 %s233, 4
          %240 = dma.hbm_to_vmem [thread:$0]  (%p229), %s232, %s236, %s235, %s216, 1024, 1024, 64
        $region36: #{tpu_custom_call.1} parent=31 // pred_fallthru
          _
      $region32: #{tpu_custom_call.1} parent=5 // pred_fallthru
        _
      %p241 = scmp.le.s32.totalorder 1, %s19
      %p242 = scmp.lt.s32.totalorder %s19, 5
      %p243 = pnand %p241, %p242
      %p244 = pneg %p243
      // Predicated region
      $region37: #{tpu_custom_call.1} parent=5 // pred_check
        _
      $region38: #{tpu_custom_call.1} parent=5 // pred_check_branch
        %246 = sbr.rel (%p243) target = $region40
      $region39: #{tpu_custom_call.1} parent=5 // pred_region
        %s247 = ssub.s32 %s19, 1
        %s248 = sand.u32 %s32, 1
        %s249 = scalar_lea.sflag [#allocation3], %s248
        %s250 = sand.u32 %s32, 1
        %s251 = smul.addr %s250, 2048
        %s252 = scalar_lea.vmem [#allocation2], %s251
        // Predicated region
        $region41: #{tpu_custom_call.1} parent=39 // pred_check
          %p253 = pneg %p45
        $region42: #{tpu_custom_call.1} parent=39 // pred_check_branch
          %255 = sbr.rel (%p253) target = $region44
        $region43: #{tpu_custom_call.1} parent=39 // pred_region
          %256 = dma.done %s249, 32768
        $region44: #{tpu_custom_call.1} parent=39 // pred_fallthru
          _
        // Predicated region
        $region45: #{tpu_custom_call.1} parent=39 // pred_check
          %p257 = pneg %p66
        $region46: #{tpu_custom_call.1} parent=39 // pred_check_branch
          %259 = sbr.rel (%p257) target = $region48
        $region47: #{tpu_custom_call.1} parent=39 // pred_region
          %260 = dma.done [#allocation6], 32768
        $region48: #{tpu_custom_call.1} parent=39 // pred_fallthru
          _
        // Predicated region
        $region49: #{tpu_custom_call.1} parent=39 // pred_check
          %p261 = pneg %p87
        $region50: #{tpu_custom_call.1} parent=39 // pred_check_branch
          %263 = sbr.rel (%p261) target = $region52
        $region51: #{tpu_custom_call.1} parent=39 // pred_region
          %264 = dma.done [#allocation6], 64
        $region52: #{tpu_custom_call.1} parent=39 // pred_fallthru
          _
        // Predicated region
        $region53: #{tpu_custom_call.1} parent=39 // pred_check
          %p265 = pneg %p108
        $region54: #{tpu_custom_call.1} parent=39 // pred_check_branch
          %267 = sbr.rel (%p265) target = $region56
        $region55: #{tpu_custom_call.1} parent=39 // pred_region
          %268 = dma.done [#allocation9], 128
        $region56: #{tpu_custom_call.1} parent=39 // pred_fallthru
          _
        %s269 = sand.u32 %s32, 1
        %s270 = scalar_lea.sflag [#allocation3], %s269
        %s271 = sand.u32 %s32, 1
        %s272 = smul.addr %s271, 2048
        %s273 = scalar_lea.vmem [#allocation2], %s272
        %p274 = pneg %p45
        %p275 = pneg %p42
        %p276 = pneg %p66
        %p277 = pneg %p63
        %p278 = pneg %p87
        %p279 = pneg %p84
        %p280 = pneg %p108
        %p281 = pneg %p105
        %p282 = pneg %p129
        %p283 = pneg %p126
        %p284 = pneg %p155
        %p285 = pneg %p152
        %s286 = sand.u32 %s142, 1
        %s287 = scalar_lea.sflag [#allocation4], %s286
        %s288 = sand.u32 %s142, 1
        %s289 = smul.addr %s288, 16
        %s290 = scalar_lea.vmem [#allocation10], %s289
        %s291 = smul.u32 32, %s24
        %s292 = ssub.s32 125, %s291
        %p293 = scmp.lt.s32.totalorder %s292, 32
        %s294 = scalar_select %p293, %s292, 32
        %s295 = smul.u32 128, %s294
        %s296 = smul.u32 %s295, 8
        %s297 = smul.u32 2, %s24
        %v299 = vld [vmem:[%s252] sm:$0xff]
        %v300 = vld [vmem:[%s252 + $0x8] sm:$0xff]
        %v301 = vld [vmem:[%s252 + $0x10] sm:$0xff]
        %v302 = vld [vmem:[%s252 + $0x18] sm:$0xff]
        %v303 = vld [vmem:[%s252 + $0x20] sm:$0xff]
        %v304 = vld [vmem:[%s252 + $0x28] sm:$0xff]
        %v305 = vld [vmem:[%s252 + $0x30] sm:$0xff]
        %v306 = vld [vmem:[%s252 + $0x38] sm:$0xff]
        %v307 = vld [vmem:[%s252 + $0x40] sm:$0xff]
        %v308 = vld [vmem:[%s252 + $0x48] sm:$0xff]
        %v309 = vld [vmem:[%s252 + $0x50] sm:$0xff]
        %v310 = vld [vmem:[%s252 + $0x58] sm:$0xff]
        %v311 = vld [vmem:[%s252 + $0x60] sm:$0xff]
        %v312 = vld [vmem:[%s252 + $0x68] sm:$0xff]
        %v313 = vld [vmem:[%s252 + $0x70] sm:$0xff]
        %v314 = vld [vmem:[%s252 + $0x78] sm:$0xff]
        %v315 = vld [vmem:[%s252 + $0x80] sm:$0xff]
        %v316 = vld [vmem:[%s252 + $0x88] sm:$0xff]
        %v317 = vld [vmem:[%s252 + $0x90] sm:$0xff]
        %v318 = vld [vmem:[%s252 + $0x98] sm:$0xff]
        %v319 = vld [vmem:[%s252 + $0xa0] sm:$0xff]
        %v320 = vld [vmem:[%s252 + $0xa8] sm:$0xff]
        %v321 = vld [vmem:[%s252 + $0xb0] sm:$0xff]
        %v322 = vld [vmem:[%s252 + $0xb8] sm:$0xff]
        %v323 = vld [vmem:[%s252 + $0xc0] sm:$0xff]
        %v324 = vld [vmem:[%s252 + $0xc8] sm:$0xff]
        %v325 = vld [vmem:[%s252 + $0xd0] sm:$0xff]
        %v326 = vld [vmem:[%s252 + $0xd8] sm:$0xff]
        %v327 = vld [vmem:[%s252 + $0xe0] sm:$0xff]
        %v328 = vld [vmem:[%s252 + $0xe8] sm:$0xff]
        %v329 = vld [vmem:[%s252 + $0xf0] sm:$0xff]
        %v330 = vld [vmem:[%s252 + $0xf8] sm:$0xff]
        %v331 = vld [vmem:[%s252 + $0x100] sm:$0xff]
        %v332 = vld [vmem:[%s252 + $0x108] sm:$0xff]
        %v333 = vld [vmem:[%s252 + $0x110] sm:$0xff]
        %v334 = vld [vmem:[%s252 + $0x118] sm:$0xff]
        %v335 = vld [vmem:[%s252 + $0x120] sm:$0xff]
        %v336 = vld [vmem:[%s252 + $0x128] sm:$0xff]
        %v337 = vld [vmem:[%s252 + $0x130] sm:$0xff]
        %v338 = vld [vmem:[%s252 + $0x138] sm:$0xff]
        %v339 = vld [vmem:[%s252 + $0x140] sm:$0xff]
        %v340 = vld [vmem:[%s252 + $0x148] sm:$0xff]
        %v341 = vld [vmem:[%s252 + $0x150] sm:$0xff]
        %v342 = vld [vmem:[%s252 + $0x158] sm:$0xff]
        %v343 = vld [vmem:[%s252 + $0x160] sm:$0xff]
        %v344 = vld [vmem:[%s252 + $0x168] sm:$0xff]
        %v345 = vld [vmem:[%s252 + $0x170] sm:$0xff]
        %v346 = vld [vmem:[%s252 + $0x178] sm:$0xff]
        %v347 = vld [vmem:[%s252 + $0x180] sm:$0xff]
        %v348 = vld [vmem:[%s252 + $0x188] sm:$0xff]
        %v349 = vld [vmem:[%s252 + $0x190] sm:$0xff]
        %v350 = vld [vmem:[%s252 + $0x198] sm:$0xff]
        %v351 = vld [vmem:[%s252 + $0x1a0] sm:$0xff]
        %v352 = vld [vmem:[%s252 + $0x1a8] sm:$0xff]
        %v353 = vld [vmem:[%s252 + $0x1b0] sm:$0xff]
        %v354 = vld [vmem:[%s252 + $0x1b8] sm:$0xff]
        %v355 = vld [vmem:[%s252 + $0x1c0] sm:$0xff]
        %v356 = vld [vmem:[%s252 + $0x1c8] sm:$0xff]
        %v357 = vld [vmem:[%s252 + $0x1d0] sm:$0xff]
        %v358 = vld [vmem:[%s252 + $0x1d8] sm:$0xff]
        %v359 = vld [vmem:[%s252 + $0x1e0] sm:$0xff]
        %v360 = vld [vmem:[%s252 + $0x1e8] sm:$0xff]
        %v361 = vld [vmem:[%s252 + $0x1f0] sm:$0xff]
        %v362 = vld [vmem:[%s252 + $0x1f8] sm:$0xff]
        %v363 = vld [vmem:[%s252 + $0x200] sm:$0xff]
        %v364 = vld [vmem:[%s252 + $0x208] sm:$0xff]
        %v365 = vld [vmem:[%s252 + $0x210] sm:$0xff]
        %v366 = vld [vmem:[%s252 + $0x218] sm:$0xff]
        %v367 = vld [vmem:[%s252 + $0x220] sm:$0xff]
        %v368 = vld [vmem:[%s252 + $0x228] sm:$0xff]
        %v369 = vld [vmem:[%s252 + $0x230] sm:$0xff]
        %v370 = vld [vmem:[%s252 + $0x238] sm:$0xff]
        %v371 = vld [vmem:[%s252 + $0x240] sm:$0xff]
        %v372 = vld [vmem:[%s252 + $0x248] sm:$0xff]
        %v373 = vld [vmem:[%s252 + $0x250] sm:$0xff]
        %v374 = vld [vmem:[%s252 + $0x258] sm:$0xff]
        %v375 = vld [vmem:[%s252 + $0x260] sm:$0xff]
        %v376 = vld [vmem:[%s252 + $0x268] sm:$0xff]
        %v377 = vld [vmem:[%s252 + $0x270] sm:$0xff]
        %v378 = vld [vmem:[%s252 + $0x278] sm:$0xff]
        %v379 = vld [vmem:[%s252 + $0x280] sm:$0xff]
        %v380 = vld [vmem:[%s252 + $0x288] sm:$0xff]
        %v381 = vld [vmem:[%s252 + $0x290] sm:$0xff]
        %v382 = vld [vmem:[%s252 + $0x298] sm:$0xff]
        %v383 = vld [vmem:[%s252 + $0x2a0] sm:$0xff]
        %v384 = vld [vmem:[%s252 + $0x2a8] sm:$0xff]
        %v385 = vld [vmem:[%s252 + $0x2b0] sm:$0xff]
        %v386 = vld [vmem:[%s252 + $0x2b8] sm:$0xff]
        %v387 = vld [vmem:[%s252 + $0x2c0] sm:$0xff]
        %v388 = vld [vmem:[%s252 + $0x2c8] sm:$0xff]
        %v389 = vld [vmem:[%s252 + $0x2d0] sm:$0xff]
        %v390 = vld [vmem:[%s252 + $0x2d8] sm:$0xff]
        %v391 = vld [vmem:[%s252 + $0x2e0] sm:$0xff]
        %v392 = vld [vmem:[%s252 + $0x2e8] sm:$0xff]
        %v393 = vld [vmem:[%s252 + $0x2f0] sm:$0xff]
        %v394 = vld [vmem:[%s252 + $0x2f8] sm:$0xff]
        %v395 = vld [vmem:[%s252 + $0x300] sm:$0xff]
        %v396 = vld [vmem:[%s252 + $0x308] sm:$0xff]
        %v397 = vld [vmem:[%s252 + $0x310] sm:$0xff]
        %v398 = vld [vmem:[%s252 + $0x318] sm:$0xff]
        %v399 = vld [vmem:[%s252 + $0x320] sm:$0xff]
        %v400 = vld [vmem:[%s252 + $0x328] sm:$0xff]
        %v401 = vld [vmem:[%s252 + $0x330] sm:$0xff]
        %v402 = vld [vmem:[%s252 + $0x338] sm:$0xff]
        %v403 = vld [vmem:[%s252 + $0x340] sm:$0xff]
        %v404 = vld [vmem:[%s252 + $0x348] sm:$0xff]
        %v405 = vld [vmem:[%s252 + $0x350] sm:$0xff]
        %v406 = vld [vmem:[%s252 + $0x358] sm:$0xff]
        %v407 = vld [vmem:[%s252 + $0x360] sm:$0xff]
        %v408 = vld [vmem:[%s252 + $0x368] sm:$0xff]
        %v409 = vld [vmem:[%s252 + $0x370] sm:$0xff]
        %v410 = vld [vmem:[%s252 + $0x378] sm:$0xff]
        %v411 = vld [vmem:[%s252 + $0x380] sm:$0xff]
        %v412 = vld [vmem:[%s252 + $0x388] sm:$0xff]
        %v413 = vld [vmem:[%s252 + $0x390] sm:$0xff]
        %v414 = vld [vmem:[%s252 + $0x398] sm:$0xff]
        %v415 = vld [vmem:[%s252 + $0x3a0] sm:$0xff]
        %v416 = vld [vmem:[%s252 + $0x3a8] sm:$0xff]
        %v417 = vld [vmem:[%s252 + $0x3b0] sm:$0xff]
        %v418 = vld [vmem:[%s252 + $0x3b8] sm:$0xff]
        %v419 = vld [vmem:[%s252 + $0x3c0] sm:$0xff]
        %v420 = vld [vmem:[%s252 + $0x3c8] sm:$0xff]
        %v421 = vld [vmem:[%s252 + $0x3d0] sm:$0xff]
        %v422 = vld [vmem:[%s252 + $0x3d8] sm:$0xff]
        %v423 = vld [vmem:[%s252 + $0x3e0] sm:$0xff]
        %v424 = vld [vmem:[%s252 + $0x3e8] sm:$0xff]
        %v425 = vld [vmem:[%s252 + $0x3f0] sm:$0xff]
        %v426 = vld [vmem:[%s252 + $0x3f8] sm:$0xff]
        %v427 = vld [vmem:[%s252 + $0x400] sm:$0xff]
        %v428 = vld [vmem:[%s252 + $0x408] sm:$0xff]
        %v429 = vld [vmem:[%s252 + $0x410] sm:$0xff]
        %v430 = vld [vmem:[%s252 + $0x418] sm:$0xff]
        %v431 = vld [vmem:[%s252 + $0x420] sm:$0xff]
        %v432 = vld [vmem:[%s252 + $0x428] sm:$0xff]
        %v433 = vld [vmem:[%s252 + $0x430] sm:$0xff]
        %v434 = vld [vmem:[%s252 + $0x438] sm:$0xff]
        %v435 = vld [vmem:[%s252 + $0x440] sm:$0xff]
        %v436 = vld [vmem:[%s252 + $0x448] sm:$0xff]
        %v437 = vld [vmem:[%s252 + $0x450] sm:$0xff]
        %v438 = vld [vmem:[%s252 + $0x458] sm:$0xff]
        %v439 = vld [vmem:[%s252 + $0x460] sm:$0xff]
        %v440 = vld [vmem:[%s252 + $0x468] sm:$0xff]
        %v441 = vld [vmem:[%s252 + $0x470] sm:$0xff]
        %v442 = vld [vmem:[%s252 + $0x478] sm:$0xff]
        %v443 = vld [vmem:[%s252 + $0x480] sm:$0xff]
        %v444 = vld [vmem:[%s252 + $0x488] sm:$0xff]
        %v445 = vld [vmem:[%s252 + $0x490] sm:$0xff]
        %v446 = vld [vmem:[%s252 + $0x498] sm:$0xff]
        %v447 = vld [vmem:[%s252 + $0x4a0] sm:$0xff]
        %v448 = vld [vmem:[%s252 + $0x4a8] sm:$0xff]
        %v449 = vld [vmem:[%s252 + $0x4b0] sm:$0xff]
        %v450 = vld [vmem:[%s252 + $0x4b8] sm:$0xff]
        %v451 = vld [vmem:[%s252 + $0x4c0] sm:$0xff]
        %v452 = vld [vmem:[%s252 + $0x4c8] sm:$0xff]
        %v453 = vld [vmem:[%s252 + $0x4d0] sm:$0xff]
        %v454 = vld [vmem:[%s252 + $0x4d8] sm:$0xff]
        %v455 = vld [vmem:[%s252 + $0x4e0] sm:$0xff]
        %v456 = vld [vmem:[%s252 + $0x4e8] sm:$0xff]
        %v457 = vld [vmem:[%s252 + $0x4f0] sm:$0xff]
        %v458 = vld [vmem:[%s252 + $0x4f8] sm:$0xff]
        %v459 = vld [vmem:[%s252 + $0x500] sm:$0xff]
        %v460 = vld [vmem:[%s252 + $0x508] sm:$0xff]
        %v461 = vld [vmem:[%s252 + $0x510] sm:$0xff]
        %v462 = vld [vmem:[%s252 + $0x518] sm:$0xff]
        %v463 = vld [vmem:[%s252 + $0x520] sm:$0xff]
        %v464 = vld [vmem:[%s252 + $0x528] sm:$0xff]
        %v465 = vld [vmem:[%s252 + $0x530] sm:$0xff]
        %v466 = vld [vmem:[%s252 + $0x538] sm:$0xff]
        %v467 = vld [vmem:[%s252 + $0x540] sm:$0xff]
        %v468 = vld [vmem:[%s252 + $0x548] sm:$0xff]
        %v469 = vld [vmem:[%s252 + $0x550] sm:$0xff]
        %v470 = vld [vmem:[%s252 + $0x558] sm:$0xff]
        %v471 = vld [vmem:[%s252 + $0x560] sm:$0xff]
        %v472 = vld [vmem:[%s252 + $0x568] sm:$0xff]
        %v473 = vld [vmem:[%s252 + $0x570] sm:$0xff]
        %v474 = vld [vmem:[%s252 + $0x578] sm:$0xff]
        %v475 = vld [vmem:[%s252 + $0x580] sm:$0xff]
        %v476 = vld [vmem:[%s252 + $0x588] sm:$0xff]
        %v477 = vld [vmem:[%s252 + $0x590] sm:$0xff]
        %v478 = vld [vmem:[%s252 + $0x598] sm:$0xff]
        %v479 = vld [vmem:[%s252 + $0x5a0] sm:$0xff]
        %v480 = vld [vmem:[%s252 + $0x5a8] sm:$0xff]
        %v481 = vld [vmem:[%s252 + $0x5b0] sm:$0xff]
        %v482 = vld [vmem:[%s252 + $0x5b8] sm:$0xff]
        %v483 = vld [vmem:[%s252 + $0x5c0] sm:$0xff]
        %v484 = vld [vmem:[%s252 + $0x5c8] sm:$0xff]
        %v485 = vld [vmem:[%s252 + $0x5d0] sm:$0xff]
        %v486 = vld [vmem:[%s252 + $0x5d8] sm:$0xff]
        %v487 = vld [vmem:[%s252 + $0x5e0] sm:$0xff]
        %v488 = vld [vmem:[%s252 + $0x5e8] sm:$0xff]
        %v489 = vld [vmem:[%s252 + $0x5f0] sm:$0xff]
        %v490 = vld [vmem:[%s252 + $0x5f8] sm:$0xff]
        %v491 = vld [vmem:[%s252 + $0x600] sm:$0xff]
        %v492 = vld [vmem:[%s252 + $0x608] sm:$0xff]
        %v493 = vld [vmem:[%s252 + $0x610] sm:$0xff]
        %v494 = vld [vmem:[%s252 + $0x618] sm:$0xff]
        %v495 = vld [vmem:[%s252 + $0x620] sm:$0xff]
        %v496 = vld [vmem:[%s252 + $0x628] sm:$0xff]
        %v497 = vld [vmem:[%s252 + $0x630] sm:$0xff]
        %v498 = vld [vmem:[%s252 + $0x638] sm:$0xff]
        %v499 = vld [vmem:[%s252 + $0x640] sm:$0xff]
        %v500 = vld [vmem:[%s252 + $0x648] sm:$0xff]
        %v501 = vld [vmem:[%s252 + $0x650] sm:$0xff]
        %v502 = vld [vmem:[%s252 + $0x658] sm:$0xff]
        %v503 = vld [vmem:[%s252 + $0x660] sm:$0xff]
        %v504 = vld [vmem:[%s252 + $0x668] sm:$0xff]
        %v505 = vld [vmem:[%s252 + $0x670] sm:$0xff]
        %v506 = vld [vmem:[%s252 + $0x678] sm:$0xff]
        %v507 = vld [vmem:[%s252 + $0x680] sm:$0xff]
        %v508 = vld [vmem:[%s252 + $0x688] sm:$0xff]
        %v509 = vld [vmem:[%s252 + $0x690] sm:$0xff]
        %v510 = vld [vmem:[%s252 + $0x698] sm:$0xff]
        %v511 = vld [vmem:[%s252 + $0x6a0] sm:$0xff]
        %v512 = vld [vmem:[%s252 + $0x6a8] sm:$0xff]
        %v513 = vld [vmem:[%s252 + $0x6b0] sm:$0xff]
        %v514 = vld [vmem:[%s252 + $0x6b8] sm:$0xff]
        %v515 = vld [vmem:[%s252 + $0x6c0] sm:$0xff]
        %v516 = vld [vmem:[%s252 + $0x6c8] sm:$0xff]
        %v517 = vld [vmem:[%s252 + $0x6d0] sm:$0xff]
        %v518 = vld [vmem:[%s252 + $0x6d8] sm:$0xff]
        %v519 = vld [vmem:[%s252 + $0x6e0] sm:$0xff]
        %v520 = vld [vmem:[%s252 + $0x6e8] sm:$0xff]
        %v521 = vld [vmem:[%s252 + $0x6f0] sm:$0xff]
        %v522 = vld [vmem:[%s252 + $0x6f8] sm:$0xff]
        %v523 = vld [vmem:[%s252 + $0x700] sm:$0xff]
        %v524 = vld [vmem:[%s252 + $0x708] sm:$0xff]
        %v525 = vld [vmem:[%s252 + $0x710] sm:$0xff]
        %v526 = vld [vmem:[%s252 + $0x718] sm:$0xff]
        %v527 = vld [vmem:[%s252 + $0x720] sm:$0xff]
        %v528 = vld [vmem:[%s252 + $0x728] sm:$0xff]
        %v529 = vld [vmem:[%s252 + $0x730] sm:$0xff]
        %v530 = vld [vmem:[%s252 + $0x738] sm:$0xff]
        %v531 = vld [vmem:[%s252 + $0x740] sm:$0xff]
        %v532 = vld [vmem:[%s252 + $0x748] sm:$0xff]
        %v533 = vld [vmem:[%s252 + $0x750] sm:$0xff]
        %v534 = vld [vmem:[%s252 + $0x758] sm:$0xff]
        %v535 = vld [vmem:[%s252 + $0x760] sm:$0xff]
        %v536 = vld [vmem:[%s252 + $0x768] sm:$0xff]
        %v537 = vld [vmem:[%s252 + $0x770] sm:$0xff]
        %v538 = vld [vmem:[%s252 + $0x778] sm:$0xff]
        %v539 = vld [vmem:[%s252 + $0x780] sm:$0xff]
        %v540 = vld [vmem:[%s252 + $0x788] sm:$0xff]
        %v541 = vld [vmem:[%s252 + $0x790] sm:$0xff]
        %v542 = vld [vmem:[%s252 + $0x798] sm:$0xff]
        %v543 = vld [vmem:[%s252 + $0x7a0] sm:$0xff]
        %v544 = vld [vmem:[%s252 + $0x7a8] sm:$0xff]
        %v545 = vld [vmem:[%s252 + $0x7b0] sm:$0xff]
        %v546 = vld [vmem:[%s252 + $0x7b8] sm:$0xff]
        %v547 = vld [vmem:[%s252 + $0x7c0] sm:$0xff]
        %v548 = vld [vmem:[%s252 + $0x7c8] sm:$0xff]
        %v549 = vld [vmem:[%s252 + $0x7d0] sm:$0xff]
        %v550 = vld [vmem:[%s252 + $0x7d8] sm:$0xff]
        %v551 = vld [vmem:[%s252 + $0x7e0] sm:$0xff]
        %v552 = vld [vmem:[%s252 + $0x7e8] sm:$0xff]
        %v553 = vld [vmem:[%s252 + $0x7f0] sm:$0xff]
        %v554 = vld [vmem:[%s252 + $0x7f8] sm:$0xff]
        %v555 = vpack.c.bf16 %v307, %v299
        %v556 = vpack.c.bf16 %v308, %v300
        %v557 = vpack.c.bf16 %v309, %v301
        %v558 = vpack.c.bf16 %v310, %v302
        %v559 = vpack.c.bf16 %v311, %v303
        %v560 = vpack.c.bf16 %v312, %v304
        %v561 = vpack.c.bf16 %v313, %v305
        %v562 = vpack.c.bf16 %v314, %v306
        %v563 = vpack.c.bf16 %v323, %v315
        %v564 = vpack.c.bf16 %v324, %v316
        %v565 = vpack.c.bf16 %v325, %v317
        %v566 = vpack.c.bf16 %v326, %v318
        %v567 = vpack.c.bf16 %v327, %v319
        %v568 = vpack.c.bf16 %v328, %v320
        %v569 = vpack.c.bf16 %v329, %v321
        %v570 = vpack.c.bf16 %v330, %v322
        %v571 = vpack.c.bf16 %v339, %v331
        %v572 = vpack.c.bf16 %v340, %v332
        %v573 = vpack.c.bf16 %v341, %v333
        %v574 = vpack.c.bf16 %v342, %v334
        %v575 = vpack.c.bf16 %v343, %v335
        %v576 = vpack.c.bf16 %v344, %v336
        %v577 = vpack.c.bf16 %v345, %v337
        %v578 = vpack.c.bf16 %v346, %v338
        %v579 = vpack.c.bf16 %v355, %v347
        %v580 = vpack.c.bf16 %v356, %v348
        %v581 = vpack.c.bf16 %v357, %v349
        %v582 = vpack.c.bf16 %v358, %v350
        %v583 = vpack.c.bf16 %v359, %v351
        %v584 = vpack.c.bf16 %v360, %v352
        %v585 = vpack.c.bf16 %v361, %v353
        %v586 = vpack.c.bf16 %v362, %v354
        %v587 = vpack.c.bf16 %v371, %v363
        %v588 = vpack.c.bf16 %v372, %v364
        %v589 = vpack.c.bf16 %v373, %v365
        %v590 = vpack.c.bf16 %v374, %v366
        %v591 = vpack.c.bf16 %v375, %v367
        %v592 = vpack.c.bf16 %v376, %v368
        %v593 = vpack.c.bf16 %v377, %v369
        %v594 = vpack.c.bf16 %v378, %v370
        %v595 = vpack.c.bf16 %v387, %v379
        %v596 = vpack.c.bf16 %v388, %v380
        %v597 = vpack.c.bf16 %v389, %v381
        %v598 = vpack.c.bf16 %v390, %v382
        %v599 = vpack.c.bf16 %v391, %v383
        %v600 = vpack.c.bf16 %v392, %v384
        %v601 = vpack.c.bf16 %v393, %v385
        %v602 = vpack.c.bf16 %v394, %v386
        %v603 = vpack.c.bf16 %v403, %v395
        %v604 = vpack.c.bf16 %v404, %v396
        %v605 = vpack.c.bf16 %v405, %v397
        %v606 = vpack.c.bf16 %v406, %v398
        %v607 = vpack.c.bf16 %v407, %v399
        %v608 = vpack.c.bf16 %v408, %v400
        %v609 = vpack.c.bf16 %v409, %v401
        %v610 = vpack.c.bf16 %v410, %v402
        %v611 = vpack.c.bf16 %v419, %v411
        %v612 = vpack.c.bf16 %v420, %v412
        %v613 = vpack.c.bf16 %v421, %v413
        %v614 = vpack.c.bf16 %v422, %v414
        %v615 = vpack.c.bf16 %v423, %v415
        %v616 = vpack.c.bf16 %v424, %v416
        %v617 = vpack.c.bf16 %v425, %v417
        %v618 = vpack.c.bf16 %v426, %v418
        %v619 = vpack.c.bf16 %v435, %v427
        %v620 = vpack.c.bf16 %v436, %v428
        %v621 = vpack.c.bf16 %v437, %v429
        %v622 = vpack.c.bf16 %v438, %v430
        %v623 = vpack.c.bf16 %v439, %v431
        %v624 = vpack.c.bf16 %v440, %v432
        %v625 = vpack.c.bf16 %v441, %v433
        %v626 = vpack.c.bf16 %v442, %v434
        %v627 = vpack.c.bf16 %v451, %v443
        %v628 = vpack.c.bf16 %v452, %v444
        %v629 = vpack.c.bf16 %v453, %v445
        %v630 = vpack.c.bf16 %v454, %v446
        %v631 = vpack.c.bf16 %v455, %v447
        %v632 = vpack.c.bf16 %v456, %v448
        %v633 = vpack.c.bf16 %v457, %v449
        %v634 = vpack.c.bf16 %v458, %v450
        %v635 = vpack.c.bf16 %v467, %v459
        %v636 = vpack.c.bf16 %v468, %v460
        %v637 = vpack.c.bf16 %v469, %v461
        %v638 = vpack.c.bf16 %v470, %v462
        %v639 = vpack.c.bf16 %v471, %v463
        %v640 = vpack.c.bf16 %v472, %v464
        %v641 = vpack.c.bf16 %v473, %v465
        %v642 = vpack.c.bf16 %v474, %v466
        %v643 = vpack.c.bf16 %v483, %v475
        %v644 = vpack.c.bf16 %v484, %v476
        %v645 = vpack.c.bf16 %v485, %v477
        %v646 = vpack.c.bf16 %v486, %v478
        %v647 = vpack.c.bf16 %v487, %v479
        %v648 = vpack.c.bf16 %v488, %v480
        %v649 = vpack.c.bf16 %v489, %v481
        %v650 = vpack.c.bf16 %v490, %v482
        %v651 = vpack.c.bf16 %v499, %v491
        %v652 = vpack.c.bf16 %v500, %v492
        %v653 = vpack.c.bf16 %v501, %v493
        %v654 = vpack.c.bf16 %v502, %v494
        %v655 = vpack.c.bf16 %v503, %v495
        %v656 = vpack.c.bf16 %v504, %v496
        %v657 = vpack.c.bf16 %v505, %v497
        %v658 = vpack.c.bf16 %v506, %v498
        %v659 = vpack.c.bf16 %v515, %v507
        %v660 = vpack.c.bf16 %v516, %v508
        %v661 = vpack.c.bf16 %v517, %v509
        %v662 = vpack.c.bf16 %v518, %v510
        %v663 = vpack.c.bf16 %v519, %v511
        %v664 = vpack.c.bf16 %v520, %v512
        %v665 = vpack.c.bf16 %v521, %v513
        %v666 = vpack.c.bf16 %v522, %v514
        %v667 = vpack.c.bf16 %v531, %v523
        %v668 = vpack.c.bf16 %v532, %v524
        %v669 = vpack.c.bf16 %v533, %v525
        %v670 = vpack.c.bf16 %v534, %v526
        %v671 = vpack.c.bf16 %v535, %v527
        %v672 = vpack.c.bf16 %v536, %v528
        %v673 = vpack.c.bf16 %v537, %v529
        %v674 = vpack.c.bf16 %v538, %v530
        %v675 = vpack.c.bf16 %v547, %v539
        %v676 = vpack.c.bf16 %v548, %v540
        %v677 = vpack.c.bf16 %v549, %v541
        %v678 = vpack.c.bf16 %v550, %v542
        %v679 = vpack.c.bf16 %v551, %v543
        %v680 = vpack.c.bf16 %v552, %v544
        %v681 = vpack.c.bf16 %v553, %v545
        %v682 = vpack.c.bf16 %v554, %v546
        %v683 = vld [vmem:[#allocation5] sm:$0xff]
        %v684 = vld [vmem:[#allocation5 + $0x8] sm:$0xff]
        %v685 = vld [vmem:[#allocation5 + $0x10] sm:$0xff]
        %v686 = vld [vmem:[#allocation5 + $0x18] sm:$0xff]
        %v687 = vld [vmem:[#allocation5 + $0x20] sm:$0xff]
        %v688 = vld [vmem:[#allocation5 + $0x28] sm:$0xff]
        %v689 = vld [vmem:[#allocation5 + $0x30] sm:$0xff]
        %v690 = vld [vmem:[#allocation5 + $0x38] sm:$0xff]
        %v691 = vld [vmem:[#allocation5 + $0x40] sm:$0xff]
        %v692 = vld [vmem:[#allocation5 + $0x48] sm:$0xff]
        %v693 = vld [vmem:[#allocation5 + $0x50] sm:$0xff]
        %v694 = vld [vmem:[#allocation5 + $0x58] sm:$0xff]
        %v695 = vld [vmem:[#allocation5 + $0x60] sm:$0xff]
        %v696 = vld [vmem:[#allocation5 + $0x68] sm:$0xff]
        %v697 = vld [vmem:[#allocation5 + $0x70] sm:$0xff]
        %v698 = vld [vmem:[#allocation5 + $0x78] sm:$0xff]
        %v699 = vld [vmem:[#allocation5 + $0x80] sm:$0xff]
        %v700 = vld [vmem:[#allocation5 + $0x88] sm:$0xff]
        %v701 = vld [vmem:[#allocation5 + $0x90] sm:$0xff]
        %v702 = vld [vmem:[#allocation5 + $0x98] sm:$0xff]
        %v703 = vld [vmem:[#allocation5 + $0xa0] sm:$0xff]
        %v704 = vld [vmem:[#allocation5 + $0xa8] sm:$0xff]
        %v705 = vld [vmem:[#allocation5 + $0xb0] sm:$0xff]
        %v706 = vld [vmem:[#allocation5 + $0xb8] sm:$0xff]
        %v707 = vld [vmem:[#allocation5 + $0xc0] sm:$0xff]
        %v708 = vld [vmem:[#allocation5 + $0xc8] sm:$0xff]
        %v709 = vld [vmem:[#allocation5 + $0xd0] sm:$0xff]
        %v710 = vld [vmem:[#allocation5 + $0xd8] sm:$0xff]
        %v711 = vld [vmem:[#allocation5 + $0xe0] sm:$0xff]
        %v712 = vld [vmem:[#allocation5 + $0xe8] sm:$0xff]
        %v713 = vld [vmem:[#allocation5 + $0xf0] sm:$0xff]
        %v714 = vld [vmem:[#allocation5 + $0xf8] sm:$0xff]
        %v715 = vld [vmem:[#allocation5 + $0x100] sm:$0xff]
        %v716 = vld [vmem:[#allocation5 + $0x108] sm:$0xff]
        %v717 = vld [vmem:[#allocation5 + $0x110] sm:$0xff]
        %v718 = vld [vmem:[#allocation5 + $0x118] sm:$0xff]
        %v719 = vld [vmem:[#allocation5 + $0x120] sm:$0xff]
        %v720 = vld [vmem:[#allocation5 + $0x128] sm:$0xff]
        %v721 = vld [vmem:[#allocation5 + $0x130] sm:$0xff]
        %v722 = vld [vmem:[#allocation5 + $0x138] sm:$0xff]
        %v723 = vld [vmem:[#allocation5 + $0x140] sm:$0xff]
        %v724 = vld [vmem:[#allocation5 + $0x148] sm:$0xff]
        %v725 = vld [vmem:[#allocation5 + $0x150] sm:$0xff]
        %v726 = vld [vmem:[#allocation5 + $0x158] sm:$0xff]
        %v727 = vld [vmem:[#allocation5 + $0x160] sm:$0xff]
        %v728 = vld [vmem:[#allocation5 + $0x168] sm:$0xff]
        %v729 = vld [vmem:[#allocation5 + $0x170] sm:$0xff]
        %v730 = vld [vmem:[#allocation5 + $0x178] sm:$0xff]
        %v731 = vld [vmem:[#allocation5 + $0x180] sm:$0xff]
        %v732 = vld [vmem:[#allocation5 + $0x188] sm:$0xff]
        %v733 = vld [vmem:[#allocation5 + $0x190] sm:$0xff]
        %v734 = vld [vmem:[#allocation5 + $0x198] sm:$0xff]
        %v735 = vld [vmem:[#allocation5 + $0x1a0] sm:$0xff]
        %v736 = vld [vmem:[#allocation5 + $0x1a8] sm:$0xff]
        %v737 = vld [vmem:[#allocation5 + $0x1b0] sm:$0xff]
        %v738 = vld [vmem:[#allocation5 + $0x1b8] sm:$0xff]
        %v739 = vld [vmem:[#allocation5 + $0x1c0] sm:$0xff]
        %v740 = vld [vmem:[#allocation5 + $0x1c8] sm:$0xff]
        %v741 = vld [vmem:[#allocation5 + $0x1d0] sm:$0xff]
        %v742 = vld [vmem:[#allocation5 + $0x1d8] sm:$0xff]
        %v743 = vld [vmem:[#allocation5 + $0x1e0] sm:$0xff]
        %v744 = vld [vmem:[#allocation5 + $0x1e8] sm:$0xff]
        %v745 = vld [vmem:[#allocation5 + $0x1f0] sm:$0xff]
        %v746 = vld [vmem:[#allocation5 + $0x1f8] sm:$0xff]
        %v747 = vld [vmem:[#allocation5 + $0x200] sm:$0xff]
        %v748 = vld [vmem:[#allocation5 + $0x208] sm:$0xff]
        %v749 = vld [vmem:[#allocation5 + $0x210] sm:$0xff]
        %v750 = vld [vmem:[#allocation5 + $0x218] sm:$0xff]
        %v751 = vld [vmem:[#allocation5 + $0x220] sm:$0xff]
        %v752 = vld [vmem:[#allocation5 + $0x228] sm:$0xff]
        %v753 = vld [vmem:[#allocation5 + $0x230] sm:$0xff]
        %v754 = vld [vmem:[#allocation5 + $0x238] sm:$0xff]
        %v755 = vld [vmem:[#allocation5 + $0x240] sm:$0xff]
        %v756 = vld [vmem:[#allocation5 + $0x248] sm:$0xff]
        %v757 = vld [vmem:[#allocation5 + $0x250] sm:$0xff]
        %v758 = vld [vmem:[#allocation5 + $0x258] sm:$0xff]
        %v759 = vld [vmem:[#allocation5 + $0x260] sm:$0xff]
        %v760 = vld [vmem:[#allocation5 + $0x268] sm:$0xff]
        %v761 = vld [vmem:[#allocation5 + $0x270] sm:$0xff]
        %v762 = vld [vmem:[#allocation5 + $0x278] sm:$0xff]
        %v763 = vld [vmem:[#allocation5 + $0x280] sm:$0xff]
        %v764 = vld [vmem:[#allocation5 + $0x288] sm:$0xff]
        %v765 = vld [vmem:[#allocation5 + $0x290] sm:$0xff]
        %v766 = vld [vmem:[#allocation5 + $0x298] sm:$0xff]
        %v767 = vld [vmem:[#allocation5 + $0x2a0] sm:$0xff]
        %v768 = vld [vmem:[#allocation5 + $0x2a8] sm:$0xff]
        %v769 = vld [vmem:[#allocation5 + $0x2b0] sm:$0xff]
        %v770 = vld [vmem:[#allocation5 + $0x2b8] sm:$0xff]
        %v771 = vld [vmem:[#allocation5 + $0x2c0] sm:$0xff]
        %v772 = vld [vmem:[#allocation5 + $0x2c8] sm:$0xff]
        %v773 = vld [vmem:[#allocation5 + $0x2d0] sm:$0xff]
        %v774 = vld [vmem:[#allocation5 + $0x2d8] sm:$0xff]
        %v775 = vld [vmem:[#allocation5 + $0x2e0] sm:$0xff]
        %v776 = vld [vmem:[#allocation5 + $0x2e8] sm:$0xff]
        %v777 = vld [vmem:[#allocation5 + $0x2f0] sm:$0xff]
        %v778 = vld [vmem:[#allocation5 + $0x2f8] sm:$0xff]
        %v779 = vld [vmem:[#allocation5 + $0x300] sm:$0xff]
        %v780 = vld [vmem:[#allocation5 + $0x308] sm:$0xff]
        %v781 = vld [vmem:[#allocation5 + $0x310] sm:$0xff]
        %v782 = vld [vmem:[#allocation5 + $0x318] sm:$0xff]
        %v783 = vld [vmem:[#allocation5 + $0x320] sm:$0xff]
        %v784 = vld [vmem:[#allocation5 + $0x328] sm:$0xff]
        %v785 = vld [vmem:[#allocation5 + $0x330] sm:$0xff]
        %v786 = vld [vmem:[#allocation5 + $0x338] sm:$0xff]
        %v787 = vld [vmem:[#allocation5 + $0x340] sm:$0xff]
        %v788 = vld [vmem:[#allocation5 + $0x348] sm:$0xff]
        %v789 = vld [vmem:[#allocation5 + $0x350] sm:$0xff]
        %v790 = vld [vmem:[#allocation5 + $0x358] sm:$0xff]
        %v791 = vld [vmem:[#allocation5 + $0x360] sm:$0xff]
        %v792 = vld [vmem:[#allocation5 + $0x368] sm:$0xff]
        %v793 = vld [vmem:[#allocation5 + $0x370] sm:$0xff]
        %v794 = vld [vmem:[#allocation5 + $0x378] sm:$0xff]
        %v795 = vld [vmem:[#allocation5 + $0x380] sm:$0xff]
        %v796 = vld [vmem:[#allocation5 + $0x388] sm:$0xff]
        %v797 = vld [vmem:[#allocation5 + $0x390] sm:$0xff]
        %v798 = vld [vmem:[#allocation5 + $0x398] sm:$0xff]
        %v799 = vld [vmem:[#allocation5 + $0x3a0] sm:$0xff]
        %v800 = vld [vmem:[#allocation5 + $0x3a8] sm:$0xff]
        %v801 = vld [vmem:[#allocation5 + $0x3b0] sm:$0xff]
        %v802 = vld [vmem:[#allocation5 + $0x3b8] sm:$0xff]
        %v803 = vld [vmem:[#allocation5 + $0x3c0] sm:$0xff]
        %v804 = vld [vmem:[#allocation5 + $0x3c8] sm:$0xff]
        %v805 = vld [vmem:[#allocation5 + $0x3d0] sm:$0xff]
        %v806 = vld [vmem:[#allocation5 + $0x3d8] sm:$0xff]
        %v807 = vld [vmem:[#allocation5 + $0x3e0] sm:$0xff]
        %v808 = vld [vmem:[#allocation5 + $0x3e8] sm:$0xff]
        %v809 = vld [vmem:[#allocation5 + $0x3f0] sm:$0xff]
        %v810 = vld [vmem:[#allocation5 + $0x3f8] sm:$0xff]
        %v811 = vld [vmem:[#allocation5 + $0x400] sm:$0xff]
        %v812 = vld [vmem:[#allocation5 + $0x408] sm:$0xff]
        %v813 = vld [vmem:[#allocation5 + $0x410] sm:$0xff]
        %v814 = vld [vmem:[#allocation5 + $0x418] sm:$0xff]
        %v815 = vld [vmem:[#allocation5 + $0x420] sm:$0xff]
        %v816 = vld [vmem:[#allocation5 + $0x428] sm:$0xff]
        %v817 = vld [vmem:[#allocation5 + $0x430] sm:$0xff]
        %v818 = vld [vmem:[#allocation5 + $0x438] sm:$0xff]
        %v819 = vld [vmem:[#allocation5 + $0x440] sm:$0xff]
        %v820 = vld [vmem:[#allocation5 + $0x448] sm:$0xff]
        %v821 = vld [vmem:[#allocation5 + $0x450] sm:$0xff]
        %v822 = vld [vmem:[#allocation5 + $0x458] sm:$0xff]
        %v823 = vld [vmem:[#allocation5 + $0x460] sm:$0xff]
        %v824 = vld [vmem:[#allocation5 + $0x468] sm:$0xff]
        %v825 = vld [vmem:[#allocation5 + $0x470] sm:$0xff]
        %v826 = vld [vmem:[#allocation5 + $0x478] sm:$0xff]
        %v827 = vld [vmem:[#allocation5 + $0x480] sm:$0xff]
        %v828 = vld [vmem:[#allocation5 + $0x488] sm:$0xff]
        %v829 = vld [vmem:[#allocation5 + $0x490] sm:$0xff]
        %v830 = vld [vmem:[#allocation5 + $0x498] sm:$0xff]
        %v831 = vld [vmem:[#allocation5 + $0x4a0] sm:$0xff]
        %v832 = vld [vmem:[#allocation5 + $0x4a8] sm:$0xff]
        %v833 = vld [vmem:[#allocation5 + $0x4b0] sm:$0xff]
        %v834 = vld [vmem:[#allocation5 + $0x4b8] sm:$0xff]
        %v835 = vld [vmem:[#allocation5 + $0x4c0] sm:$0xff]
        %v836 = vld [vmem:[#allocation5 + $0x4c8] sm:$0xff]
        %v837 = vld [vmem:[#allocation5 + $0x4d0] sm:$0xff]
        %v838 = vld [vmem:[#allocation5 + $0x4d8] sm:$0xff]
        %v839 = vld [vmem:[#allocation5 + $0x4e0] sm:$0xff]
        %v840 = vld [vmem:[#allocation5 + $0x4e8] sm:$0xff]
        %v841 = vld [vmem:[#allocation5 + $0x4f0] sm:$0xff]
        %v842 = vld [vmem:[#allocation5 + $0x4f8] sm:$0xff]
        %v843 = vld [vmem:[#allocation5 + $0x500] sm:$0xff]
        %v844 = vld [vmem:[#allocation5 + $0x508] sm:$0xff]
        %v845 = vld [vmem:[#allocation5 + $0x510] sm:$0xff]
        %v846 = vld [vmem:[#allocation5 + $0x518] sm:$0xff]
        %v847 = vld [vmem:[#allocation5 + $0x520] sm:$0xff]
        %v848 = vld [vmem:[#allocation5 + $0x528] sm:$0xff]
        %v849 = vld [vmem:[#allocation5 + $0x530] sm:$0xff]
        %v850 = vld [vmem:[#allocation5 + $0x538] sm:$0xff]
        %v851 = vld [vmem:[#allocation5 + $0x540] sm:$0xff]
        %v852 = vld [vmem:[#allocation5 + $0x548] sm:$0xff]
        %v853 = vld [vmem:[#allocation5 + $0x550] sm:$0xff]
        %v854 = vld [vmem:[#allocation5 + $0x558] sm:$0xff]
        %v855 = vld [vmem:[#allocation5 + $0x560] sm:$0xff]
        %v856 = vld [vmem:[#allocation5 + $0x568] sm:$0xff]
        %v857 = vld [vmem:[#allocation5 + $0x570] sm:$0xff]
        %v858 = vld [vmem:[#allocation5 + $0x578] sm:$0xff]
        %v859 = vld [vmem:[#allocation5 + $0x580] sm:$0xff]
        %v860 = vld [vmem:[#allocation5 + $0x588] sm:$0xff]
        %v861 = vld [vmem:[#allocation5 + $0x590] sm:$0xff]
        %v862 = vld [vmem:[#allocation5 + $0x598] sm:$0xff]
        %v863 = vld [vmem:[#allocation5 + $0x5a0] sm:$0xff]
        %v864 = vld [vmem:[#allocation5 + $0x5a8] sm:$0xff]
        %v865 = vld [vmem:[#allocation5 + $0x5b0] sm:$0xff]
        %v866 = vld [vmem:[#allocation5 + $0x5b8] sm:$0xff]
        %v867 = vld [vmem:[#allocation5 + $0x5c0] sm:$0xff]
        %v868 = vld [vmem:[#allocation5 + $0x5c8] sm:$0xff]
        %v869 = vld [vmem:[#allocation5 + $0x5d0] sm:$0xff]
        %v870 = vld [vmem:[#allocation5 + $0x5d8] sm:$0xff]
        %v871 = vld [vmem:[#allocation5 + $0x5e0] sm:$0xff]
        %v872 = vld [vmem:[#allocation5 + $0x5e8] sm:$0xff]
        %v873 = vld [vmem:[#allocation5 + $0x5f0] sm:$0xff]
        %v874 = vld [vmem:[#allocation5 + $0x5f8] sm:$0xff]
        %v875 = vld [vmem:[#allocation5 + $0x600] sm:$0xff]
        %v876 = vld [vmem:[#allocation5 + $0x608] sm:$0xff]
        %v877 = vld [vmem:[#allocation5 + $0x610] sm:$0xff]
        %v878 = vld [vmem:[#allocation5 + $0x618] sm:$0xff]
        %v879 = vld [vmem:[#allocation5 + $0x620] sm:$0xff]
        %v880 = vld [vmem:[#allocation5 + $0x628] sm:$0xff]
        %v881 = vld [vmem:[#allocation5 + $0x630] sm:$0xff]
        %v882 = vld [vmem:[#allocation5 + $0x638] sm:$0xff]
        %v883 = vld [vmem:[#allocation5 + $0x640] sm:$0xff]
        %v884 = vld [vmem:[#allocation5 + $0x648] sm:$0xff]
        %v885 = vld [vmem:[#allocation5 + $0x650] sm:$0xff]
        %v886 = vld [vmem:[#allocation5 + $0x658] sm:$0xff]
        %v887 = vld [vmem:[#allocation5 + $0x660] sm:$0xff]
        %v888 = vld [vmem:[#allocation5 + $0x668] sm:$0xff]
        %v889 = vld [vmem:[#allocation5 + $0x670] sm:$0xff]
        %v890 = vld [vmem:[#allocation5 + $0x678] sm:$0xff]
        %v891 = vld [vmem:[#allocation5 + $0x680] sm:$0xff]
        %v892 = vld [vmem:[#allocation5 + $0x688] sm:$0xff]
        %v893 = vld [vmem:[#allocation5 + $0x690] sm:$0xff]
        %v894 = vld [vmem:[#allocation5 + $0x698] sm:$0xff]
        %v895 = vld [vmem:[#allocation5 + $0x6a0] sm:$0xff]
        %v896 = vld [vmem:[#allocation5 + $0x6a8] sm:$0xff]
        %v897 = vld [vmem:[#allocation5 + $0x6b0] sm:$0xff]
        %v898 = vld [vmem:[#allocation5 + $0x6b8] sm:$0xff]
        %v899 = vld [vmem:[#allocation5 + $0x6c0] sm:$0xff]
        %v900 = vld [vmem:[#allocation5 + $0x6c8] sm:$0xff]
        %v901 = vld [vmem:[#allocation5 + $0x6d0] sm:$0xff]
        %v902 = vld [vmem:[#allocation5 + $0x6d8] sm:$0xff]
        %v903 = vld [vmem:[#allocation5 + $0x6e0] sm:$0xff]
        %v904 = vld [vmem:[#allocation5 + $0x6e8] sm:$0xff]
        %v905 = vld [vmem:[#allocation5 + $0x6f0] sm:$0xff]
        %v906 = vld [vmem:[#allocation5 + $0x6f8] sm:$0xff]
        %v907 = vld [vmem:[#allocation5 + $0x700] sm:$0xff]
        %v908 = vld [vmem:[#allocation5 + $0x708] sm:$0xff]
        %v909 = vld [vmem:[#allocation5 + $0x710] sm:$0xff]
        %v910 = vld [vmem:[#allocation5 + $0x718] sm:$0xff]
        %v911 = vld [vmem:[#allocation5 + $0x720] sm:$0xff]
        %v912 = vld [vmem:[#allocation5 + $0x728] sm:$0xff]
        %v913 = vld [vmem:[#allocation5 + $0x730] sm:$0xff]
        %v914 = vld [vmem:[#allocation5 + $0x738] sm:$0xff]
        %v915 = vld [vmem:[#allocation5 + $0x740] sm:$0xff]
        %v916 = vld [vmem:[#allocation5 + $0x748] sm:$0xff]
        %v917 = vld [vmem:[#allocation5 + $0x750] sm:$0xff]
        %v918 = vld [vmem:[#allocation5 + $0x758] sm:$0xff]
        %v919 = vld [vmem:[#allocation5 + $0x760] sm:$0xff]
        %v920 = vld [vmem:[#allocation5 + $0x768] sm:$0xff]
        %v921 = vld [vmem:[#allocation5 + $0x770] sm:$0xff]
        %v922 = vld [vmem:[#allocation5 + $0x778] sm:$0xff]
        %v923 = vld [vmem:[#allocation5 + $0x780] sm:$0xff]
        %v924 = vld [vmem:[#allocation5 + $0x788] sm:$0xff]
        %v925 = vld [vmem:[#allocation5 + $0x790] sm:$0xff]
        %v926 = vld [vmem:[#allocation5 + $0x798] sm:$0xff]
        %v927 = vld [vmem:[#allocation5 + $0x7a0] sm:$0xff]
        %v928 = vld [vmem:[#allocation5 + $0x7a8] sm:$0xff]
        %v929 = vld [vmem:[#allocation5 + $0x7b0] sm:$0xff]
        %v930 = vld [vmem:[#allocation5 + $0x7b8] sm:$0xff]
        %v931 = vld [vmem:[#allocation5 + $0x7c0] sm:$0xff]
        %v932 = vld [vmem:[#allocation5 + $0x7c8] sm:$0xff]
        %v933 = vld [vmem:[#allocation5 + $0x7d0] sm:$0xff]
        %v934 = vld [vmem:[#allocation5 + $0x7d8] sm:$0xff]
        %v935 = vld [vmem:[#allocation5 + $0x7e0] sm:$0xff]
        %v936 = vld [vmem:[#allocation5 + $0x7e8] sm:$0xff]
        %v937 = vld [vmem:[#allocation5 + $0x7f0] sm:$0xff]
        %v938 = vld [vmem:[#allocation5 + $0x7f8] sm:$0xff]
        %v939 = vld [vmem:[#allocation7] sm:$0xf]
        %v941 = vlaneseq
        %v942 = vshrl.u32 %v941, 7
        %v943 = vsub.s32 0, %v942
        %v944 = vrot.slane %v939, %v943
        %v945 = vlaneseq
        %v946 = vshrl.u32 %v945, 7
        %v947 = vsub.s32 1, %v946
        %v948 = vrot.slane %v939, %v947
        %v949 = vlaneseq
        %v950 = vshrl.u32 %v949, 7
        %v951 = vsub.s32 2, %v950
        %v952 = vrot.slane %v939, %v951
        %v953 = vlaneseq
        %v954 = vshrl.u32 %v953, 7
        %v955 = vsub.s32 3, %v954
        %v956 = vrot.slane %v939, %v955
        %v1217 = vunpack.c.l.b16 %v683
        %v1218 = vunpack.c.h.b16 %v683
        %v1219 = vunpack.c.l.b16 %v684
        %v1220 = vunpack.c.h.b16 %v684
        %v1221 = vunpack.c.l.b16 %v685
        %v1222 = vunpack.c.h.b16 %v685
        %v1223 = vunpack.c.l.b16 %v686
        %v1224 = vunpack.c.h.b16 %v686
        %v1225 = vunpack.c.l.b16 %v687
        %v1226 = vunpack.c.h.b16 %v687
        %v1227 = vunpack.c.l.b16 %v688
        %v1228 = vunpack.c.h.b16 %v688
        %v1229 = vunpack.c.l.b16 %v689
        %v1230 = vunpack.c.h.b16 %v689
        %v1231 = vunpack.c.l.b16 %v690
        %v1232 = vunpack.c.h.b16 %v690
        %v1233 = vunpack.c.l.b16 %v691
        %v1234 = vunpack.c.h.b16 %v691
        %v1235 = vunpack.c.l.b16 %v692
        %v1236 = vunpack.c.h.b16 %v692
        %v1237 = vunpack.c.l.b16 %v693
        %v1238 = vunpack.c.h.b16 %v693
        %v1239 = vunpack.c.l.b16 %v694
        %v1240 = vunpack.c.h.b16 %v694
        %v1241 = vunpack.c.l.b16 %v695
        %v1242 = vunpack.c.h.b16 %v695
        %v1243 = vunpack.c.l.b16 %v696
        %v1244 = vunpack.c.h.b16 %v696
        %v1245 = vunpack.c.l.b16 %v697
        %v1246 = vunpack.c.h.b16 %v697
        %v1247 = vunpack.c.l.b16 %v698
        %v1248 = vunpack.c.h.b16 %v698
        %v1249 = vunpack.c.l.b16 %v699
        %v1250 = vunpack.c.h.b16 %v699
        %v1251 = vunpack.c.l.b16 %v700
        %v1252 = vunpack.c.h.b16 %v700
        %v1253 = vunpack.c.l.b16 %v701
        %v1254 = vunpack.c.h.b16 %v701
        %v1255 = vunpack.c.l.b16 %v702
        %v1256 = vunpack.c.h.b16 %v702
        %v1257 = vunpack.c.l.b16 %v703
        %v1258 = vunpack.c.h.b16 %v703
        %v1259 = vunpack.c.l.b16 %v704
        %v1260 = vunpack.c.h.b16 %v704
        %v1261 = vunpack.c.l.b16 %v705
        %v1262 = vunpack.c.h.b16 %v705
        %v1263 = vunpack.c.l.b16 %v706
        %v1264 = vunpack.c.h.b16 %v706
        %v1265 = vunpack.c.l.b16 %v707
        %v1266 = vunpack.c.h.b16 %v707
        %v1267 = vunpack.c.l.b16 %v708
        %v1268 = vunpack.c.h.b16 %v708
        %v1269 = vunpack.c.l.b16 %v709
        %v1270 = vunpack.c.h.b16 %v709
        %v1271 = vunpack.c.l.b16 %v710
        %v1272 = vunpack.c.h.b16 %v710
        %v1273 = vunpack.c.l.b16 %v711
        %v1274 = vunpack.c.h.b16 %v711
        %v1275 = vunpack.c.l.b16 %v712
        %v1276 = vunpack.c.h.b16 %v712
        %v1277 = vunpack.c.l.b16 %v713
        %v1278 = vunpack.c.h.b16 %v713
        %v1279 = vunpack.c.l.b16 %v714
        %v1280 = vunpack.c.h.b16 %v714
        %v1281 = vunpack.c.l.b16 %v715
        %v1282 = vunpack.c.h.b16 %v715
        %v1283 = vunpack.c.l.b16 %v716
        %v1284 = vunpack.c.h.b16 %v716
        %v1285 = vunpack.c.l.b16 %v717
        %v1286 = vunpack.c.h.b16 %v717
        %v1287 = vunpack.c.l.b16 %v718
        %v1288 = vunpack.c.h.b16 %v718
        %v1289 = vunpack.c.l.b16 %v719
        %v1290 = vunpack.c.h.b16 %v719
        %v1291 = vunpack.c.l.b16 %v720
        %v1292 = vunpack.c.h.b16 %v720
        %v1293 = vunpack.c.l.b16 %v721
        %v1294 = vunpack.c.h.b16 %v721
        %v1295 = vunpack.c.l.b16 %v722
        %v1296 = vunpack.c.h.b16 %v722
        %v1297 = vunpack.c.l.b16 %v723
        %v1298 = vunpack.c.h.b16 %v723
        %v1299 = vunpack.c.l.b16 %v724
        %v1300 = vunpack.c.h.b16 %v724
        %v1301 = vunpack.c.l.b16 %v725
        %v1302 = vunpack.c.h.b16 %v725
        %v1303 = vunpack.c.l.b16 %v726
        %v1304 = vunpack.c.h.b16 %v726
        %v1305 = vunpack.c.l.b16 %v727
        %v1306 = vunpack.c.h.b16 %v727
        %v1307 = vunpack.c.l.b16 %v728
        %v1308 = vunpack.c.h.b16 %v728
        %v1309 = vunpack.c.l.b16 %v729
        %v1310 = vunpack.c.h.b16 %v729
        %v1311 = vunpack.c.l.b16 %v730
        %v1312 = vunpack.c.h.b16 %v730
        %v1313 = vunpack.c.l.b16 %v731
        %v1314 = vunpack.c.h.b16 %v731
        %v1315 = vunpack.c.l.b16 %v732
        %v1316 = vunpack.c.h.b16 %v732
        %v1317 = vunpack.c.l.b16 %v733
        %v1318 = vunpack.c.h.b16 %v733
        %v1319 = vunpack.c.l.b16 %v734
        %v1320 = vunpack.c.h.b16 %v734
        %v1321 = vunpack.c.l.b16 %v735
        %v1322 = vunpack.c.h.b16 %v735
        %v1323 = vunpack.c.l.b16 %v736
        %v1324 = vunpack.c.h.b16 %v736
        %v1325 = vunpack.c.l.b16 %v737
        %v1326 = vunpack.c.h.b16 %v737
        %v1327 = vunpack.c.l.b16 %v738
        %v1328 = vunpack.c.h.b16 %v738
        %v1329 = vunpack.c.l.b16 %v739
        %v1330 = vunpack.c.h.b16 %v739
        %v1331 = vunpack.c.l.b16 %v740
        %v1332 = vunpack.c.h.b16 %v740
        %v1333 = vunpack.c.l.b16 %v741
        %v1334 = vunpack.c.h.b16 %v741
        %v1335 = vunpack.c.l.b16 %v742
        %v1336 = vunpack.c.h.b16 %v742
        %v1337 = vunpack.c.l.b16 %v743
        %v1338 = vunpack.c.h.b16 %v743
        %v1339 = vunpack.c.l.b16 %v744
        %v1340 = vunpack.c.h.b16 %v744
        %v1341 = vunpack.c.l.b16 %v745
        %v1342 = vunpack.c.h.b16 %v745
        %v1343 = vunpack.c.l.b16 %v746
        %v1344 = vunpack.c.h.b16 %v746
        %v1345 = vunpack.c.l.b16 %v747
        %v1346 = vunpack.c.h.b16 %v747
        %v1347 = vunpack.c.l.b16 %v748
        %v1348 = vunpack.c.h.b16 %v748
        %v1349 = vunpack.c.l.b16 %v749
        %v1350 = vunpack.c.h.b16 %v749
        %v1351 = vunpack.c.l.b16 %v750
        %v1352 = vunpack.c.h.b16 %v750
        %v1353 = vunpack.c.l.b16 %v751
        %v1354 = vunpack.c.h.b16 %v751
        %v1355 = vunpack.c.l.b16 %v752
        %v1356 = vunpack.c.h.b16 %v752
        %v1357 = vunpack.c.l.b16 %v753
        %v1358 = vunpack.c.h.b16 %v753
        %v1359 = vunpack.c.l.b16 %v754
        %v1360 = vunpack.c.h.b16 %v754
        %v1361 = vunpack.c.l.b16 %v755
        %v1362 = vunpack.c.h.b16 %v755
        %v1363 = vunpack.c.l.b16 %v756
        %v1364 = vunpack.c.h.b16 %v756
        %v1365 = vunpack.c.l.b16 %v757
        %v1366 = vunpack.c.h.b16 %v757
        %v1367 = vunpack.c.l.b16 %v758
        %v1368 = vunpack.c.h.b16 %v758
        %v1369 = vunpack.c.l.b16 %v759
        %v1370 = vunpack.c.h.b16 %v759
        %v1371 = vunpack.c.l.b16 %v760
        %v1372 = vunpack.c.h.b16 %v760
        %v1373 = vunpack.c.l.b16 %v761
        %v1374 = vunpack.c.h.b16 %v761
        %v1375 = vunpack.c.l.b16 %v762
        %v1376 = vunpack.c.h.b16 %v762
        %v1377 = vunpack.c.l.b16 %v763
        %v1378 = vunpack.c.h.b16 %v763
        %v1379 = vunpack.c.l.b16 %v764
        %v1380 = vunpack.c.h.b16 %v764
        %v1381 = vunpack.c.l.b16 %v765
        %v1382 = vunpack.c.h.b16 %v765
        %v1383 = vunpack.c.l.b16 %v766
        %v1384 = vunpack.c.h.b16 %v766
        %v1385 = vunpack.c.l.b16 %v767
        %v1386 = vunpack.c.h.b16 %v767
        %v1387 = vunpack.c.l.b16 %v768
        %v1388 = vunpack.c.h.b16 %v768
        %v1389 = vunpack.c.l.b16 %v769
        %v1390 = vunpack.c.h.b16 %v769
        %v1391 = vunpack.c.l.b16 %v770
        %v1392 = vunpack.c.h.b16 %v770
        %v1393 = vunpack.c.l.b16 %v771
        %v1394 = vunpack.c.h.b16 %v771
        %v1395 = vunpack.c.l.b16 %v772
        %v1396 = vunpack.c.h.b16 %v772
        %v1397 = vunpack.c.l.b16 %v773
        %v1398 = vunpack.c.h.b16 %v773
        %v1399 = vunpack.c.l.b16 %v774
        %v1400 = vunpack.c.h.b16 %v774
        %v1401 = vunpack.c.l.b16 %v775
        %v1402 = vunpack.c.h.b16 %v775
        %v1403 = vunpack.c.l.b16 %v776
        %v1404 = vunpack.c.h.b16 %v776
        %v1405 = vunpack.c.l.b16 %v777
        %v1406 = vunpack.c.h.b16 %v777
        %v1407 = vunpack.c.l.b16 %v778
        %v1408 = vunpack.c.h.b16 %v778
        %v1409 = vunpack.c.l.b16 %v779
        %v1410 = vunpack.c.h.b16 %v779
        %v1411 = vunpack.c.l.b16 %v780
        %v1412 = vunpack.c.h.b16 %v780
        %v1413 = vunpack.c.l.b16 %v781
        %v1414 = vunpack.c.h.b16 %v781
        %v1415 = vunpack.c.l.b16 %v782
        %v1416 = vunpack.c.h.b16 %v782
        %v1417 = vunpack.c.l.b16 %v783
        %v1418 = vunpack.c.h.b16 %v783
        %v1419 = vunpack.c.l.b16 %v784
        %v1420 = vunpack.c.h.b16 %v784
        %v1421 = vunpack.c.l.b16 %v785
        %v1422 = vunpack.c.h.b16 %v785
        %v1423 = vunpack.c.l.b16 %v786
        %v1424 = vunpack.c.h.b16 %v786
        %v1425 = vunpack.c.l.b16 %v787
        %v1426 = vunpack.c.h.b16 %v787
        %v1427 = vunpack.c.l.b16 %v788
        %v1428 = vunpack.c.h.b16 %v788
        %v1429 = vunpack.c.l.b16 %v789
        %v1430 = vunpack.c.h.b16 %v789
        %v1431 = vunpack.c.l.b16 %v790
        %v1432 = vunpack.c.h.b16 %v790
        %v1433 = vunpack.c.l.b16 %v791
        %v1434 = vunpack.c.h.b16 %v791
        %v1435 = vunpack.c.l.b16 %v792
        %v1436 = vunpack.c.h.b16 %v792
        %v1437 = vunpack.c.l.b16 %v793
        %v1438 = vunpack.c.h.b16 %v793
        %v1439 = vunpack.c.l.b16 %v794
        %v1440 = vunpack.c.h.b16 %v794
        %v1441 = vunpack.c.l.b16 %v795
        %v1442 = vunpack.c.h.b16 %v795
        %v1443 = vunpack.c.l.b16 %v796
        %v1444 = vunpack.c.h.b16 %v796
        %v1445 = vunpack.c.l.b16 %v797
        %v1446 = vunpack.c.h.b16 %v797
        %v1447 = vunpack.c.l.b16 %v798
        %v1448 = vunpack.c.h.b16 %v798
        %v1449 = vunpack.c.l.b16 %v799
        %v1450 = vunpack.c.h.b16 %v799
        %v1451 = vunpack.c.l.b16 %v800
        %v1452 = vunpack.c.h.b16 %v800
        %v1453 = vunpack.c.l.b16 %v801
        %v1454 = vunpack.c.h.b16 %v801
        %v1455 = vunpack.c.l.b16 %v802
        %v1456 = vunpack.c.h.b16 %v802
        %v1457 = vunpack.c.l.b16 %v803
        %v1458 = vunpack.c.h.b16 %v803
        %v1459 = vunpack.c.l.b16 %v804
        %v1460 = vunpack.c.h.b16 %v804
        %v1461 = vunpack.c.l.b16 %v805
        %v1462 = vunpack.c.h.b16 %v805
        %v1463 = vunpack.c.l.b16 %v806
        %v1464 = vunpack.c.h.b16 %v806
        %v1465 = vunpack.c.l.b16 %v807
        %v1466 = vunpack.c.h.b16 %v807
        %v1467 = vunpack.c.l.b16 %v808
        %v1468 = vunpack.c.h.b16 %v808
        %v1469 = vunpack.c.l.b16 %v809
        %v1470 = vunpack.c.h.b16 %v809
        %v1471 = vunpack.c.l.b16 %v810
        %v1472 = vunpack.c.h.b16 %v810
        %v1473 = vunpack.c.l.b16 %v811
        %v1474 = vunpack.c.h.b16 %v811
        %v1475 = vunpack.c.l.b16 %v812
        %v1476 = vunpack.c.h.b16 %v812
        %v1477 = vunpack.c.l.b16 %v813
        %v1478 = vunpack.c.h.b16 %v813
        %v1479 = vunpack.c.l.b16 %v814
        %v1480 = vunpack.c.h.b16 %v814
        %v1481 = vunpack.c.l.b16 %v815
        %v1482 = vunpack.c.h.b16 %v815
        %v1483 = vunpack.c.l.b16 %v816
        %v1484 = vunpack.c.h.b16 %v816
        %v1485 = vunpack.c.l.b16 %v817
        %v1486 = vunpack.c.h.b16 %v817
        %v1487 = vunpack.c.l.b16 %v818
        %v1488 = vunpack.c.h.b16 %v818
        %v1489 = vunpack.c.l.b16 %v819
        %v1490 = vunpack.c.h.b16 %v819
        %v1491 = vunpack.c.l.b16 %v820
        %v1492 = vunpack.c.h.b16 %v820
        %v1493 = vunpack.c.l.b16 %v821
        %v1494 = vunpack.c.h.b16 %v821
        %v1495 = vunpack.c.l.b16 %v822
        %v1496 = vunpack.c.h.b16 %v822
        %v1497 = vunpack.c.l.b16 %v823
        %v1498 = vunpack.c.h.b16 %v823
        %v1499 = vunpack.c.l.b16 %v824
        %v1500 = vunpack.c.h.b16 %v824
        %v1501 = vunpack.c.l.b16 %v825
        %v1502 = vunpack.c.h.b16 %v825
        %v1503 = vunpack.c.l.b16 %v826
        %v1504 = vunpack.c.h.b16 %v826
        %v1505 = vunpack.c.l.b16 %v827
        %v1506 = vunpack.c.h.b16 %v827
        %v1507 = vunpack.c.l.b16 %v828
        %v1508 = vunpack.c.h.b16 %v828
        %v1509 = vunpack.c.l.b16 %v829
        %v1510 = vunpack.c.h.b16 %v829
        %v1511 = vunpack.c.l.b16 %v830
        %v1512 = vunpack.c.h.b16 %v830
        %v1513 = vunpack.c.l.b16 %v831
        %v1514 = vunpack.c.h.b16 %v831
        %v1515 = vunpack.c.l.b16 %v832
        %v1516 = vunpack.c.h.b16 %v832
        %v1517 = vunpack.c.l.b16 %v833
        %v1518 = vunpack.c.h.b16 %v833
        %v1519 = vunpack.c.l.b16 %v834
        %v1520 = vunpack.c.h.b16 %v834
        %v1521 = vunpack.c.l.b16 %v835
        %v1522 = vunpack.c.h.b16 %v835
        %v1523 = vunpack.c.l.b16 %v836
        %v1524 = vunpack.c.h.b16 %v836
        %v1525 = vunpack.c.l.b16 %v837
        %v1526 = vunpack.c.h.b16 %v837
        %v1527 = vunpack.c.l.b16 %v838
        %v1528 = vunpack.c.h.b16 %v838
        %v1529 = vunpack.c.l.b16 %v839
        %v1530 = vunpack.c.h.b16 %v839
        %v1531 = vunpack.c.l.b16 %v840
        %v1532 = vunpack.c.h.b16 %v840
        %v1533 = vunpack.c.l.b16 %v841
        %v1534 = vunpack.c.h.b16 %v841
        %v1535 = vunpack.c.l.b16 %v842
        %v1536 = vunpack.c.h.b16 %v842
        %v1537 = vunpack.c.l.b16 %v843
        %v1538 = vunpack.c.h.b16 %v843
        %v1539 = vunpack.c.l.b16 %v844
        %v1540 = vunpack.c.h.b16 %v844
        %v1541 = vunpack.c.l.b16 %v845
        %v1542 = vunpack.c.h.b16 %v845
        %v1543 = vunpack.c.l.b16 %v846
        %v1544 = vunpack.c.h.b16 %v846
        %v1545 = vunpack.c.l.b16 %v847
        %v1546 = vunpack.c.h.b16 %v847
        %v1547 = vunpack.c.l.b16 %v848
        %v1548 = vunpack.c.h.b16 %v848
        %v1549 = vunpack.c.l.b16 %v849
        %v1550 = vunpack.c.h.b16 %v849
        %v1551 = vunpack.c.l.b16 %v850
        %v1552 = vunpack.c.h.b16 %v850
        %v1553 = vunpack.c.l.b16 %v851
        %v1554 = vunpack.c.h.b16 %v851
        %v1555 = vunpack.c.l.b16 %v852
        %v1556 = vunpack.c.h.b16 %v852
        %v1557 = vunpack.c.l.b16 %v853
        %v1558 = vunpack.c.h.b16 %v853
        %v1559 = vunpack.c.l.b16 %v854
        %v1560 = vunpack.c.h.b16 %v854
        %v1561 = vunpack.c.l.b16 %v855
        %v1562 = vunpack.c.h.b16 %v855
        %v1563 = vunpack.c.l.b16 %v856
        %v1564 = vunpack.c.h.b16 %v856
        %v1565 = vunpack.c.l.b16 %v857
        %v1566 = vunpack.c.h.b16 %v857
        %v1567 = vunpack.c.l.b16 %v858
        %v1568 = vunpack.c.h.b16 %v858
        %v1569 = vunpack.c.l.b16 %v859
        %v1570 = vunpack.c.h.b16 %v859
        %v1571 = vunpack.c.l.b16 %v860
        %v1572 = vunpack.c.h.b16 %v860
        %v1573 = vunpack.c.l.b16 %v861
        %v1574 = vunpack.c.h.b16 %v861
        %v1575 = vunpack.c.l.b16 %v862
        %v1576 = vunpack.c.h.b16 %v862
        %v1577 = vunpack.c.l.b16 %v863
        %v1578 = vunpack.c.h.b16 %v863
        %v1579 = vunpack.c.l.b16 %v864
        %v1580 = vunpack.c.h.b16 %v864
        %v1581 = vunpack.c.l.b16 %v865
        %v1582 = vunpack.c.h.b16 %v865
        %v1583 = vunpack.c.l.b16 %v866
        %v1584 = vunpack.c.h.b16 %v866
        %v1585 = vunpack.c.l.b16 %v867
        %v1586 = vunpack.c.h.b16 %v867
        %v1587 = vunpack.c.l.b16 %v868
        %v1588 = vunpack.c.h.b16 %v868
        %v1589 = vunpack.c.l.b16 %v869
        %v1590 = vunpack.c.h.b16 %v869
        %v1591 = vunpack.c.l.b16 %v870
        %v1592 = vunpack.c.h.b16 %v870
        %v1593 = vunpack.c.l.b16 %v871
        %v1594 = vunpack.c.h.b16 %v871
        %v1595 = vunpack.c.l.b16 %v872
        %v1596 = vunpack.c.h.b16 %v872
        %v1597 = vunpack.c.l.b16 %v873
        %v1598 = vunpack.c.h.b16 %v873
        %v1599 = vunpack.c.l.b16 %v874
        %v1600 = vunpack.c.h.b16 %v874
        %v1601 = vunpack.c.l.b16 %v875
        %v1602 = vunpack.c.h.b16 %v875
        %v1603 = vunpack.c.l.b16 %v876
        %v1604 = vunpack.c.h.b16 %v876
        %v1605 = vunpack.c.l.b16 %v877
        %v1606 = vunpack.c.h.b16 %v877
        %v1607 = vunpack.c.l.b16 %v878
        %v1608 = vunpack.c.h.b16 %v878
        %v1609 = vunpack.c.l.b16 %v879
        %v1610 = vunpack.c.h.b16 %v879
        %v1611 = vunpack.c.l.b16 %v880
        %v1612 = vunpack.c.h.b16 %v880
        %v1613 = vunpack.c.l.b16 %v881
        %v1614 = vunpack.c.h.b16 %v881
        %v1615 = vunpack.c.l.b16 %v882
        %v1616 = vunpack.c.h.b16 %v882
        %v1617 = vunpack.c.l.b16 %v883
        %v1618 = vunpack.c.h.b16 %v883
        %v1619 = vunpack.c.l.b16 %v884
        %v1620 = vunpack.c.h.b16 %v884
        %v1621 = vunpack.c.l.b16 %v885
        %v1622 = vunpack.c.h.b16 %v885
        %v1623 = vunpack.c.l.b16 %v886
        %v1624 = vunpack.c.h.b16 %v886
        %v1625 = vunpack.c.l.b16 %v887
        %v1626 = vunpack.c.h.b16 %v887
        %v1627 = vunpack.c.l.b16 %v888
        %v1628 = vunpack.c.h.b16 %v888
        %v1629 = vunpack.c.l.b16 %v889
        %v1630 = vunpack.c.h.b16 %v889
        %v1631 = vunpack.c.l.b16 %v890
        %v1632 = vunpack.c.h.b16 %v890
        %v1633 = vunpack.c.l.b16 %v891
        %v1634 = vunpack.c.h.b16 %v891
        %v1635 = vunpack.c.l.b16 %v892
        %v1636 = vunpack.c.h.b16 %v892
        %v1637 = vunpack.c.l.b16 %v893
        %v1638 = vunpack.c.h.b16 %v893
        %v1639 = vunpack.c.l.b16 %v894
        %v1640 = vunpack.c.h.b16 %v894
        %v1641 = vunpack.c.l.b16 %v895
        %v1642 = vunpack.c.h.b16 %v895
        %v1643 = vunpack.c.l.b16 %v896
        %v1644 = vunpack.c.h.b16 %v896
        %v1645 = vunpack.c.l.b16 %v897
        %v1646 = vunpack.c.h.b16 %v897
        %v1647 = vunpack.c.l.b16 %v898
        %v1648 = vunpack.c.h.b16 %v898
        %v1649 = vunpack.c.l.b16 %v899
        %v1650 = vunpack.c.h.b16 %v899
        %v1651 = vunpack.c.l.b16 %v900
        %v1652 = vunpack.c.h.b16 %v900
        %v1653 = vunpack.c.l.b16 %v901
        %v1654 = vunpack.c.h.b16 %v901
        %v1655 = vunpack.c.l.b16 %v902
        %v1656 = vunpack.c.h.b16 %v902
        %v1657 = vunpack.c.l.b16 %v903
        %v1658 = vunpack.c.h.b16 %v903
        %v1659 = vunpack.c.l.b16 %v904
        %v1660 = vunpack.c.h.b16 %v904
        %v1661 = vunpack.c.l.b16 %v905
        %v1662 = vunpack.c.h.b16 %v905
        %v1663 = vunpack.c.l.b16 %v906
        %v1664 = vunpack.c.h.b16 %v906
        %v1665 = vunpack.c.l.b16 %v907
        %v1666 = vunpack.c.h.b16 %v907
        %v1667 = vunpack.c.l.b16 %v908
        %v1668 = vunpack.c.h.b16 %v908
        %v1669 = vunpack.c.l.b16 %v909
        %v1670 = vunpack.c.h.b16 %v909
        %v1671 = vunpack.c.l.b16 %v910
        %v1672 = vunpack.c.h.b16 %v910
        %v1673 = vunpack.c.l.b16 %v911
        %v1674 = vunpack.c.h.b16 %v911
        %v1675 = vunpack.c.l.b16 %v912
        %v1676 = vunpack.c.h.b16 %v912
        %v1677 = vunpack.c.l.b16 %v913
        %v1678 = vunpack.c.h.b16 %v913
        %v1679 = vunpack.c.l.b16 %v914
        %v1680 = vunpack.c.h.b16 %v914
        %v1681 = vunpack.c.l.b16 %v915
        %v1682 = vunpack.c.h.b16 %v915
        %v1683 = vunpack.c.l.b16 %v916
        %v1684 = vunpack.c.h.b16 %v916
        %v1685 = vunpack.c.l.b16 %v917
        %v1686 = vunpack.c.h.b16 %v917
        %v1687 = vunpack.c.l.b16 %v918
        %v1688 = vunpack.c.h.b16 %v918
        %v1689 = vunpack.c.l.b16 %v919
        %v1690 = vunpack.c.h.b16 %v919
        %v1691 = vunpack.c.l.b16 %v920
        %v1692 = vunpack.c.h.b16 %v920
        %v1693 = vunpack.c.l.b16 %v921
        %v1694 = vunpack.c.h.b16 %v921
        %v1695 = vunpack.c.l.b16 %v922
        %v1696 = vunpack.c.h.b16 %v922
        %v1697 = vunpack.c.l.b16 %v923
        %v1698 = vunpack.c.h.b16 %v923
        %v1699 = vunpack.c.l.b16 %v924
        %v1700 = vunpack.c.h.b16 %v924
        %v1701 = vunpack.c.l.b16 %v925
        %v1702 = vunpack.c.h.b16 %v925
        %v1703 = vunpack.c.l.b16 %v926
        %v1704 = vunpack.c.h.b16 %v926
        %v1705 = vunpack.c.l.b16 %v927
        %v1706 = vunpack.c.h.b16 %v927
        %v1707 = vunpack.c.l.b16 %v928
        %v1708 = vunpack.c.h.b16 %v928
        %v1709 = vunpack.c.l.b16 %v929
        %v1710 = vunpack.c.h.b16 %v929
        %v1711 = vunpack.c.l.b16 %v930
        %v1712 = vunpack.c.h.b16 %v930
        %v1713 = vunpack.c.l.b16 %v931
        %v1714 = vunpack.c.h.b16 %v931
        %v1715 = vunpack.c.l.b16 %v932
        %v1716 = vunpack.c.h.b16 %v932
        %v1717 = vunpack.c.l.b16 %v933
        %v1718 = vunpack.c.h.b16 %v933
        %v1719 = vunpack.c.l.b16 %v934
        %v1720 = vunpack.c.h.b16 %v934
        %v1721 = vunpack.c.l.b16 %v935
        %v1722 = vunpack.c.h.b16 %v935
        %v1723 = vunpack.c.l.b16 %v936
        %v1724 = vunpack.c.h.b16 %v936
        %v1725 = vunpack.c.l.b16 %v937
        %v1726 = vunpack.c.h.b16 %v937
        %v1727 = vunpack.c.l.b16 %v938
        %v1728 = vunpack.c.h.b16 %v938
        %v1729 = vpack.c.b16 %v1221, %v1217
        %v1730 = vpack.c.b16 %v1222, %v1218
        %v1731 = vpack.c.b16 %v1223, %v1219
        %v1732 = vpack.c.b16 %v1224, %v1220
        %v1733 = vpack.c.b16 %v1229, %v1225
        %v1734 = vpack.c.b16 %v1230, %v1226
        %v1735 = vpack.c.b16 %v1231, %v1227
        %v1736 = vpack.c.b16 %v1232, %v1228
        %v1737 = vpack.c.b16 %v1237, %v1233
        %v1738 = vpack.c.b16 %v1238, %v1234
        %v1739 = vpack.c.b16 %v1239, %v1235
        %v1740 = vpack.c.b16 %v1240, %v1236
        %v1741 = vpack.c.b16 %v1245, %v1241
        %v1742 = vpack.c.b16 %v1246, %v1242
        %v1743 = vpack.c.b16 %v1247, %v1243
        %v1744 = vpack.c.b16 %v1248, %v1244
        %v1745 = vpack.c.b16 %v1253, %v1249
        %v1746 = vpack.c.b16 %v1254, %v1250
        %v1747 = vpack.c.b16 %v1255, %v1251
        %v1748 = vpack.c.b16 %v1256, %v1252
        %v1749 = vpack.c.b16 %v1261, %v1257
        %v1750 = vpack.c.b16 %v1262, %v1258
        %v1751 = vpack.c.b16 %v1263, %v1259
        %v1752 = vpack.c.b16 %v1264, %v1260
        %v1753 = vpack.c.b16 %v1269, %v1265
        %v1754 = vpack.c.b16 %v1270, %v1266
        %v1755 = vpack.c.b16 %v1271, %v1267
        %v1756 = vpack.c.b16 %v1272, %v1268
        %v1757 = vpack.c.b16 %v1277, %v1273
        %v1758 = vpack.c.b16 %v1278, %v1274
        %v1759 = vpack.c.b16 %v1279, %v1275
        %v1760 = vpack.c.b16 %v1280, %v1276
        %v1761 = vpack.c.b16 %v1285, %v1281
        %v1762 = vpack.c.b16 %v1286, %v1282
        %v1763 = vpack.c.b16 %v1287, %v1283
        %v1764 = vpack.c.b16 %v1288, %v1284
        %v1765 = vpack.c.b16 %v1293, %v1289
        %v1766 = vpack.c.b16 %v1294, %v1290
        %v1767 = vpack.c.b16 %v1295, %v1291
        %v1768 = vpack.c.b16 %v1296, %v1292
        %v1769 = vpack.c.b16 %v1301, %v1297
        %v1770 = vpack.c.b16 %v1302, %v1298
        %v1771 = vpack.c.b16 %v1303, %v1299
        %v1772 = vpack.c.b16 %v1304, %v1300
        %v1773 = vpack.c.b16 %v1309, %v1305
        %v1774 = vpack.c.b16 %v1310, %v1306
        %v1775 = vpack.c.b16 %v1311, %v1307
        %v1776 = vpack.c.b16 %v1312, %v1308
        %v1777 = vpack.c.b16 %v1317, %v1313
        %v1778 = vpack.c.b16 %v1318, %v1314
        %v1779 = vpack.c.b16 %v1319, %v1315
        %v1780 = vpack.c.b16 %v1320, %v1316
        %v1781 = vpack.c.b16 %v1325, %v1321
        %v1782 = vpack.c.b16 %v1326, %v1322
        %v1783 = vpack.c.b16 %v1327, %v1323
        %v1784 = vpack.c.b16 %v1328, %v1324
        %v1785 = vpack.c.b16 %v1333, %v1329
        %v1786 = vpack.c.b16 %v1334, %v1330
        %v1787 = vpack.c.b16 %v1335, %v1331
        %v1788 = vpack.c.b16 %v1336, %v1332
        %v1789 = vpack.c.b16 %v1341, %v1337
        %v1790 = vpack.c.b16 %v1342, %v1338
        %v1791 = vpack.c.b16 %v1343, %v1339
        %v1792 = vpack.c.b16 %v1344, %v1340
        %v1793 = vpack.c.b16 %v1349, %v1345
        %v1794 = vpack.c.b16 %v1350, %v1346
        %v1795 = vpack.c.b16 %v1351, %v1347
        %v1796 = vpack.c.b16 %v1352, %v1348
        %v1797 = vpack.c.b16 %v1357, %v1353
        %v1798 = vpack.c.b16 %v1358, %v1354
        %v1799 = vpack.c.b16 %v1359, %v1355
        %v1800 = vpack.c.b16 %v1360, %v1356
        %v1801 = vpack.c.b16 %v1365, %v1361
        %v1802 = vpack.c.b16 %v1366, %v1362
        %v1803 = vpack.c.b16 %v1367, %v1363
        %v1804 = vpack.c.b16 %v1368, %v1364
        %v1805 = vpack.c.b16 %v1373, %v1369
        %v1806 = vpack.c.b16 %v1374, %v1370
        %v1807 = vpack.c.b16 %v1375, %v1371
        %v1808 = vpack.c.b16 %v1376, %v1372
        %v1809 = vpack.c.b16 %v1381, %v1377
        %v1810 = vpack.c.b16 %v1382, %v1378
        %v1811 = vpack.c.b16 %v1383, %v1379
        %v1812 = vpack.c.b16 %v1384, %v1380
        %v1813 = vpack.c.b16 %v1389, %v1385
        %v1814 = vpack.c.b16 %v1390, %v1386
        %v1815 = vpack.c.b16 %v1391, %v1387
        %v1816 = vpack.c.b16 %v1392, %v1388
        %v1817 = vpack.c.b16 %v1397, %v1393
        %v1818 = vpack.c.b16 %v1398, %v1394
        %v1819 = vpack.c.b16 %v1399, %v1395
        %v1820 = vpack.c.b16 %v1400, %v1396
        %v1821 = vpack.c.b16 %v1405, %v1401
        %v1822 = vpack.c.b16 %v1406, %v1402
        %v1823 = vpack.c.b16 %v1407, %v1403
        %v1824 = vpack.c.b16 %v1408, %v1404
        %v1825 = vpack.c.b16 %v1413, %v1409
        %v1826 = vpack.c.b16 %v1414, %v1410
        %v1827 = vpack.c.b16 %v1415, %v1411
        %v1828 = vpack.c.b16 %v1416, %v1412
        %v1829 = vpack.c.b16 %v1421, %v1417
        %v1830 = vpack.c.b16 %v1422, %v1418
        %v1831 = vpack.c.b16 %v1423, %v1419
        %v1832 = vpack.c.b16 %v1424, %v1420
        %v1833 = vpack.c.b16 %v1429, %v1425
        %v1834 = vpack.c.b16 %v1430, %v1426
        %v1835 = vpack.c.b16 %v1431, %v1427
        %v1836 = vpack.c.b16 %v1432, %v1428
        %v1837 = vpack.c.b16 %v1437, %v1433
        %v1838 = vpack.c.b16 %v1438, %v1434
        %v1839 = vpack.c.b16 %v1439, %v1435
        %v1840 = vpack.c.b16 %v1440, %v1436
        %v1841 = vpack.c.b16 %v1445, %v1441
        %v1842 = vpack.c.b16 %v1446, %v1442
        %v1843 = vpack.c.b16 %v1447, %v1443
        %v1844 = vpack.c.b16 %v1448, %v1444
        %v1845 = vpack.c.b16 %v1453, %v1449
        %v1846 = vpack.c.b16 %v1454, %v1450
        %v1847 = vpack.c.b16 %v1455, %v1451
        %v1848 = vpack.c.b16 %v1456, %v1452
        %v1849 = vpack.c.b16 %v1461, %v1457
        %v1850 = vpack.c.b16 %v1462, %v1458
        %v1851 = vpack.c.b16 %v1463, %v1459
        %v1852 = vpack.c.b16 %v1464, %v1460
        %v1853 = vpack.c.b16 %v1469, %v1465
        %v1854 = vpack.c.b16 %v1470, %v1466
        %v1855 = vpack.c.b16 %v1471, %v1467
        %v1856 = vpack.c.b16 %v1472, %v1468
        %v1857 = vpack.c.b16 %v1477, %v1473
        %v1858 = vpack.c.b16 %v1478, %v1474
        %v1859 = vpack.c.b16 %v1479, %v1475
        %v1860 = vpack.c.b16 %v1480, %v1476
        %v1861 = vpack.c.b16 %v1485, %v1481
        %v1862 = vpack.c.b16 %v1486, %v1482
        %v1863 = vpack.c.b16 %v1487, %v1483
        %v1864 = vpack.c.b16 %v1488, %v1484
        %v1865 = vpack.c.b16 %v1493, %v1489
        %v1866 = vpack.c.b16 %v1494, %v1490
        %v1867 = vpack.c.b16 %v1495, %v1491
        %v1868 = vpack.c.b16 %v1496, %v1492
        %v1869 = vpack.c.b16 %v1501, %v1497
        %v1870 = vpack.c.b16 %v1502, %v1498
        %v1871 = vpack.c.b16 %v1503, %v1499
        %v1872 = vpack.c.b16 %v1504, %v1500
        %v1873 = vpack.c.b16 %v1509, %v1505
        %v1874 = vpack.c.b16 %v1510, %v1506
        %v1875 = vpack.c.b16 %v1511, %v1507
        %v1876 = vpack.c.b16 %v1512, %v1508
        %v1877 = vpack.c.b16 %v1517, %v1513
        %v1878 = vpack.c.b16 %v1518, %v1514
        %v1879 = vpack.c.b16 %v1519, %v1515
        %v1880 = vpack.c.b16 %v1520, %v1516
        %v1881 = vpack.c.b16 %v1525, %v1521
        %v1882 = vpack.c.b16 %v1526, %v1522
        %v1883 = vpack.c.b16 %v1527, %v1523
        %v1884 = vpack.c.b16 %v1528, %v1524
        %v1885 = vpack.c.b16 %v1533, %v1529
        %v1886 = vpack.c.b16 %v1534, %v1530
        %v1887 = vpack.c.b16 %v1535, %v1531
        %v1888 = vpack.c.b16 %v1536, %v1532
        %v1889 = vpack.c.b16 %v1541, %v1537
        %v1890 = vpack.c.b16 %v1542, %v1538
        %v1891 = vpack.c.b16 %v1543, %v1539
        %v1892 = vpack.c.b16 %v1544, %v1540
        %v1893 = vpack.c.b16 %v1549, %v1545
        %v1894 = vpack.c.b16 %v1550, %v1546
        %v1895 = vpack.c.b16 %v1551, %v1547
        %v1896 = vpack.c.b16 %v1552, %v1548
        %v1897 = vpack.c.b16 %v1557, %v1553
        %v1898 = vpack.c.b16 %v1558, %v1554
        %v1899 = vpack.c.b16 %v1559, %v1555
        %v1900 = vpack.c.b16 %v1560, %v1556
        %v1901 = vpack.c.b16 %v1565, %v1561
        %v1902 = vpack.c.b16 %v1566, %v1562
        %v1903 = vpack.c.b16 %v1567, %v1563
        %v1904 = vpack.c.b16 %v1568, %v1564
        %v1905 = vpack.c.b16 %v1573, %v1569
        %v1906 = vpack.c.b16 %v1574, %v1570
        %v1907 = vpack.c.b16 %v1575, %v1571
        %v1908 = vpack.c.b16 %v1576, %v1572
        %v1909 = vpack.c.b16 %v1581, %v1577
        %v1910 = vpack.c.b16 %v1582, %v1578
        %v1911 = vpack.c.b16 %v1583, %v1579
        %v1912 = vpack.c.b16 %v1584, %v1580
        %v1913 = vpack.c.b16 %v1589, %v1585
        %v1914 = vpack.c.b16 %v1590, %v1586
        %v1915 = vpack.c.b16 %v1591, %v1587
        %v1916 = vpack.c.b16 %v1592, %v1588
        %v1917 = vpack.c.b16 %v1597, %v1593
        %v1918 = vpack.c.b16 %v1598, %v1594
        %v1919 = vpack.c.b16 %v1599, %v1595
        %v1920 = vpack.c.b16 %v1600, %v1596
        %v1921 = vpack.c.b16 %v1605, %v1601
        %v1922 = vpack.c.b16 %v1606, %v1602
        %v1923 = vpack.c.b16 %v1607, %v1603
        %v1924 = vpack.c.b16 %v1608, %v1604
        %v1925 = vpack.c.b16 %v1613, %v1609
        %v1926 = vpack.c.b16 %v1614, %v1610
        %v1927 = vpack.c.b16 %v1615, %v1611
        %v1928 = vpack.c.b16 %v1616, %v1612
        %v1929 = vpack.c.b16 %v1621, %v1617
        %v1930 = vpack.c.b16 %v1622, %v1618
        %v1931 = vpack.c.b16 %v1623, %v1619
        %v1932 = vpack.c.b16 %v1624, %v1620
        %v1933 = vpack.c.b16 %v1629, %v1625
        %v1934 = vpack.c.b16 %v1630, %v1626
        %v1935 = vpack.c.b16 %v1631, %v1627
        %v1936 = vpack.c.b16 %v1632, %v1628
        %v1937 = vpack.c.b16 %v1637, %v1633
        %v1938 = vpack.c.b16 %v1638, %v1634
        %v1939 = vpack.c.b16 %v1639, %v1635
        %v1940 = vpack.c.b16 %v1640, %v1636
        %v1941 = vpack.c.b16 %v1645, %v1641
        %v1942 = vpack.c.b16 %v1646, %v1642
        %v1943 = vpack.c.b16 %v1647, %v1643
        %v1944 = vpack.c.b16 %v1648, %v1644
        %v1945 = vpack.c.b16 %v1653, %v1649
        %v1946 = vpack.c.b16 %v1654, %v1650
        %v1947 = vpack.c.b16 %v1655, %v1651
        %v1948 = vpack.c.b16 %v1656, %v1652
        %v1949 = vpack.c.b16 %v1661, %v1657
        %v1950 = vpack.c.b16 %v1662, %v1658
        %v1951 = vpack.c.b16 %v1663, %v1659
        %v1952 = vpack.c.b16 %v1664, %v1660
        %v1953 = vpack.c.b16 %v1669, %v1665
        %v1954 = vpack.c.b16 %v1670, %v1666
        %v1955 = vpack.c.b16 %v1671, %v1667
        %v1956 = vpack.c.b16 %v1672, %v1668
        %v1957 = vpack.c.b16 %v1677, %v1673
        %v1958 = vpack.c.b16 %v1678, %v1674
        %v1959 = vpack.c.b16 %v1679, %v1675
        %v1960 = vpack.c.b16 %v1680, %v1676
        %v1961 = vpack.c.b16 %v1685, %v1681
        %v1962 = vpack.c.b16 %v1686, %v1682
        %v1963 = vpack.c.b16 %v1687, %v1683
        %v1964 = vpack.c.b16 %v1688, %v1684
        %v1965 = vpack.c.b16 %v1693, %v1689
        %v1966 = vpack.c.b16 %v1694, %v1690
        %v1967 = vpack.c.b16 %v1695, %v1691
        %v1968 = vpack.c.b16 %v1696, %v1692
        %v1969 = vpack.c.b16 %v1701, %v1697
        %v1970 = vpack.c.b16 %v1702, %v1698
        %v1971 = vpack.c.b16 %v1703, %v1699
        %v1972 = vpack.c.b16 %v1704, %v1700
        %v1973 = vpack.c.b16 %v1709, %v1705
        %v1974 = vpack.c.b16 %v1710, %v1706
        %v1975 = vpack.c.b16 %v1711, %v1707
        %v1976 = vpack.c.b16 %v1712, %v1708
        %v1977 = vpack.c.b16 %v1717, %v1713
        %v1978 = vpack.c.b16 %v1718, %v1714
        %v1979 = vpack.c.b16 %v1719, %v1715
        %v1980 = vpack.c.b16 %v1720, %v1716
        %v1981 = vpack.c.b16 %v1725, %v1721
        %v1982 = vpack.c.b16 %v1726, %v1722
        %v1983 = vpack.c.b16 %v1727, %v1723
        %v1984 = vpack.c.b16 %v1728, %v1724
        %2241 = vmatprep.subr.bf16.mxu0 %v1730
        %2242 = vmatpush1.bf16.msra.mxu0 %v1729
        %2243 = vmatprep.subr.bf16.mxu0 %v1734
        %2244 = vmatpush1.bf16.msra.mxu0 %v1733
        %2245 = vmatprep.subr.bf16.mxu0 %v1738
        %2246 = vmatpush1.bf16.msra.mxu0 %v1737
        %2247 = vmatprep.subr.bf16.mxu0 %v1742
        %2248 = vmatpush1.bf16.msra.mxu0 %v1741
        %2249 = vmatprep.subr.bf16.mxu0 %v1746
        %2250 = vmatpush1.bf16.msra.mxu0 %v1745
        %2251 = vmatprep.subr.bf16.mxu0 %v1750
        %2252 = vmatpush1.bf16.msra.mxu0 %v1749
        %2253 = vmatprep.subr.bf16.mxu0 %v1754
        %2254 = vmatpush1.bf16.msra.mxu0 %v1753
        %2255 = vmatprep.subr.bf16.mxu0 %v1758
        %2256 = vmatpush1.bf16.msra.mxu0 %v1757
        %2257 = vmatprep.subr.bf16.mxu0 %v1762
        %2258 = vmatpush1.bf16.msra.mxu0 %v1761
        %2259 = vmatprep.subr.bf16.mxu0 %v1766
        %2260 = vmatpush1.bf16.msra.mxu0 %v1765
        %2261 = vmatprep.subr.bf16.mxu0 %v1770
        %2262 = vmatpush1.bf16.msra.mxu0 %v1769
        %2263 = vmatprep.subr.bf16.mxu0 %v1774
        %2264 = vmatpush1.bf16.msra.mxu0 %v1773
        %2265 = vmatprep.subr.bf16.mxu0 %v1778
        %2266 = vmatpush1.bf16.msra.mxu0 %v1777
        %2267 = vmatprep.subr.bf16.mxu0 %v1782
        %2268 = vmatpush1.bf16.msra.mxu0 %v1781
        %2269 = vmatprep.subr.bf16.mxu0 %v1786
        %2270 = vmatpush1.bf16.msra.mxu0 %v1785
        %2271 = vmatprep.subr.bf16.mxu0 %v1790
        %2272 = vmatpush1.bf16.msra.mxu0 %v1789
        %2273 = vmatprep.mubr.bf16.mxu0 %v556
        %2274 = vmatmul.mubr.bf16.gmra.mrb[0].mxu0 %v555
        %v2275 = vpop.f32.mrb[0].mxu0
        %v2276 = vadd.f32 %v944, %v2275
        %v2277 = vpop.f32.mrb[0].mxu0
        %v2278 = vadd.f32 %v948, %v2277
        %v2279 = vpop.f32.mrb[0].mxu0
        %v2280 = vadd.f32 %v944, %v2279
        %v2281 = vpop.f32.mrb[0].mxu0
        %v2282 = vadd.f32 %v948, %v2281
        %2283 = vmatprep.mubr.bf16.mxu0 %v564
        %2284 = vmatmul.mubr.bf16.gmra.mrb[0].mxu0 %v563
        %v2285 = vpop.f32.mrb[0].mxu0
        %v2286 = vadd.f32 %v944, %v2285
        %v2287 = vpop.f32.mrb[0].mxu0
        %v2288 = vadd.f32 %v948, %v2287
        %v2289 = vpop.f32.mrb[0].mxu0
        %v2290 = vadd.f32 %v944, %v2289
        %v2291 = vpop.f32.mrb[0].mxu0
        %v2292 = vadd.f32 %v948, %v2291
        %2293 = vmatprep.mubr.bf16.mxu0 %v572
        %2294 = vmatmul.mubr.bf16.gmra.mrb[0].mxu0 %v571
        %v2295 = vpop.f32.mrb[0].mxu0
        %v2296 = vadd.f32 %v944, %v2295
        %v2297 = vpop.f32.mrb[0].mxu0
        %v2298 = vadd.f32 %v948, %v2297
        %v2299 = vpop.f32.mrb[0].mxu0
        %v2300 = vadd.f32 %v944, %v2299
        %v2301 = vpop.f32.mrb[0].mxu0
        %v2302 = vadd.f32 %v948, %v2301
        %2303 = vmatprep.mubr.bf16.mxu0 %v580
        %2304 = vmatmul.mubr.bf16.gmra.mrb[0].mxu0 %v579
        %v2305 = vpop.f32.mrb[0].mxu0
        %v2306 = vadd.f32 %v944, %v2305
        %v2307 = vpop.f32.mrb[0].mxu0
        %v2308 = vadd.f32 %v948, %v2307
        %v2309 = vpop.f32.mrb[0].mxu0
        %v2310 = vadd.f32 %v944, %v2309
        %v2311 = vpop.f32.mrb[0].mxu0
        %v2312 = vadd.f32 %v948, %v2311
        %2313 = vmatprep.mubr.bf16.mxu0 %v588
        %2314 = vmatmul.mubr.bf16.gmra.mrb[0].mxu0 %v587
        %v2315 = vpop.f32.mrb[0].mxu0
        %v2316 = vadd.f32 %v944, %v2315
        %v2317 = vpop.f32.mrb[0].mxu0
        %v2318 = vadd.f32 %v948, %v2317
        %v2319 = vpop.f32.mrb[0].mxu0
        %v2320 = vadd.f32 %v944, %v2319
        %v2321 = vpop.f32.mrb[0].mxu0
        %v2322 = vadd.f32 %v948, %v2321
        %2323 = vmatprep.mubr.bf16.mxu0 %v596
        %2324 = vmatmul.mubr.bf16.gmra.mrb[0].mxu0 %v595
        %v2325 = vpop.f32.mrb[0].mxu0
        %v2326 = vadd.f32 %v944, %v2325
        %v2327 = vpop.f32.mrb[0].mxu0
        %v2328 = vadd.f32 %v948, %v2327
        %v2329 = vpop.f32.mrb[0].mxu0
        %v2330 = vadd.f32 %v944, %v2329
        %v2331 = vpop.f32.mrb[0].mxu0
        %v2332 = vadd.f32 %v948, %v2331
        %2333 = vmatprep.mubr.bf16.mxu0 %v604
        %2334 = vmatmul.mubr.bf16.gmra.mrb[0].mxu0 %v603
        %v2335 = vpop.f32.mrb[0].mxu0
        %v2336 = vadd.f32 %v944, %v2335
        %v2337 = vpop.f32.mrb[0].mxu0
        %v2338 = vadd.f32 %v948, %v2337
        %v2339 = vpop.f32.mrb[0].mxu0
        %v2340 = vadd.f32 %v944, %v2339
        %v2341 = vpop.f32.mrb[0].mxu0
        %v2342 = vadd.f32 %v948, %v2341
        %2343 = vmatprep.mubr.bf16.mxu0 %v612
        %2344 = vmatmul.mubr.bf16.gmra.mrb[0].mxu0 %v611
        %v2345 = vpop.f32.mrb[0].mxu0
        %v2346 = vadd.f32 %v944, %v2345
        %v2347 = vpop.f32.mrb[0].mxu0
        %v2348 = vadd.f32 %v948, %v2347
        %v2349 = vpop.f32.mrb[0].mxu0
        %v2350 = vadd.f32 %v944, %v2349
        %v2351 = vpop.f32.mrb[0].mxu0
        %v2352 = vadd.f32 %v948, %v2351
        %2353 = vmatprep.mubr.bf16.mxu0 %v620
        %2354 = vmatmul.mubr.bf16.gmra.mrb[0].mxu0 %v619
        %v2355 = vpop.f32.mrb[0].mxu0
        %v2356 = vadd.f32 %v944, %v2355
        %v2357 = vpop.f32.mrb[0].mxu0
        %v2358 = vadd.f32 %v948, %v2357
        %v2359 = vpop.f32.mrb[0].mxu0
        %v2360 = vadd.f32 %v944, %v2359
        %v2361 = vpop.f32.mrb[0].mxu0
        %v2362 = vadd.f32 %v948, %v2361
        %2363 = vmatprep.mubr.bf16.mxu0 %v628
        %2364 = vmatmul.mubr.bf16.gmra.mrb[0].mxu0 %v627
        %v2365 = vpop.f32.mrb[0].mxu0
        %v2366 = vadd.f32 %v944, %v2365
        %v2367 = vpop.f32.mrb[0].mxu0
        %v2368 = vadd.f32 %v948, %v2367
        %v2369 = vpop.f32.mrb[0].mxu0
        %v2370 = vadd.f32 %v944, %v2369
        %v2371 = vpop.f32.mrb[0].mxu0
        %v2372 = vadd.f32 %v948, %v2371
        %2373 = vmatprep.mubr.bf16.mxu0 %v636
        %2374 = vmatmul.mubr.bf16.gmra.mrb[0].mxu0 %v635
        %v2375 = vpop.f32.mrb[0].mxu0
        %v2376 = vadd.f32 %v944, %v2375
        %v2377 = vpop.f32.mrb[0].mxu0
        %v2378 = vadd.f32 %v948, %v2377
        %v2379 = vpop.f32.mrb[0].mxu0
        %v2380 = vadd.f32 %v944, %v2379
        %v2381 = vpop.f32.mrb[0].mxu0
        %v2382 = vadd.f32 %v948, %v2381
        %2383 = vmatprep.mubr.bf16.mxu0 %v644
        %2384 = vmatmul.mubr.bf16.gmra.mrb[0].mxu0 %v643
        %v2385 = vpop.f32.mrb[0].mxu0
        %v2386 = vadd.f32 %v944, %v2385
        %v2387 = vpop.f32.mrb[0].mxu0
        %v2388 = vadd.f32 %v948, %v2387
        %v2389 = vpop.f32.mrb[0].mxu0
        %v2390 = vadd.f32 %v944, %v2389
        %v2391 = vpop.f32.mrb[0].mxu0
        %v2392 = vadd.f32 %v948, %v2391
        %2393 = vmatprep.mubr.bf16.mxu0 %v652
        %2394 = vmatmul.mubr.bf16.gmra.mrb[0].mxu0 %v651
        %v2395 = vpop.f32.mrb[0].mxu0
        %v2396 = vadd.f32 %v944, %v2395
        %v2397 = vpop.f32.mrb[0].mxu0
        %v2398 = vadd.f32 %v948, %v2397
        %v2399 = vpop.f32.mrb[0].mxu0
        %v2400 = vadd.f32 %v944, %v2399
        %v2401 = vpop.f32.mrb[0].mxu0
        %v2402 = vadd.f32 %v948, %v2401
        %2403 = vmatprep.mubr.bf16.mxu0 %v660
        %2404 = vmatmul.mubr.bf16.gmra.mrb[0].mxu0 %v659
        %v2405 = vpop.f32.mrb[0].mxu0
        %v2406 = vadd.f32 %v944, %v2405
        %v2407 = vpop.f32.mrb[0].mxu0
        %v2408 = vadd.f32 %v948, %v2407
        %v2409 = vpop.f32.mrb[0].mxu0
        %v2410 = vadd.f32 %v944, %v2409
        %v2411 = vpop.f32.mrb[0].mxu0
        %v2412 = vadd.f32 %v948, %v2411
        %2413 = vmatprep.mubr.bf16.mxu0 %v668
        %2414 = vmatmul.mubr.bf16.gmra.mrb[0].mxu0 %v667
        %v2415 = vpop.f32.mrb[0].mxu0
        %v2416 = vadd.f32 %v944, %v2415
        %v2417 = vpop.f32.mrb[0].mxu0
        %v2418 = vadd.f32 %v948, %v2417
        %v2419 = vpop.f32.mrb[0].mxu0
        %v2420 = vadd.f32 %v944, %v2419
        %v2421 = vpop.f32.mrb[0].mxu0
        %v2422 = vadd.f32 %v948, %v2421
        %2423 = vmatprep.mubr.bf16.mxu0 %v676
        %2424 = vmatmul.mubr.bf16.gmra.mrb[0].mxu0 %v675
        %v2425 = vpop.f32.mrb[0].mxu0
        %v2426 = vadd.f32 %v944, %v2425
        %v2427 = vpop.f32.mrb[0].mxu0
        %v2428 = vadd.f32 %v948, %v2427
        %v2429 = vpop.f32.mrb[0].mxu0
        %v2430 = vadd.f32 %v944, %v2429
        %v2431 = vpop.f32.mrb[0].mxu0
        %v2432 = vadd.f32 %v948, %v2431
        %2433 = vdwg.mxu0
        %2434 = vmatprep.subr.bf16.mxu0 %v1794
        %2435 = vmatpush1.bf16.msra.mxu0 %v1793
        %2436 = vmatprep.subr.bf16.mxu0 %v1798
        %2437 = vmatpush1.bf16.msra.mxu0 %v1797
        %2438 = vmatprep.subr.bf16.mxu0 %v1802
        %2439 = vmatpush1.bf16.msra.mxu0 %v1801
        %2440 = vmatprep.subr.bf16.mxu0 %v1806
        %2441 = vmatpush1.bf16.msra.mxu0 %v1805
        %2442 = vmatprep.subr.bf16.mxu0 %v1810
        %2443 = vmatpush1.bf16.msra.mxu0 %v1809
        %2444 = vmatprep.subr.bf16.mxu0 %v1814
        %2445 = vmatpush1.bf16.msra.mxu0 %v1813
        %2446 = vmatprep.subr.bf16.mxu0 %v1818
        %2447 = vmatpush1.bf16.msra.mxu0 %v1817
        %2448 = vmatprep.subr.bf16.mxu0 %v1822
        %2449 = vmatpush1.bf16.msra.mxu0 %v1821
        %2450 = vmatprep.subr.bf16.mxu0 %v1826
        %2451 = vmatpush1.bf16.msra.mxu0 %v1825
        %2452 = vmatprep.subr.bf16.mxu0 %v1830
        %2453 = vmatpush1.bf16.msra.mxu0 %v1829
        %2454 = vmatprep.subr.bf16.mxu0 %v1834
        %2455 = vmatpush1.bf16.msra.mxu0 %v1833
        %2456 = vmatprep.subr.bf16.mxu0 %v1838
        %2457 = vmatpush1.bf16.msra.mxu0 %v1837
        %2458 = vmatprep.subr.bf16.mxu0 %v1842
        %2459 = vmatpush1.bf16.msra.mxu0 %v1841
        %2460 = vmatprep.subr.bf16.mxu0 %v1846
        %2461 = vmatpush1.bf16.msra.mxu0 %v1845
        %2462 = vmatprep.subr.bf16.mxu0 %v1850
        %2463 = vmatpush1.bf16.msra.mxu0 %v1849
        %2464 = vmatprep.subr.bf16.mxu0 %v1854
        %2465 = vmatpush1.bf16.msra.mxu0 %v1853
        %2466 = vmatprep.mubr.bf16.mxu0 %v558
        %2467 = vmatmul.mubr.bf16.gmra.mrb[0].mxu0 %v557
        %v2468 = vpop.f32.mrb[0].mxu0
        %v2469 = vadd.f32 %v2276, %v2468
        %v2470 = vpop.f32.mrb[0].mxu0
        %v2471 = vadd.f32 %v2278, %v2470
        %v2472 = vpop.f32.mrb[0].mxu0
        %v2473 = vadd.f32 %v2280, %v2472
        %v2474 = vpop.f32.mrb[0].mxu0
        %v2475 = vadd.f32 %v2282, %v2474
        %2476 = vmatprep.mubr.bf16.mxu0 %v566
        %2477 = vmatmul.mubr.bf16.gmra.mrb[0].mxu0 %v565
        %v2478 = vpop.f32.mrb[0].mxu0
        %v2479 = vadd.f32 %v2286, %v2478
        %v2480 = vpop.f32.mrb[0].mxu0
        %v2481 = vadd.f32 %v2288, %v2480
        %v2482 = vpop.f32.mrb[0].mxu0
        %v2483 = vadd.f32 %v2290, %v2482
        %v2484 = vpop.f32.mrb[0].mxu0
        %v2485 = vadd.f32 %v2292, %v2484
        %2486 = vmatprep.mubr.bf16.mxu0 %v574
        %2487 = vmatmul.mubr.bf16.gmra.mrb[0].mxu0 %v573
        %v2488 = vpop.f32.mrb[0].mxu0
        %v2489 = vadd.f32 %v2296, %v2488
        %v2490 = vpop.f32.mrb[0].mxu0
        %v2491 = vadd.f32 %v2298, %v2490
        %v2492 = vpop.f32.mrb[0].mxu0
        %v2493 = vadd.f32 %v2300, %v2492
        %v2494 = vpop.f32.mrb[0].mxu0
        %v2495 = vadd.f32 %v2302, %v2494
        %2496 = vmatprep.mubr.bf16.mxu0 %v582
        %2497 = vmatmul.mubr.bf16.gmra.mrb[0].mxu0 %v581
        %v2498 = vpop.f32.mrb[0].mxu0
        %v2499 = vadd.f32 %v2306, %v2498
        %v2500 = vpop.f32.mrb[0].mxu0
        %v2501 = vadd.f32 %v2308, %v2500
        %v2502 = vpop.f32.mrb[0].mxu0
        %v2503 = vadd.f32 %v2310, %v2502
        %v2504 = vpop.f32.mrb[0].mxu0
        %v2505 = vadd.f32 %v2312, %v2504
        %2506 = vmatprep.mubr.bf16.mxu0 %v590
        %2507 = vmatmul.mubr.bf16.gmra.mrb[0].mxu0 %v589
        %v2508 = vpop.f32.mrb[0].mxu0
        %v2509 = vadd.f32 %v2316, %v2508
        %v2510 = vpop.f32.mrb[0].mxu0
        %v2511 = vadd.f32 %v2318, %v2510
        %v2512 = vpop.f32.mrb[0].mxu0
        %v2513 = vadd.f32 %v2320, %v2512
        %v2514 = vpop.f32.mrb[0].mxu0
        %v2515 = vadd.f32 %v2322, %v2514
        %2516 = vmatprep.mubr.bf16.mxu0 %v598
        %2517 = vmatmul.mubr.bf16.gmra.mrb[0].mxu0 %v597
        %v2518 = vpop.f32.mrb[0].mxu0
        %v2519 = vadd.f32 %v2326, %v2518
        %v2520 = vpop.f32.mrb[0].mxu0
        %v2521 = vadd.f32 %v2328, %v2520
        %v2522 = vpop.f32.mrb[0].mxu0
        %v2523 = vadd.f32 %v2330, %v2522
        %v2524 = vpop.f32.mrb[0].mxu0
        %v2525 = vadd.f32 %v2332, %v2524
        %2526 = vmatprep.mubr.bf16.mxu0 %v606
        %2527 = vmatmul.mubr.bf16.gmra.mrb[0].mxu0 %v605
        %v2528 = vpop.f32.mrb[0].mxu0
        %v2529 = vadd.f32 %v2336, %v2528
        %v2530 = vpop.f32.mrb[0].mxu0
        %v2531 = vadd.f32 %v2338, %v2530
        %v2532 = vpop.f32.mrb[0].mxu0
        %v2533 = vadd.f32 %v2340, %v2532
        %v2534 = vpop.f32.mrb[0].mxu0
        %v2535 = vadd.f32 %v2342, %v2534
        %2536 = vmatprep.mubr.bf16.mxu0 %v614
        %2537 = vmatmul.mubr.bf16.gmra.mrb[0].mxu0 %v613
        %v2538 = vpop.f32.mrb[0].mxu0
        %v2539 = vadd.f32 %v2346, %v2538
        %v2540 = vpop.f32.mrb[0].mxu0
        %v2541 = vadd.f32 %v2348, %v2540
        %v2542 = vpop.f32.mrb[0].mxu0
        %v2543 = vadd.f32 %v2350, %v2542
        %v2544 = vpop.f32.mrb[0].mxu0
        %v2545 = vadd.f32 %v2352, %v2544
        %2546 = vmatprep.mubr.bf16.mxu0 %v622
        %2547 = vmatmul.mubr.bf16.gmra.mrb[0].mxu0 %v621
        %v2548 = vpop.f32.mrb[0].mxu0
        %v2549 = vadd.f32 %v2356, %v2548
        %v2550 = vpop.f32.mrb[0].mxu0
        %v2551 = vadd.f32 %v2358, %v2550
        %v2552 = vpop.f32.mrb[0].mxu0
        %v2553 = vadd.f32 %v2360, %v2552
        %v2554 = vpop.f32.mrb[0].mxu0
        %v2555 = vadd.f32 %v2362, %v2554
        %2556 = vmatprep.mubr.bf16.mxu0 %v630
        %2557 = vmatmul.mubr.bf16.gmra.mrb[0].mxu0 %v629
        %v2558 = vpop.f32.mrb[0].mxu0
        %v2559 = vadd.f32 %v2366, %v2558
        %v2560 = vpop.f32.mrb[0].mxu0
        %v2561 = vadd.f32 %v2368, %v2560
        %v2562 = vpop.f32.mrb[0].mxu0
        %v2563 = vadd.f32 %v2370, %v2562
        %v2564 = vpop.f32.mrb[0].mxu0
        %v2565 = vadd.f32 %v2372, %v2564
        %2566 = vmatprep.mubr.bf16.mxu0 %v638
        %2567 = vmatmul.mubr.bf16.gmra.mrb[0].mxu0 %v637
        %v2568 = vpop.f32.mrb[0].mxu0
        %v2569 = vadd.f32 %v2376, %v2568
        %v2570 = vpop.f32.mrb[0].mxu0
        %v2571 = vadd.f32 %v2378, %v2570
        %v2572 = vpop.f32.mrb[0].mxu0
        %v2573 = vadd.f32 %v2380, %v2572
        %v2574 = vpop.f32.mrb[0].mxu0
        %v2575 = vadd.f32 %v2382, %v2574
        %2576 = vmatprep.mubr.bf16.mxu0 %v646
        %2577 = vmatmul.mubr.bf16.gmra.mrb[0].mxu0 %v645
        %v2578 = vpop.f32.mrb[0].mxu0
        %v2579 = vadd.f32 %v2386, %v2578
        %v2580 = vpop.f32.mrb[0].mxu0
        %v2581 = vadd.f32 %v2388, %v2580
        %v2582 = vpop.f32.mrb[0].mxu0
        %v2583 = vadd.f32 %v2390, %v2582
        %v2584 = vpop.f32.mrb[0].mxu0
        %v2585 = vadd.f32 %v2392, %v2584
        %2586 = vmatprep.mubr.bf16.mxu0 %v654
        %2587 = vmatmul.mubr.bf16.gmra.mrb[0].mxu0 %v653
        %v2588 = vpop.f32.mrb[0].mxu0
        %v2589 = vadd.f32 %v2396, %v2588
        %v2590 = vpop.f32.mrb[0].mxu0
        %v2591 = vadd.f32 %v2398, %v2590
        %v2592 = vpop.f32.mrb[0].mxu0
        %v2593 = vadd.f32 %v2400, %v2592
        %v2594 = vpop.f32.mrb[0].mxu0
        %v2595 = vadd.f32 %v2402, %v2594
        %2596 = vmatprep.mubr.bf16.mxu0 %v662
        %2597 = vmatmul.mubr.bf16.gmra.mrb[0].mxu0 %v661
        %v2598 = vpop.f32.mrb[0].mxu0
        %v2599 = vadd.f32 %v2406, %v2598
        %v2600 = vpop.f32.mrb[0].mxu0
        %v2601 = vadd.f32 %v2408, %v2600
        %v2602 = vpop.f32.mrb[0].mxu0
        %v2603 = vadd.f32 %v2410, %v2602
        %v2604 = vpop.f32.mrb[0].mxu0
        %v2605 = vadd.f32 %v2412, %v2604
        %2606 = vmatprep.mubr.bf16.mxu0 %v670
        %2607 = vmatmul.mubr.bf16.gmra.mrb[0].mxu0 %v669
        %v2608 = vpop.f32.mrb[0].mxu0
        %v2609 = vadd.f32 %v2416, %v2608
        %v2610 = vpop.f32.mrb[0].mxu0
        %v2611 = vadd.f32 %v2418, %v2610
        %v2612 = vpop.f32.mrb[0].mxu0
        %v2613 = vadd.f32 %v2420, %v2612
        %v2614 = vpop.f32.mrb[0].mxu0
        %v2615 = vadd.f32 %v2422, %v2614
        %2616 = vmatprep.mubr.bf16.mxu0 %v678
        %2617 = vmatmul.mubr.bf16.gmra.mrb[0].mxu0 %v677
        %v2618 = vpop.f32.mrb[0].mxu0
        %v2619 = vadd.f32 %v2426, %v2618
        %v2620 = vpop.f32.mrb[0].mxu0
        %v2621 = vadd.f32 %v2428, %v2620
        %v2622 = vpop.f32.mrb[0].mxu0
        %v2623 = vadd.f32 %v2430, %v2622
        %v2624 = vpop.f32.mrb[0].mxu0
        %v2625 = vadd.f32 %v2432, %v2624
        %2626 = vdwg.mxu0
        %2627 = vmatprep.subr.bf16.mxu0 %v1858
        %2628 = vmatpush1.bf16.msra.mxu0 %v1857
        %2629 = vmatprep.subr.bf16.mxu0 %v1862
        %2630 = vmatpush1.bf16.msra.mxu0 %v1861
        %2631 = vmatprep.subr.bf16.mxu0 %v1866
        %2632 = vmatpush1.bf16.msra.mxu0 %v1865
        %2633 = vmatprep.subr.bf16.mxu0 %v1870
        %2634 = vmatpush1.bf16.msra.mxu0 %v1869
        %2635 = vmatprep.subr.bf16.mxu0 %v1874
        %2636 = vmatpush1.bf16.msra.mxu0 %v1873
        %2637 = vmatprep.subr.bf16.mxu0 %v1878
        %2638 = vmatpush1.bf16.msra.mxu0 %v1877
        %2639 = vmatprep.subr.bf16.mxu0 %v1882
        %2640 = vmatpush1.bf16.msra.mxu0 %v1881
        %2641 = vmatprep.subr.bf16.mxu0 %v1886
        %2642 = vmatpush1.bf16.msra.mxu0 %v1885
        %2643 = vmatprep.subr.bf16.mxu0 %v1890
        %2644 = vmatpush1.bf16.msra.mxu0 %v1889
        %2645 = vmatprep.subr.bf16.mxu0 %v1894
        %2646 = vmatpush1.bf16.msra.mxu0 %v1893
        %2647 = vmatprep.subr.bf16.mxu0 %v1898
        %2648 = vmatpush1.bf16.msra.mxu0 %v1897
        %2649 = vmatprep.subr.bf16.mxu0 %v1902
        %2650 = vmatpush1.bf16.msra.mxu0 %v1901
        %2651 = vmatprep.subr.bf16.mxu0 %v1906
        %2652 = vmatpush1.bf16.msra.mxu0 %v1905
        %2653 = vmatprep.subr.bf16.mxu0 %v1910
        %2654 = vmatpush1.bf16.msra.mxu0 %v1909
        %2655 = vmatprep.subr.bf16.mxu0 %v1914
        %2656 = vmatpush1.bf16.msra.mxu0 %v1913
        %2657 = vmatprep.subr.bf16.mxu0 %v1918
        %2658 = vmatpush1.bf16.msra.mxu0 %v1917
        %2659 = vmatprep.mubr.bf16.mxu0 %v560
        %2660 = vmatmul.mubr.bf16.gmra.mrb[0].mxu0 %v559
        %v2661 = vpop.f32.mrb[0].mxu0
        %v2662 = vadd.f32 %v2469, %v2661
        %v2663 = vpop.f32.mrb[0].mxu0
        %v2664 = vadd.f32 %v2471, %v2663
        %v2665 = vpop.f32.mrb[0].mxu0
        %v2666 = vadd.f32 %v2473, %v2665
        %v2667 = vpop.f32.mrb[0].mxu0
        %v2668 = vadd.f32 %v2475, %v2667
        %2669 = vmatprep.mubr.bf16.mxu0 %v568
        %2670 = vmatmul.mubr.bf16.gmra.mrb[0].mxu0 %v567
        %v2671 = vpop.f32.mrb[0].mxu0
        %v2672 = vadd.f32 %v2479, %v2671
        %v2673 = vpop.f32.mrb[0].mxu0
        %v2674 = vadd.f32 %v2481, %v2673
        %v2675 = vpop.f32.mrb[0].mxu0
        %v2676 = vadd.f32 %v2483, %v2675
        %v2677 = vpop.f32.mrb[0].mxu0
        %v2678 = vadd.f32 %v2485, %v2677
        %2679 = vmatprep.mubr.bf16.mxu0 %v576
        %2680 = vmatmul.mubr.bf16.gmra.mrb[0].mxu0 %v575
        %v2681 = vpop.f32.mrb[0].mxu0
        %v2682 = vadd.f32 %v2489, %v2681
        %v2683 = vpop.f32.mrb[0].mxu0
        %v2684 = vadd.f32 %v2491, %v2683
        %v2685 = vpop.f32.mrb[0].mxu0
        %v2686 = vadd.f32 %v2493, %v2685
        %v2687 = vpop.f32.mrb[0].mxu0
        %v2688 = vadd.f32 %v2495, %v2687
        %2689 = vmatprep.mubr.bf16.mxu0 %v584
        %2690 = vmatmul.mubr.bf16.gmra.mrb[0].mxu0 %v583
        %v2691 = vpop.f32.mrb[0].mxu0
        %v2692 = vadd.f32 %v2499, %v2691
        %v2693 = vpop.f32.mrb[0].mxu0
        %v2694 = vadd.f32 %v2501, %v2693
        %v2695 = vpop.f32.mrb[0].mxu0
        %v2696 = vadd.f32 %v2503, %v2695
        %v2697 = vpop.f32.mrb[0].mxu0
        %v2698 = vadd.f32 %v2505, %v2697
        %2699 = vmatprep.mubr.bf16.mxu0 %v592
        %2700 = vmatmul.mubr.bf16.gmra.mrb[0].mxu0 %v591
        %v2701 = vpop.f32.mrb[0].mxu0
        %v2702 = vadd.f32 %v2509, %v2701
        %v2703 = vpop.f32.mrb[0].mxu0
        %v2704 = vadd.f32 %v2511, %v2703
        %v2705 = vpop.f32.mrb[0].mxu0
        %v2706 = vadd.f32 %v2513, %v2705
        %v2707 = vpop.f32.mrb[0].mxu0
        %v2708 = vadd.f32 %v2515, %v2707
        %2709 = vmatprep.mubr.bf16.mxu0 %v600
        %2710 = vmatmul.mubr.bf16.gmra.mrb[0].mxu0 %v599
        %v2711 = vpop.f32.mrb[0].mxu0
        %v2712 = vadd.f32 %v2519, %v2711
        %v2713 = vpop.f32.mrb[0].mxu0
        %v2714 = vadd.f32 %v2521, %v2713
        %v2715 = vpop.f32.mrb[0].mxu0
        %v2716 = vadd.f32 %v2523, %v2715
        %v2717 = vpop.f32.mrb[0].mxu0
        %v2718 = vadd.f32 %v2525, %v2717
        %2719 = vmatprep.mubr.bf16.mxu0 %v608
        %2720 = vmatmul.mubr.bf16.gmra.mrb[0].mxu0 %v607
        %v2721 = vpop.f32.mrb[0].mxu0
        %v2722 = vadd.f32 %v2529, %v2721
        %v2723 = vpop.f32.mrb[0].mxu0
        %v2724 = vadd.f32 %v2531, %v2723
        %v2725 = vpop.f32.mrb[0].mxu0
        %v2726 = vadd.f32 %v2533, %v2725
        %v2727 = vpop.f32.mrb[0].mxu0
        %v2728 = vadd.f32 %v2535, %v2727
        %2729 = vmatprep.mubr.bf16.mxu0 %v616
        %2730 = vmatmul.mubr.bf16.gmra.mrb[0].mxu0 %v615
        %v2731 = vpop.f32.mrb[0].mxu0
        %v2732 = vadd.f32 %v2539, %v2731
        %v2733 = vpop.f32.mrb[0].mxu0
        %v2734 = vadd.f32 %v2541, %v2733
        %v2735 = vpop.f32.mrb[0].mxu0
        %v2736 = vadd.f32 %v2543, %v2735
        %v2737 = vpop.f32.mrb[0].mxu0
        %v2738 = vadd.f32 %v2545, %v2737
        %2739 = vmatprep.mubr.bf16.mxu0 %v624
        %2740 = vmatmul.mubr.bf16.gmra.mrb[0].mxu0 %v623
        %v2741 = vpop.f32.mrb[0].mxu0
        %v2742 = vadd.f32 %v2549, %v2741
        %v2743 = vpop.f32.mrb[0].mxu0
        %v2744 = vadd.f32 %v2551, %v2743
        %v2745 = vpop.f32.mrb[0].mxu0
        %v2746 = vadd.f32 %v2553, %v2745
        %v2747 = vpop.f32.mrb[0].mxu0
        %v2748 = vadd.f32 %v2555, %v2747
        %2749 = vmatprep.mubr.bf16.mxu0 %v632
        %2750 = vmatmul.mubr.bf16.gmra.mrb[0].mxu0 %v631
        %v2751 = vpop.f32.mrb[0].mxu0
        %v2752 = vadd.f32 %v2559, %v2751
        %v2753 = vpop.f32.mrb[0].mxu0
        %v2754 = vadd.f32 %v2561, %v2753
        %v2755 = vpop.f32.mrb[0].mxu0
        %v2756 = vadd.f32 %v2563, %v2755
        %v2757 = vpop.f32.mrb[0].mxu0
        %v2758 = vadd.f32 %v2565, %v2757
        %2759 = vmatprep.mubr.bf16.mxu0 %v640
        %2760 = vmatmul.mubr.bf16.gmra.mrb[0].mxu0 %v639
        %v2761 = vpop.f32.mrb[0].mxu0
        %v2762 = vadd.f32 %v2569, %v2761
        %v2763 = vpop.f32.mrb[0].mxu0
        %v2764 = vadd.f32 %v2571, %v2763
        %v2765 = vpop.f32.mrb[0].mxu0
        %v2766 = vadd.f32 %v2573, %v2765
        %v2767 = vpop.f32.mrb[0].mxu0
        %v2768 = vadd.f32 %v2575, %v2767
        %2769 = vmatprep.mubr.bf16.mxu0 %v648
        %2770 = vmatmul.mubr.bf16.gmra.mrb[0].mxu0 %v647
        %v2771 = vpop.f32.mrb[0].mxu0
        %v2772 = vadd.f32 %v2579, %v2771
        %v2773 = vpop.f32.mrb[0].mxu0
        %v2774 = vadd.f32 %v2581, %v2773
        %v2775 = vpop.f32.mrb[0].mxu0
        %v2776 = vadd.f32 %v2583, %v2775
        %v2777 = vpop.f32.mrb[0].mxu0
        %v2778 = vadd.f32 %v2585, %v2777
        %2779 = vmatprep.mubr.bf16.mxu0 %v656
        %2780 = vmatmul.mubr.bf16.gmra.mrb[0].mxu0 %v655
        %v2781 = vpop.f32.mrb[0].mxu0
        %v2782 = vadd.f32 %v2589, %v2781
        %v2783 = vpop.f32.mrb[0].mxu0
        %v2784 = vadd.f32 %v2591, %v2783
        %v2785 = vpop.f32.mrb[0].mxu0
        %v2786 = vadd.f32 %v2593, %v2785
        %v2787 = vpop.f32.mrb[0].mxu0
        %v2788 = vadd.f32 %v2595, %v2787
        %2789 = vmatprep.mubr.bf16.mxu0 %v664
        %2790 = vmatmul.mubr.bf16.gmra.mrb[0].mxu0 %v663
        %v2791 = vpop.f32.mrb[0].mxu0
        %v2792 = vadd.f32 %v2599, %v2791
        %v2793 = vpop.f32.mrb[0].mxu0
        %v2794 = vadd.f32 %v2601, %v2793
        %v2795 = vpop.f32.mrb[0].mxu0
        %v2796 = vadd.f32 %v2603, %v2795
        %v2797 = vpop.f32.mrb[0].mxu0
        %v2798 = vadd.f32 %v2605, %v2797
        %2799 = vmatprep.mubr.bf16.mxu0 %v672
        %2800 = vmatmul.mubr.bf16.gmra.mrb[0].mxu0 %v671
        %v2801 = vpop.f32.mrb[0].mxu0
        %v2802 = vadd.f32 %v2609, %v2801
        %v2803 = vpop.f32.mrb[0].mxu0
        %v2804 = vadd.f32 %v2611, %v2803
        %v2805 = vpop.f32.mrb[0].mxu0
        %v2806 = vadd.f32 %v2613, %v2805
        %v2807 = vpop.f32.mrb[0].mxu0
        %v2808 = vadd.f32 %v2615, %v2807
        %2809 = vmatprep.mubr.bf16.mxu0 %v680
        %2810 = vmatmul.mubr.bf16.gmra.mrb[0].mxu0 %v679
        %v2811 = vpop.f32.mrb[0].mxu0
        %v2812 = vadd.f32 %v2619, %v2811
        %v2813 = vpop.f32.mrb[0].mxu0
        %v2814 = vadd.f32 %v2621, %v2813
        %v2815 = vpop.f32.mrb[0].mxu0
        %v2816 = vadd.f32 %v2623, %v2815
        %v2817 = vpop.f32.mrb[0].mxu0
        %v2818 = vadd.f32 %v2625, %v2817
        %2819 = vdwg.mxu0
        %2820 = vmatprep.subr.bf16.mxu0 %v1922
        %2821 = vmatpush1.bf16.msra.mxu0 %v1921
        %2822 = vmatprep.subr.bf16.mxu0 %v1926
        %2823 = vmatpush1.bf16.msra.mxu0 %v1925
        %2824 = vmatprep.subr.bf16.mxu0 %v1930
        %2825 = vmatpush1.bf16.msra.mxu0 %v1929
        %2826 = vmatprep.subr.bf16.mxu0 %v1934
        %2827 = vmatpush1.bf16.msra.mxu0 %v1933
        %2828 = vmatprep.subr.bf16.mxu0 %v1938
        %2829 = vmatpush1.bf16.msra.mxu0 %v1937
        %2830 = vmatprep.subr.bf16.mxu0 %v1942
        %2831 = vmatpush1.bf16.msra.mxu0 %v1941
        %2832 = vmatprep.subr.bf16.mxu0 %v1946
        %2833 = vmatpush1.bf16.msra.mxu0 %v1945
        %2834 = vmatprep.subr.bf16.mxu0 %v1950
        %2835 = vmatpush1.bf16.msra.mxu0 %v1949
        %2836 = vmatprep.subr.bf16.mxu0 %v1954
        %2837 = vmatpush1.bf16.msra.mxu0 %v1953
        %2838 = vmatprep.subr.bf16.mxu0 %v1958
        %2839 = vmatpush1.bf16.msra.mxu0 %v1957
        %2840 = vmatprep.subr.bf16.mxu0 %v1962
        %2841 = vmatpush1.bf16.msra.mxu0 %v1961
        %2842 = vmatprep.subr.bf16.mxu0 %v1966
        %2843 = vmatpush1.bf16.msra.mxu0 %v1965
        %2844 = vmatprep.subr.bf16.mxu0 %v1970
        %2845 = vmatpush1.bf16.msra.mxu0 %v1969
        %2846 = vmatprep.subr.bf16.mxu0 %v1974
        %2847 = vmatpush1.bf16.msra.mxu0 %v1973
        %2848 = vmatprep.subr.bf16.mxu0 %v1978
        %2849 = vmatpush1.bf16.msra.mxu0 %v1977
        %2850 = vmatprep.subr.bf16.mxu0 %v1982
        %2851 = vmatpush1.bf16.msra.mxu0 %v1981
        %2852 = vmatprep.mubr.bf16.mxu0 %v562
        %2853 = vmatmul.mubr.bf16.gmra.mrb[0].mxu0 %v561
        %v2854 = vpop.f32.mrb[0].mxu0
        %v2855 = vadd.f32 %v2662, %v2854
        %v2856 = vpop.f32.mrb[0].mxu0
        %v2857 = vadd.f32 %v2664, %v2856
        %v2858 = vpop.f32.mrb[0].mxu0
        %v2859 = vadd.f32 %v2666, %v2858
        %v2860 = vpop.f32.mrb[0].mxu0
        %v2861 = vadd.f32 %v2668, %v2860
        %2862 = vmatprep.mubr.bf16.mxu0 %v570
        %2863 = vmatmul.mubr.bf16.gmra.mrb[0].mxu0 %v569
        %v2864 = vpop.f32.mrb[0].mxu0
        %v2865 = vadd.f32 %v2672, %v2864
        %v2866 = vpop.f32.mrb[0].mxu0
        %v2867 = vadd.f32 %v2674, %v2866
        %v2868 = vpop.f32.mrb[0].mxu0
        %v2869 = vadd.f32 %v2676, %v2868
        %v2870 = vpop.f32.mrb[0].mxu0
        %v2871 = vadd.f32 %v2678, %v2870
        %2872 = vmatprep.mubr.bf16.mxu0 %v578
        %2873 = vmatmul.mubr.bf16.gmra.mrb[0].mxu0 %v577
        %v2874 = vpop.f32.mrb[0].mxu0
        %v2875 = vadd.f32 %v2682, %v2874
        %v2876 = vpop.f32.mrb[0].mxu0
        %v2877 = vadd.f32 %v2684, %v2876
        %v2878 = vpop.f32.mrb[0].mxu0
        %v2879 = vadd.f32 %v2686, %v2878
        %v2880 = vpop.f32.mrb[0].mxu0
        %v2881 = vadd.f32 %v2688, %v2880
        %2882 = vmatprep.mubr.bf16.mxu0 %v586
        %2883 = vmatmul.mubr.bf16.gmra.mrb[0].mxu0 %v585
        %v2884 = vpop.f32.mrb[0].mxu0
        %v2885 = vadd.f32 %v2692, %v2884
        %v2886 = vpop.f32.mrb[0].mxu0
        %v2887 = vadd.f32 %v2694, %v2886
        %v2888 = vpop.f32.mrb[0].mxu0
        %v2889 = vadd.f32 %v2696, %v2888
        %v2890 = vpop.f32.mrb[0].mxu0
        %v2891 = vadd.f32 %v2698, %v2890
        %2892 = vmatprep.mubr.bf16.mxu0 %v594
        %2893 = vmatmul.mubr.bf16.gmra.mrb[0].mxu0 %v593
        %v2894 = vpop.f32.mrb[0].mxu0
        %v2895 = vadd.f32 %v2702, %v2894
        %v2896 = vpop.f32.mrb[0].mxu0
        %v2897 = vadd.f32 %v2704, %v2896
        %v2898 = vpop.f32.mrb[0].mxu0
        %v2899 = vadd.f32 %v2706, %v2898
        %v2900 = vpop.f32.mrb[0].mxu0
        %v2901 = vadd.f32 %v2708, %v2900
        %2902 = vmatprep.mubr.bf16.mxu0 %v602
        %2903 = vmatmul.mubr.bf16.gmra.mrb[0].mxu0 %v601
        %v2904 = vpop.f32.mrb[0].mxu0
        %v2905 = vadd.f32 %v2712, %v2904
        %v2906 = vpop.f32.mrb[0].mxu0
        %v2907 = vadd.f32 %v2714, %v2906
        %v2908 = vpop.f32.mrb[0].mxu0
        %v2909 = vadd.f32 %v2716, %v2908
        %v2910 = vpop.f32.mrb[0].mxu0
        %v2911 = vadd.f32 %v2718, %v2910
        %2912 = vmatprep.mubr.bf16.mxu0 %v610
        %2913 = vmatmul.mubr.bf16.gmra.mrb[0].mxu0 %v609
        %v2914 = vpop.f32.mrb[0].mxu0
        %v2915 = vadd.f32 %v2722, %v2914
        %v2916 = vpop.f32.mrb[0].mxu0
        %v2917 = vadd.f32 %v2724, %v2916
        %v2918 = vpop.f32.mrb[0].mxu0
        %v2919 = vadd.f32 %v2726, %v2918
        %v2920 = vpop.f32.mrb[0].mxu0
        %v2921 = vadd.f32 %v2728, %v2920
        %2922 = vmatprep.mubr.bf16.mxu0 %v618
        %2923 = vmatmul.mubr.bf16.gmra.mrb[0].mxu0 %v617
        %v2924 = vpop.f32.mrb[0].mxu0
        %v2925 = vadd.f32 %v2732, %v2924
        %v2926 = vpop.f32.mrb[0].mxu0
        %v2927 = vadd.f32 %v2734, %v2926
        %v2928 = vpop.f32.mrb[0].mxu0
        %v2929 = vadd.f32 %v2736, %v2928
        %v2930 = vpop.f32.mrb[0].mxu0
        %v2931 = vadd.f32 %v2738, %v2930
        %2932 = vmatprep.mubr.bf16.mxu0 %v626
        %2933 = vmatmul.mubr.bf16.gmra.mrb[0].mxu0 %v625
        %v2934 = vpop.f32.mrb[0].mxu0
        %v2935 = vadd.f32 %v2742, %v2934
        %v2936 = vpop.f32.mrb[0].mxu0
        %v2937 = vadd.f32 %v2744, %v2936
        %v2938 = vpop.f32.mrb[0].mxu0
        %v2939 = vadd.f32 %v2746, %v2938
        %v2940 = vpop.f32.mrb[0].mxu0
        %v2941 = vadd.f32 %v2748, %v2940
        %2942 = vmatprep.mubr.bf16.mxu0 %v634
        %2943 = vmatmul.mubr.bf16.gmra.mrb[0].mxu0 %v633
        %v2944 = vpop.f32.mrb[0].mxu0
        %v2945 = vadd.f32 %v2752, %v2944
        %v2946 = vpop.f32.mrb[0].mxu0
        %v2947 = vadd.f32 %v2754, %v2946
        %v2948 = vpop.f32.mrb[0].mxu0
        %v2949 = vadd.f32 %v2756, %v2948
        %v2950 = vpop.f32.mrb[0].mxu0
        %v2951 = vadd.f32 %v2758, %v2950
        %2952 = vmatprep.mubr.bf16.mxu0 %v642
        %2953 = vmatmul.mubr.bf16.gmra.mrb[0].mxu0 %v641
        %v2954 = vpop.f32.mrb[0].mxu0
        %v2955 = vadd.f32 %v2762, %v2954
        %v2956 = vpop.f32.mrb[0].mxu0
        %v2957 = vadd.f32 %v2764, %v2956
        %v2958 = vpop.f32.mrb[0].mxu0
        %v2959 = vadd.f32 %v2766, %v2958
        %v2960 = vpop.f32.mrb[0].mxu0
        %v2961 = vadd.f32 %v2768, %v2960
        %2962 = vmatprep.mubr.bf16.mxu0 %v650
        %2963 = vmatmul.mubr.bf16.gmra.mrb[0].mxu0 %v649
        %v2964 = vpop.f32.mrb[0].mxu0
        %v2965 = vadd.f32 %v2772, %v2964
        %v2966 = vpop.f32.mrb[0].mxu0
        %v2967 = vadd.f32 %v2774, %v2966
        %v2968 = vpop.f32.mrb[0].mxu0
        %v2969 = vadd.f32 %v2776, %v2968
        %v2970 = vpop.f32.mrb[0].mxu0
        %v2971 = vadd.f32 %v2778, %v2970
        %2972 = vmatprep.mubr.bf16.mxu0 %v658
        %2973 = vmatmul.mubr.bf16.gmra.mrb[0].mxu0 %v657
        %v2974 = vpop.f32.mrb[0].mxu0
        %v2975 = vadd.f32 %v2782, %v2974
        %v2976 = vpop.f32.mrb[0].mxu0
        %v2977 = vadd.f32 %v2784, %v2976
        %v2978 = vpop.f32.mrb[0].mxu0
        %v2979 = vadd.f32 %v2786, %v2978
        %v2980 = vpop.f32.mrb[0].mxu0
        %v2981 = vadd.f32 %v2788, %v2980
        %2982 = vmatprep.mubr.bf16.mxu0 %v666
        %2983 = vmatmul.mubr.bf16.gmra.mrb[0].mxu0 %v665
        %v2984 = vpop.f32.mrb[0].mxu0
        %v2985 = vadd.f32 %v2792, %v2984
        %v2986 = vpop.f32.mrb[0].mxu0
        %v2987 = vadd.f32 %v2794, %v2986
        %v2988 = vpop.f32.mrb[0].mxu0
        %v2989 = vadd.f32 %v2796, %v2988
        %v2990 = vpop.f32.mrb[0].mxu0
        %v2991 = vadd.f32 %v2798, %v2990
        %2992 = vmatprep.mubr.bf16.mxu0 %v674
        %2993 = vmatmul.mubr.bf16.gmra.mrb[0].mxu0 %v673
        %v2994 = vpop.f32.mrb[0].mxu0
        %v2995 = vadd.f32 %v2802, %v2994
        %v2996 = vpop.f32.mrb[0].mxu0
        %v2997 = vadd.f32 %v2804, %v2996
        %v2998 = vpop.f32.mrb[0].mxu0
        %v2999 = vadd.f32 %v2806, %v2998
        %v3000 = vpop.f32.mrb[0].mxu0
        %v3001 = vadd.f32 %v2808, %v3000
        %3002 = vmatprep.mubr.bf16.mxu0 %v682
        %3003 = vmatmul.mubr.bf16.gmra.mrb[0].mxu0 %v681
        %v3004 = vpop.f32.mrb[0].mxu0
        %v3005 = vadd.f32 %v2812, %v3004
        %v3006 = vpop.f32.mrb[0].mxu0
        %v3007 = vadd.f32 %v2814, %v3006
        %v3008 = vpop.f32.mrb[0].mxu0
        %v3009 = vadd.f32 %v2816, %v3008
        %v3010 = vpop.f32.mrb[0].mxu0
        %v3011 = vadd.f32 %v2818, %v3010
        %3012 = vdwg.mxu0
        %3013 = vmatprep.subr.bf16.mxu0 %v1732
        %3014 = vmatpush1.bf16.msra.mxu0 %v1731
        %3015 = vmatprep.subr.bf16.mxu0 %v1736
        %3016 = vmatpush1.bf16.msra.mxu0 %v1735
        %3017 = vmatprep.subr.bf16.mxu0 %v1740
        %3018 = vmatpush1.bf16.msra.mxu0 %v1739
        %3019 = vmatprep.subr.bf16.mxu0 %v1744
        %3020 = vmatpush1.bf16.msra.mxu0 %v1743
        %3021 = vmatprep.subr.bf16.mxu0 %v1748
        %3022 = vmatpush1.bf16.msra.mxu0 %v1747
        %3023 = vmatprep.subr.bf16.mxu0 %v1752
        %3024 = vmatpush1.bf16.msra.mxu0 %v1751
        %3025 = vmatprep.subr.bf16.mxu0 %v1756
        %3026 = vmatpush1.bf16.msra.mxu0 %v1755
        %3027 = vmatprep.subr.bf16.mxu0 %v1760
        %3028 = vmatpush1.bf16.msra.mxu0 %v1759
        %3029 = vmatprep.subr.bf16.mxu0 %v1764
        %3030 = vmatpush1.bf16.msra.mxu0 %v1763
        %3031 = vmatprep.subr.bf16.mxu0 %v1768
        %3032 = vmatpush1.bf16.msra.mxu0 %v1767
        %3033 = vmatprep.subr.bf16.mxu0 %v1772
        %3034 = vmatpush1.bf16.msra.mxu0 %v1771
        %3035 = vmatprep.subr.bf16.mxu0 %v1776
        %3036 = vmatpush1.bf16.msra.mxu0 %v1775
        %3037 = vmatprep.subr.bf16.mxu0 %v1780
        %3038 = vmatpush1.bf16.msra.mxu0 %v1779
        %3039 = vmatprep.subr.bf16.mxu0 %v1784
        %3040 = vmatpush1.bf16.msra.mxu0 %v1783
        %3041 = vmatprep.subr.bf16.mxu0 %v1788
        %3042 = vmatpush1.bf16.msra.mxu0 %v1787
        %3043 = vmatprep.subr.bf16.mxu0 %v1792
        %3044 = vmatpush1.bf16.msra.mxu0 %v1791
        %3045 = vmatprep.mubr.bf16.mxu0 %v556
        %3046 = vmatmul.mubr.bf16.gmra.mrb[0].mxu0 %v555
        %v3047 = vpop.f32.mrb[0].mxu0
        %v3048 = vadd.f32 %v952, %v3047
        %v3049 = vpop.f32.mrb[0].mxu0
        %v3050 = vadd.f32 %v956, %v3049
        %v3051 = vpop.f32.mrb[0].mxu0
        %v3052 = vadd.f32 %v952, %v3051
        %v3053 = vpop.f32.mrb[0].mxu0
        %v3054 = vadd.f32 %v956, %v3053
        %3055 = vmatprep.mubr.bf16.mxu0 %v564
        %3056 = vmatmul.mubr.bf16.gmra.mrb[0].mxu0 %v563
        %v3057 = vpop.f32.mrb[0].mxu0
        %v3058 = vadd.f32 %v952, %v3057
        %v3059 = vpop.f32.mrb[0].mxu0
        %v3060 = vadd.f32 %v956, %v3059
        %v3061 = vpop.f32.mrb[0].mxu0
        %v3062 = vadd.f32 %v952, %v3061
        %v3063 = vpop.f32.mrb[0].mxu0
        %v3064 = vadd.f32 %v956, %v3063
        %3065 = vmatprep.mubr.bf16.mxu0 %v572
        %3066 = vmatmul.mubr.bf16.gmra.mrb[0].mxu0 %v571
        %v3067 = vpop.f32.mrb[0].mxu0
        %v3068 = vadd.f32 %v952, %v3067
        %v3069 = vpop.f32.mrb[0].mxu0
        %v3070 = vadd.f32 %v956, %v3069
        %v3071 = vpop.f32.mrb[0].mxu0
        %v3072 = vadd.f32 %v952, %v3071
        %v3073 = vpop.f32.mrb[0].mxu0
        %v3074 = vadd.f32 %v956, %v3073
        %3075 = vmatprep.mubr.bf16.mxu0 %v580
        %3076 = vmatmul.mubr.bf16.gmra.mrb[0].mxu0 %v579
        %v3077 = vpop.f32.mrb[0].mxu0
        %v3078 = vadd.f32 %v952, %v3077
        %v3079 = vpop.f32.mrb[0].mxu0
        %v3080 = vadd.f32 %v956, %v3079
        %v3081 = vpop.f32.mrb[0].mxu0
        %v3082 = vadd.f32 %v952, %v3081
        %v3083 = vpop.f32.mrb[0].mxu0
        %v3084 = vadd.f32 %v956, %v3083
        %3085 = vmatprep.mubr.bf16.mxu0 %v588
        %3086 = vmatmul.mubr.bf16.gmra.mrb[0].mxu0 %v587
        %v3087 = vpop.f32.mrb[0].mxu0
        %v3088 = vadd.f32 %v952, %v3087
        %v3089 = vpop.f32.mrb[0].mxu0
        %v3090 = vadd.f32 %v956, %v3089
        %v3091 = vpop.f32.mrb[0].mxu0
        %v3092 = vadd.f32 %v952, %v3091
        %v3093 = vpop.f32.mrb[0].mxu0
        %v3094 = vadd.f32 %v956, %v3093
        %3095 = vmatprep.mubr.bf16.mxu0 %v596
        %3096 = vmatmul.mubr.bf16.gmra.mrb[0].mxu0 %v595
        %v3097 = vpop.f32.mrb[0].mxu0
        %v3098 = vadd.f32 %v952, %v3097
        %v3099 = vpop.f32.mrb[0].mxu0
        %v3100 = vadd.f32 %v956, %v3099
        %v3101 = vpop.f32.mrb[0].mxu0
        %v3102 = vadd.f32 %v952, %v3101
        %v3103 = vpop.f32.mrb[0].mxu0
        %v3104 = vadd.f32 %v956, %v3103
        %3105 = vmatprep.mubr.bf16.mxu0 %v604
        %3106 = vmatmul.mubr.bf16.gmra.mrb[0].mxu0 %v603
        %v3107 = vpop.f32.mrb[0].mxu0
        %v3108 = vadd.f32 %v952, %v3107
        %v3109 = vpop.f32.mrb[0].mxu0
        %v3110 = vadd.f32 %v956, %v3109
        %v3111 = vpop.f32.mrb[0].mxu0
        %v3112 = vadd.f32 %v952, %v3111
        %v3113 = vpop.f32.mrb[0].mxu0
        %v3114 = vadd.f32 %v956, %v3113
        %3115 = vmatprep.mubr.bf16.mxu0 %v612
        %3116 = vmatmul.mubr.bf16.gmra.mrb[0].mxu0 %v611
        %v3117 = vpop.f32.mrb[0].mxu0
        %v3118 = vadd.f32 %v952, %v3117
        %v3119 = vpop.f32.mrb[0].mxu0
        %v3120 = vadd.f32 %v956, %v3119
        %v3121 = vpop.f32.mrb[0].mxu0
        %v3122 = vadd.f32 %v952, %v3121
        %v3123 = vpop.f32.mrb[0].mxu0
        %v3124 = vadd.f32 %v956, %v3123
        %3125 = vmatprep.mubr.bf16.mxu0 %v620
        %3126 = vmatmul.mubr.bf16.gmra.mrb[0].mxu0 %v619
        %v3127 = vpop.f32.mrb[0].mxu0
        %v3128 = vadd.f32 %v952, %v3127
        %v3129 = vpop.f32.mrb[0].mxu0
        %v3130 = vadd.f32 %v956, %v3129
        %v3131 = vpop.f32.mrb[0].mxu0
        %v3132 = vadd.f32 %v952, %v3131
        %v3133 = vpop.f32.mrb[0].mxu0
        %v3134 = vadd.f32 %v956, %v3133
        %3135 = vmatprep.mubr.bf16.mxu0 %v628
        %3136 = vmatmul.mubr.bf16.gmra.mrb[0].mxu0 %v627
        %v3137 = vpop.f32.mrb[0].mxu0
        %v3138 = vadd.f32 %v952, %v3137
        %v3139 = vpop.f32.mrb[0].mxu0
        %v3140 = vadd.f32 %v956, %v3139
        %v3141 = vpop.f32.mrb[0].mxu0
        %v3142 = vadd.f32 %v952, %v3141
        %v3143 = vpop.f32.mrb[0].mxu0
        %v3144 = vadd.f32 %v956, %v3143
        %3145 = vmatprep.mubr.bf16.mxu0 %v636
        %3146 = vmatmul.mubr.bf16.gmra.mrb[0].mxu0 %v635
        %v3147 = vpop.f32.mrb[0].mxu0
        %v3148 = vadd.f32 %v952, %v3147
        %v3149 = vpop.f32.mrb[0].mxu0
        %v3150 = vadd.f32 %v956, %v3149
        %v3151 = vpop.f32.mrb[0].mxu0
        %v3152 = vadd.f32 %v952, %v3151
        %v3153 = vpop.f32.mrb[0].mxu0
        %v3154 = vadd.f32 %v956, %v3153
        %3155 = vmatprep.mubr.bf16.mxu0 %v644
        %3156 = vmatmul.mubr.bf16.gmra.mrb[0].mxu0 %v643
        %v3157 = vpop.f32.mrb[0].mxu0
        %v3158 = vadd.f32 %v952, %v3157
        %v3159 = vpop.f32.mrb[0].mxu0
        %v3160 = vadd.f32 %v956, %v3159
        %v3161 = vpop.f32.mrb[0].mxu0
        %v3162 = vadd.f32 %v952, %v3161
        %v3163 = vpop.f32.mrb[0].mxu0
        %v3164 = vadd.f32 %v956, %v3163
        %3165 = vmatprep.mubr.bf16.mxu0 %v652
        %3166 = vmatmul.mubr.bf16.gmra.mrb[0].mxu0 %v651
        %v3167 = vpop.f32.mrb[0].mxu0
        %v3168 = vadd.f32 %v952, %v3167
        %v3169 = vpop.f32.mrb[0].mxu0
        %v3170 = vadd.f32 %v956, %v3169
        %v3171 = vpop.f32.mrb[0].mxu0
        %v3172 = vadd.f32 %v952, %v3171
        %v3173 = vpop.f32.mrb[0].mxu0
        %v3174 = vadd.f32 %v956, %v3173
        %3175 = vmatprep.mubr.bf16.mxu0 %v660
        %3176 = vmatmul.mubr.bf16.gmra.mrb[0].mxu0 %v659
        %v3177 = vpop.f32.mrb[0].mxu0
        %v3178 = vadd.f32 %v952, %v3177
        %v3179 = vpop.f32.mrb[0].mxu0
        %v3180 = vadd.f32 %v956, %v3179
        %v3181 = vpop.f32.mrb[0].mxu0
        %v3182 = vadd.f32 %v952, %v3181
        %v3183 = vpop.f32.mrb[0].mxu0
        %v3184 = vadd.f32 %v956, %v3183
        %3185 = vmatprep.mubr.bf16.mxu0 %v668
        %3186 = vmatmul.mubr.bf16.gmra.mrb[0].mxu0 %v667
        %v3187 = vpop.f32.mrb[0].mxu0
        %v3188 = vadd.f32 %v952, %v3187
        %v3189 = vpop.f32.mrb[0].mxu0
        %v3190 = vadd.f32 %v956, %v3189
        %v3191 = vpop.f32.mrb[0].mxu0
        %v3192 = vadd.f32 %v952, %v3191
        %v3193 = vpop.f32.mrb[0].mxu0
        %v3194 = vadd.f32 %v956, %v3193
        %3195 = vmatprep.mubr.bf16.mxu0 %v676
        %3196 = vmatmul.mubr.bf16.gmra.mrb[0].mxu0 %v675
        %v3197 = vpop.f32.mrb[0].mxu0
        %v3198 = vadd.f32 %v952, %v3197
        %v3199 = vpop.f32.mrb[0].mxu0
        %v3200 = vadd.f32 %v956, %v3199
        %v3201 = vpop.f32.mrb[0].mxu0
        %v3202 = vadd.f32 %v952, %v3201
        %v3203 = vpop.f32.mrb[0].mxu0
        %v3204 = vadd.f32 %v956, %v3203
        %3205 = vdwg.mxu0
        %3206 = vmatprep.subr.bf16.mxu0 %v1796
        %3207 = vmatpush1.bf16.msra.mxu0 %v1795
        %3208 = vmatprep.subr.bf16.mxu0 %v1800
        %3209 = vmatpush1.bf16.msra.mxu0 %v1799
        %3210 = vmatprep.subr.bf16.mxu0 %v1804
        %3211 = vmatpush1.bf16.msra.mxu0 %v1803
        %3212 = vmatprep.subr.bf16.mxu0 %v1808
        %3213 = vmatpush1.bf16.msra.mxu0 %v1807
        %3214 = vmatprep.subr.bf16.mxu0 %v1812
        %3215 = vmatpush1.bf16.msra.mxu0 %v1811
        %3216 = vmatprep.subr.bf16.mxu0 %v1816
        %3217 = vmatpush1.bf16.msra.mxu0 %v1815
        %3218 = vmatprep.subr.bf16.mxu0 %v1820
        %3219 = vmatpush1.bf16.msra.mxu0 %v1819
        %3220 = vmatprep.subr.bf16.mxu0 %v1824
        %3221 = vmatpush1.bf16.msra.mxu0 %v1823
        %3222 = vmatprep.subr.bf16.mxu0 %v1828
        %3223 = vmatpush1.bf16.msra.mxu0 %v1827
        %3224 = vmatprep.subr.bf16.mxu0 %v1832
        %3225 = vmatpush1.bf16.msra.mxu0 %v1831
        %3226 = vmatprep.subr.bf16.mxu0 %v1836
        %3227 = vmatpush1.bf16.msra.mxu0 %v1835
        %3228 = vmatprep.subr.bf16.mxu0 %v1840
        %3229 = vmatpush1.bf16.msra.mxu0 %v1839
        %3230 = vmatprep.subr.bf16.mxu0 %v1844
        %3231 = vmatpush1.bf16.msra.mxu0 %v1843
        %3232 = vmatprep.subr.bf16.mxu0 %v1848
        %3233 = vmatpush1.bf16.msra.mxu0 %v1847
        %3234 = vmatprep.subr.bf16.mxu0 %v1852
        %3235 = vmatpush1.bf16.msra.mxu0 %v1851
        %3236 = vmatprep.subr.bf16.mxu0 %v1856
        %3237 = vmatpush1.bf16.msra.mxu0 %v1855
        %3238 = vmatprep.mubr.bf16.mxu0 %v558
        %3239 = vmatmul.mubr.bf16.gmra.mrb[0].mxu0 %v557
        %v3240 = vpop.f32.mrb[0].mxu0
        %v3241 = vadd.f32 %v3048, %v3240
        %v3242 = vpop.f32.mrb[0].mxu0
        %v3243 = vadd.f32 %v3050, %v3242
        %v3244 = vpop.f32.mrb[0].mxu0
        %v3245 = vadd.f32 %v3052, %v3244
        %v3246 = vpop.f32.mrb[0].mxu0
        %v3247 = vadd.f32 %v3054, %v3246
        %3248 = vmatprep.mubr.bf16.mxu0 %v566
        %3249 = vmatmul.mubr.bf16.gmra.mrb[0].mxu0 %v565
        %v3250 = vpop.f32.mrb[0].mxu0
        %v3251 = vadd.f32 %v3058, %v3250
        %v3252 = vpop.f32.mrb[0].mxu0
        %v3253 = vadd.f32 %v3060, %v3252
        %v3254 = vpop.f32.mrb[0].mxu0
        %v3255 = vadd.f32 %v3062, %v3254
        %v3256 = vpop.f32.mrb[0].mxu0
        %v3257 = vadd.f32 %v3064, %v3256
        %3258 = vmatprep.mubr.bf16.mxu0 %v574
        %3259 = vmatmul.mubr.bf16.gmra.mrb[0].mxu0 %v573
        %v3260 = vpop.f32.mrb[0].mxu0
        %v3261 = vadd.f32 %v3068, %v3260
        %v3262 = vpop.f32.mrb[0].mxu0
        %v3263 = vadd.f32 %v3070, %v3262
        %v3264 = vpop.f32.mrb[0].mxu0
        %v3265 = vadd.f32 %v3072, %v3264
        %v3266 = vpop.f32.mrb[0].mxu0
        %v3267 = vadd.f32 %v3074, %v3266
        %3268 = vmatprep.mubr.bf16.mxu0 %v582
        %3269 = vmatmul.mubr.bf16.gmra.mrb[0].mxu0 %v581
        %v3270 = vpop.f32.mrb[0].mxu0
        %v3271 = vadd.f32 %v3078, %v3270
        %v3272 = vpop.f32.mrb[0].mxu0
        %v3273 = vadd.f32 %v3080, %v3272
        %v3274 = vpop.f32.mrb[0].mxu0
        %v3275 = vadd.f32 %v3082, %v3274
        %v3276 = vpop.f32.mrb[0].mxu0
        %v3277 = vadd.f32 %v3084, %v3276
        %3278 = vmatprep.mubr.bf16.mxu0 %v590
        %3279 = vmatmul.mubr.bf16.gmra.mrb[0].mxu0 %v589
        %v3280 = vpop.f32.mrb[0].mxu0
        %v3281 = vadd.f32 %v3088, %v3280
        %v3282 = vpop.f32.mrb[0].mxu0
        %v3283 = vadd.f32 %v3090, %v3282
        %v3284 = vpop.f32.mrb[0].mxu0
        %v3285 = vadd.f32 %v3092, %v3284
        %v3286 = vpop.f32.mrb[0].mxu0
        %v3287 = vadd.f32 %v3094, %v3286
        %3288 = vmatprep.mubr.bf16.mxu0 %v598
        %3289 = vmatmul.mubr.bf16.gmra.mrb[0].mxu0 %v597
        %v3290 = vpop.f32.mrb[0].mxu0
        %v3291 = vadd.f32 %v3098, %v3290
        %v3292 = vpop.f32.mrb[0].mxu0
        %v3293 = vadd.f32 %v3100, %v3292
        %v3294 = vpop.f32.mrb[0].mxu0
        %v3295 = vadd.f32 %v3102, %v3294
        %v3296 = vpop.f32.mrb[0].mxu0
        %v3297 = vadd.f32 %v3104, %v3296
        %3298 = vmatprep.mubr.bf16.mxu0 %v606
        %3299 = vmatmul.mubr.bf16.gmra.mrb[0].mxu0 %v605
        %v3300 = vpop.f32.mrb[0].mxu0
        %v3301 = vadd.f32 %v3108, %v3300
        %v3302 = vpop.f32.mrb[0].mxu0
        %v3303 = vadd.f32 %v3110, %v3302
        %v3304 = vpop.f32.mrb[0].mxu0
        %v3305 = vadd.f32 %v3112, %v3304
        %v3306 = vpop.f32.mrb[0].mxu0
        %v3307 = vadd.f32 %v3114, %v3306
        %3308 = vmatprep.mubr.bf16.mxu0 %v614
        %3309 = vmatmul.mubr.bf16.gmra.mrb[0].mxu0 %v613
        %v3310 = vpop.f32.mrb[0].mxu0
        %v3311 = vadd.f32 %v3118, %v3310
        %v3312 = vpop.f32.mrb[0].mxu0
        %v3313 = vadd.f32 %v3120, %v3312
        %v3314 = vpop.f32.mrb[0].mxu0
        %v3315 = vadd.f32 %v3122, %v3314
        %v3316 = vpop.f32.mrb[0].mxu0
        %v3317 = vadd.f32 %v3124, %v3316
        %3318 = vmatprep.mubr.bf16.mxu0 %v622
        %3319 = vmatmul.mubr.bf16.gmra.mrb[0].mxu0 %v621
        %v3320 = vpop.f32.mrb[0].mxu0
        %v3321 = vadd.f32 %v3128, %v3320
        %v3322 = vpop.f32.mrb[0].mxu0
        %v3323 = vadd.f32 %v3130, %v3322
        %v3324 = vpop.f32.mrb[0].mxu0
        %v3325 = vadd.f32 %v3132, %v3324
        %v3326 = vpop.f32.mrb[0].mxu0
        %v3327 = vadd.f32 %v3134, %v3326
        %3328 = vmatprep.mubr.bf16.mxu0 %v630
        %3329 = vmatmul.mubr.bf16.gmra.mrb[0].mxu0 %v629
        %v3330 = vpop.f32.mrb[0].mxu0
        %v3331 = vadd.f32 %v3138, %v3330
        %v3332 = vpop.f32.mrb[0].mxu0
        %v3333 = vadd.f32 %v3140, %v3332
        %v3334 = vpop.f32.mrb[0].mxu0
        %v3335 = vadd.f32 %v3142, %v3334
        %v3336 = vpop.f32.mrb[0].mxu0
        %v3337 = vadd.f32 %v3144, %v3336
        %3338 = vmatprep.mubr.bf16.mxu0 %v638
        %3339 = vmatmul.mubr.bf16.gmra.mrb[0].mxu0 %v637
        %v3340 = vpop.f32.mrb[0].mxu0
        %v3341 = vadd.f32 %v3148, %v3340
        %v3342 = vpop.f32.mrb[0].mxu0
        %v3343 = vadd.f32 %v3150, %v3342
        %v3344 = vpop.f32.mrb[0].mxu0
        %v3345 = vadd.f32 %v3152, %v3344
        %v3346 = vpop.f32.mrb[0].mxu0
        %v3347 = vadd.f32 %v3154, %v3346
        %3348 = vmatprep.mubr.bf16.mxu0 %v646
        %3349 = vmatmul.mubr.bf16.gmra.mrb[0].mxu0 %v645
        %v3350 = vpop.f32.mrb[0].mxu0
        %v3351 = vadd.f32 %v3158, %v3350
        %v3352 = vpop.f32.mrb[0].mxu0
        %v3353 = vadd.f32 %v3160, %v3352
        %v3354 = vpop.f32.mrb[0].mxu0
        %v3355 = vadd.f32 %v3162, %v3354
        %v3356 = vpop.f32.mrb[0].mxu0
        %v3357 = vadd.f32 %v3164, %v3356
        %3358 = vmatprep.mubr.bf16.mxu0 %v654
        %3359 = vmatmul.mubr.bf16.gmra.mrb[0].mxu0 %v653
        %v3360 = vpop.f32.mrb[0].mxu0
        %v3361 = vadd.f32 %v3168, %v3360
        %v3362 = vpop.f32.mrb[0].mxu0
        %v3363 = vadd.f32 %v3170, %v3362
        %v3364 = vpop.f32.mrb[0].mxu0
        %v3365 = vadd.f32 %v3172, %v3364
        %v3366 = vpop.f32.mrb[0].mxu0
        %v3367 = vadd.f32 %v3174, %v3366
        %3368 = vmatprep.mubr.bf16.mxu0 %v662
        %3369 = vmatmul.mubr.bf16.gmra.mrb[0].mxu0 %v661
        %v3370 = vpop.f32.mrb[0].mxu0
        %v3371 = vadd.f32 %v3178, %v3370
        %v3372 = vpop.f32.mrb[0].mxu0
        %v3373 = vadd.f32 %v3180, %v3372
        %v3374 = vpop.f32.mrb[0].mxu0
        %v3375 = vadd.f32 %v3182, %v3374
        %v3376 = vpop.f32.mrb[0].mxu0
        %v3377 = vadd.f32 %v3184, %v3376
        %3378 = vmatprep.mubr.bf16.mxu0 %v670
        %3379 = vmatmul.mubr.bf16.gmra.mrb[0].mxu0 %v669
        %v3380 = vpop.f32.mrb[0].mxu0
        %v3381 = vadd.f32 %v3188, %v3380
        %v3382 = vpop.f32.mrb[0].mxu0
        %v3383 = vadd.f32 %v3190, %v3382
        %v3384 = vpop.f32.mrb[0].mxu0
        %v3385 = vadd.f32 %v3192, %v3384
        %v3386 = vpop.f32.mrb[0].mxu0
        %v3387 = vadd.f32 %v3194, %v3386
        %3388 = vmatprep.mubr.bf16.mxu0 %v678
        %3389 = vmatmul.mubr.bf16.gmra.mrb[0].mxu0 %v677
        %v3390 = vpop.f32.mrb[0].mxu0
        %v3391 = vadd.f32 %v3198, %v3390
        %v3392 = vpop.f32.mrb[0].mxu0
        %v3393 = vadd.f32 %v3200, %v3392
        %v3394 = vpop.f32.mrb[0].mxu0
        %v3395 = vadd.f32 %v3202, %v3394
        %v3396 = vpop.f32.mrb[0].mxu0
        %v3397 = vadd.f32 %v3204, %v3396
        %3398 = vdwg.mxu0
        %3399 = vmatprep.subr.bf16.mxu0 %v1860
        %3400 = vmatpush1.bf16.msra.mxu0 %v1859
        %3401 = vmatprep.subr.bf16.mxu0 %v1864
        %3402 = vmatpush1.bf16.msra.mxu0 %v1863
        %3403 = vmatprep.subr.bf16.mxu0 %v1868
        %3404 = vmatpush1.bf16.msra.mxu0 %v1867
        %3405 = vmatprep.subr.bf16.mxu0 %v1872
        %3406 = vmatpush1.bf16.msra.mxu0 %v1871
        %3407 = vmatprep.subr.bf16.mxu0 %v1876
        %3408 = vmatpush1.bf16.msra.mxu0 %v1875
        %3409 = vmatprep.subr.bf16.mxu0 %v1880
        %3410 = vmatpush1.bf16.msra.mxu0 %v1879
        %3411 = vmatprep.subr.bf16.mxu0 %v1884
        %3412 = vmatpush1.bf16.msra.mxu0 %v1883
        %3413 = vmatprep.subr.bf16.mxu0 %v1888
        %3414 = vmatpush1.bf16.msra.mxu0 %v1887
        %3415 = vmatprep.subr.bf16.mxu0 %v1892
        %3416 = vmatpush1.bf16.msra.mxu0 %v1891
        %3417 = vmatprep.subr.bf16.mxu0 %v1896
        %3418 = vmatpush1.bf16.msra.mxu0 %v1895
        %3419 = vmatprep.subr.bf16.mxu0 %v1900
        %3420 = vmatpush1.bf16.msra.mxu0 %v1899
        %3421 = vmatprep.subr.bf16.mxu0 %v1904
        %3422 = vmatpush1.bf16.msra.mxu0 %v1903
        %3423 = vmatprep.subr.bf16.mxu0 %v1908
        %3424 = vmatpush1.bf16.msra.mxu0 %v1907
        %3425 = vmatprep.subr.bf16.mxu0 %v1912
        %3426 = vmatpush1.bf16.msra.mxu0 %v1911
        %3427 = vmatprep.subr.bf16.mxu0 %v1916
        %3428 = vmatpush1.bf16.msra.mxu0 %v1915
        %3429 = vmatprep.subr.bf16.mxu0 %v1920
        %3430 = vmatpush1.bf16.msra.mxu0 %v1919
        %3431 = vmatprep.mubr.bf16.mxu0 %v560
        %3432 = vmatmul.mubr.bf16.gmra.mrb[0].mxu0 %v559
        %v3433 = vpop.f32.mrb[0].mxu0
        %v3434 = vadd.f32 %v3241, %v3433
        %v3435 = vpop.f32.mrb[0].mxu0
        %v3436 = vadd.f32 %v3243, %v3435
        %v3437 = vpop.f32.mrb[0].mxu0
        %v3438 = vadd.f32 %v3245, %v3437
        %v3439 = vpop.f32.mrb[0].mxu0
        %v3440 = vadd.f32 %v3247, %v3439
        %3441 = vmatprep.mubr.bf16.mxu0 %v568
        %3442 = vmatmul.mubr.bf16.gmra.mrb[0].mxu0 %v567
        %v3443 = vpop.f32.mrb[0].mxu0
        %v3444 = vadd.f32 %v3251, %v3443
        %v3445 = vpop.f32.mrb[0].mxu0
        %v3446 = vadd.f32 %v3253, %v3445
        %v3447 = vpop.f32.mrb[0].mxu0
        %v3448 = vadd.f32 %v3255, %v3447
        %v3449 = vpop.f32.mrb[0].mxu0
        %v3450 = vadd.f32 %v3257, %v3449
        %3451 = vmatprep.mubr.bf16.mxu0 %v576
        %3452 = vmatmul.mubr.bf16.gmra.mrb[0].mxu0 %v575
        %v3453 = vpop.f32.mrb[0].mxu0
        %v3454 = vadd.f32 %v3261, %v3453
        %v3455 = vpop.f32.mrb[0].mxu0
        %v3456 = vadd.f32 %v3263, %v3455
        %v3457 = vpop.f32.mrb[0].mxu0
        %v3458 = vadd.f32 %v3265, %v3457
        %v3459 = vpop.f32.mrb[0].mxu0
        %v3460 = vadd.f32 %v3267, %v3459
        %3461 = vmatprep.mubr.bf16.mxu0 %v584
        %3462 = vmatmul.mubr.bf16.gmra.mrb[0].mxu0 %v583
        %v3463 = vpop.f32.mrb[0].mxu0
        %v3464 = vadd.f32 %v3271, %v3463
        %v3465 = vpop.f32.mrb[0].mxu0
        %v3466 = vadd.f32 %v3273, %v3465
        %v3467 = vpop.f32.mrb[0].mxu0
        %v3468 = vadd.f32 %v3275, %v3467
        %v3469 = vpop.f32.mrb[0].mxu0
        %v3470 = vadd.f32 %v3277, %v3469
        %3471 = vmatprep.mubr.bf16.mxu0 %v592
        %3472 = vmatmul.mubr.bf16.gmra.mrb[0].mxu0 %v591
        %v3473 = vpop.f32.mrb[0].mxu0
        %v3474 = vadd.f32 %v3281, %v3473
        %v3475 = vpop.f32.mrb[0].mxu0
        %v3476 = vadd.f32 %v3283, %v3475
        %v3477 = vpop.f32.mrb[0].mxu0
        %v3478 = vadd.f32 %v3285, %v3477
        %v3479 = vpop.f32.mrb[0].mxu0
        %v3480 = vadd.f32 %v3287, %v3479
        %3481 = vmatprep.mubr.bf16.mxu0 %v600
        %3482 = vmatmul.mubr.bf16.gmra.mrb[0].mxu0 %v599
        %v3483 = vpop.f32.mrb[0].mxu0
        %v3484 = vadd.f32 %v3291, %v3483
        %v3485 = vpop.f32.mrb[0].mxu0
        %v3486 = vadd.f32 %v3293, %v3485
        %v3487 = vpop.f32.mrb[0].mxu0
        %v3488 = vadd.f32 %v3295, %v3487
        %v3489 = vpop.f32.mrb[0].mxu0
        %v3490 = vadd.f32 %v3297, %v3489
        %3491 = vmatprep.mubr.bf16.mxu0 %v608
        %3492 = vmatmul.mubr.bf16.gmra.mrb[0].mxu0 %v607
        %v3493 = vpop.f32.mrb[0].mxu0
        %v3494 = vadd.f32 %v3301, %v3493
        %v3495 = vpop.f32.mrb[0].mxu0
        %v3496 = vadd.f32 %v3303, %v3495
        %v3497 = vpop.f32.mrb[0].mxu0
        %v3498 = vadd.f32 %v3305, %v3497
        %v3499 = vpop.f32.mrb[0].mxu0
        %v3500 = vadd.f32 %v3307, %v3499
        %3501 = vmatprep.mubr.bf16.mxu0 %v616
        %3502 = vmatmul.mubr.bf16.gmra.mrb[0].mxu0 %v615
        %v3503 = vpop.f32.mrb[0].mxu0
        %v3504 = vadd.f32 %v3311, %v3503
        %v3505 = vpop.f32.mrb[0].mxu0
        %v3506 = vadd.f32 %v3313, %v3505
        %v3507 = vpop.f32.mrb[0].mxu0
        %v3508 = vadd.f32 %v3315, %v3507
        %v3509 = vpop.f32.mrb[0].mxu0
        %v3510 = vadd.f32 %v3317, %v3509
        %3511 = vmatprep.mubr.bf16.mxu0 %v624
        %3512 = vmatmul.mubr.bf16.gmra.mrb[0].mxu0 %v623
        %v3513 = vpop.f32.mrb[0].mxu0
        %v3514 = vadd.f32 %v3321, %v3513
        %v3515 = vpop.f32.mrb[0].mxu0
        %v3516 = vadd.f32 %v3323, %v3515
        %v3517 = vpop.f32.mrb[0].mxu0
        %v3518 = vadd.f32 %v3325, %v3517
        %v3519 = vpop.f32.mrb[0].mxu0
        %v3520 = vadd.f32 %v3327, %v3519
        %3521 = vmatprep.mubr.bf16.mxu0 %v632
        %3522 = vmatmul.mubr.bf16.gmra.mrb[0].mxu0 %v631
        %v3523 = vpop.f32.mrb[0].mxu0
        %v3524 = vadd.f32 %v3331, %v3523
        %v3525 = vpop.f32.mrb[0].mxu0
        %v3526 = vadd.f32 %v3333, %v3525
        %v3527 = vpop.f32.mrb[0].mxu0
        %v3528 = vadd.f32 %v3335, %v3527
        %v3529 = vpop.f32.mrb[0].mxu0
        %v3530 = vadd.f32 %v3337, %v3529
        %3531 = vmatprep.mubr.bf16.mxu0 %v640
        %3532 = vmatmul.mubr.bf16.gmra.mrb[0].mxu0 %v639
        %v3533 = vpop.f32.mrb[0].mxu0
        %v3534 = vadd.f32 %v3341, %v3533
        %v3535 = vpop.f32.mrb[0].mxu0
        %v3536 = vadd.f32 %v3343, %v3535
        %v3537 = vpop.f32.mrb[0].mxu0
        %v3538 = vadd.f32 %v3345, %v3537
        %v3539 = vpop.f32.mrb[0].mxu0
        %v3540 = vadd.f32 %v3347, %v3539
        %3541 = vmatprep.mubr.bf16.mxu0 %v648
        %3542 = vmatmul.mubr.bf16.gmra.mrb[0].mxu0 %v647
        %v3543 = vpop.f32.mrb[0].mxu0
        %v3544 = vadd.f32 %v3351, %v3543
        %v3545 = vpop.f32.mrb[0].mxu0
        %v3546 = vadd.f32 %v3353, %v3545
        %v3547 = vpop.f32.mrb[0].mxu0
        %v3548 = vadd.f32 %v3355, %v3547
        %v3549 = vpop.f32.mrb[0].mxu0
        %v3550 = vadd.f32 %v3357, %v3549
        %3551 = vmatprep.mubr.bf16.mxu0 %v656
        %3552 = vmatmul.mubr.bf16.gmra.mrb[0].mxu0 %v655
        %v3553 = vpop.f32.mrb[0].mxu0
        %v3554 = vadd.f32 %v3361, %v3553
        %v3555 = vpop.f32.mrb[0].mxu0
        %v3556 = vadd.f32 %v3363, %v3555
        %v3557 = vpop.f32.mrb[0].mxu0
        %v3558 = vadd.f32 %v3365, %v3557
        %v3559 = vpop.f32.mrb[0].mxu0
        %v3560 = vadd.f32 %v3367, %v3559
        %3561 = vmatprep.mubr.bf16.mxu0 %v664
        %3562 = vmatmul.mubr.bf16.gmra.mrb[0].mxu0 %v663
        %v3563 = vpop.f32.mrb[0].mxu0
        %v3564 = vadd.f32 %v3371, %v3563
        %v3565 = vpop.f32.mrb[0].mxu0
        %v3566 = vadd.f32 %v3373, %v3565
        %v3567 = vpop.f32.mrb[0].mxu0
        %v3568 = vadd.f32 %v3375, %v3567
        %v3569 = vpop.f32.mrb[0].mxu0
        %v3570 = vadd.f32 %v3377, %v3569
        %3571 = vmatprep.mubr.bf16.mxu0 %v672
        %3572 = vmatmul.mubr.bf16.gmra.mrb[0].mxu0 %v671
        %v3573 = vpop.f32.mrb[0].mxu0
        %v3574 = vadd.f32 %v3381, %v3573
        %v3575 = vpop.f32.mrb[0].mxu0
        %v3576 = vadd.f32 %v3383, %v3575
        %v3577 = vpop.f32.mrb[0].mxu0
        %v3578 = vadd.f32 %v3385, %v3577
        %v3579 = vpop.f32.mrb[0].mxu0
        %v3580 = vadd.f32 %v3387, %v3579
        %3581 = vmatprep.mubr.bf16.mxu0 %v680
        %3582 = vmatmul.mubr.bf16.gmra.mrb[0].mxu0 %v679
        %v3583 = vpop.f32.mrb[0].mxu0
        %v3584 = vadd.f32 %v3391, %v3583
        %v3585 = vpop.f32.mrb[0].mxu0
        %v3586 = vadd.f32 %v3393, %v3585
        %v3587 = vpop.f32.mrb[0].mxu0
        %v3588 = vadd.f32 %v3395, %v3587
        %v3589 = vpop.f32.mrb[0].mxu0
        %v3590 = vadd.f32 %v3397, %v3589
        %3591 = vdwg.mxu0
        %3592 = vmatprep.subr.bf16.mxu0 %v1924
        %3593 = vmatpush1.bf16.msra.mxu0 %v1923
        %3594 = vmatprep.subr.bf16.mxu0 %v1928
        %3595 = vmatpush1.bf16.msra.mxu0 %v1927
        %3596 = vmatprep.subr.bf16.mxu0 %v1932
        %3597 = vmatpush1.bf16.msra.mxu0 %v1931
        %3598 = vmatprep.subr.bf16.mxu0 %v1936
        %3599 = vmatpush1.bf16.msra.mxu0 %v1935
        %3600 = vmatprep.subr.bf16.mxu0 %v1940
        %3601 = vmatpush1.bf16.msra.mxu0 %v1939
        %3602 = vmatprep.subr.bf16.mxu0 %v1944
        %3603 = vmatpush1.bf16.msra.mxu0 %v1943
        %3604 = vmatprep.subr.bf16.mxu0 %v1948
        %3605 = vmatpush1.bf16.msra.mxu0 %v1947
        %3606 = vmatprep.subr.bf16.mxu0 %v1952
        %3607 = vmatpush1.bf16.msra.mxu0 %v1951
        %3608 = vmatprep.subr.bf16.mxu0 %v1956
        %3609 = vmatpush1.bf16.msra.mxu0 %v1955
        %3610 = vmatprep.subr.bf16.mxu0 %v1960
        %3611 = vmatpush1.bf16.msra.mxu0 %v1959
        %3612 = vmatprep.subr.bf16.mxu0 %v1964
        %3613 = vmatpush1.bf16.msra.mxu0 %v1963
        %3614 = vmatprep.subr.bf16.mxu0 %v1968
        %3615 = vmatpush1.bf16.msra.mxu0 %v1967
        %3616 = vmatprep.subr.bf16.mxu0 %v1972
        %3617 = vmatpush1.bf16.msra.mxu0 %v1971
        %3618 = vmatprep.subr.bf16.mxu0 %v1976
        %3619 = vmatpush1.bf16.msra.mxu0 %v1975
        %3620 = vmatprep.subr.bf16.mxu0 %v1980
        %3621 = vmatpush1.bf16.msra.mxu0 %v1979
        %3622 = vmatprep.subr.bf16.mxu0 %v1984
        %3623 = vmatpush1.bf16.msra.mxu0 %v1983
        %3624 = vmatprep.mubr.bf16.mxu0 %v562
        %3625 = vmatmul.mubr.bf16.gmra.mrb[0].mxu0 %v561
        %v3626 = vpop.f32.mrb[0].mxu0
        %v3627 = vadd.f32 %v3434, %v3626
        %v3628 = vpop.f32.mrb[0].mxu0
        %v3629 = vadd.f32 %v3436, %v3628
        %v3630 = vpop.f32.mrb[0].mxu0
        %v3631 = vadd.f32 %v3438, %v3630
        %v3632 = vpop.f32.mrb[0].mxu0
        %v3633 = vadd.f32 %v3440, %v3632
        %3634 = vmatprep.mubr.bf16.mxu0 %v570
        %3635 = vmatmul.mubr.bf16.gmra.mrb[0].mxu0 %v569
        %v3636 = vpop.f32.mrb[0].mxu0
        %v3637 = vadd.f32 %v3444, %v3636
        %v3638 = vpop.f32.mrb[0].mxu0
        %v3639 = vadd.f32 %v3446, %v3638
        %v3640 = vpop.f32.mrb[0].mxu0
        %v3641 = vadd.f32 %v3448, %v3640
        %v3642 = vpop.f32.mrb[0].mxu0
        %v3643 = vadd.f32 %v3450, %v3642
        %3644 = vmatprep.mubr.bf16.mxu0 %v578
        %3645 = vmatmul.mubr.bf16.gmra.mrb[0].mxu0 %v577
        %v3646 = vpop.f32.mrb[0].mxu0
        %v3647 = vadd.f32 %v3454, %v3646
        %v3648 = vpop.f32.mrb[0].mxu0
        %v3649 = vadd.f32 %v3456, %v3648
        %v3650 = vpop.f32.mrb[0].mxu0
        %v3651 = vadd.f32 %v3458, %v3650
        %v3652 = vpop.f32.mrb[0].mxu0
        %v3653 = vadd.f32 %v3460, %v3652
        %3654 = vmatprep.mubr.bf16.mxu0 %v586
        %3655 = vmatmul.mubr.bf16.gmra.mrb[0].mxu0 %v585
        %v3656 = vpop.f32.mrb[0].mxu0
        %v3657 = vadd.f32 %v3464, %v3656
        %v3658 = vpop.f32.mrb[0].mxu0
        %v3659 = vadd.f32 %v3466, %v3658
        %v3660 = vpop.f32.mrb[0].mxu0
        %v3661 = vadd.f32 %v3468, %v3660
        %v3662 = vpop.f32.mrb[0].mxu0
        %v3663 = vadd.f32 %v3470, %v3662
        %3664 = vmatprep.mubr.bf16.mxu0 %v594
        %3665 = vmatmul.mubr.bf16.gmra.mrb[0].mxu0 %v593
        %v3666 = vpop.f32.mrb[0].mxu0
        %v3667 = vadd.f32 %v3474, %v3666
        %v3668 = vpop.f32.mrb[0].mxu0
        %v3669 = vadd.f32 %v3476, %v3668
        %v3670 = vpop.f32.mrb[0].mxu0
        %v3671 = vadd.f32 %v3478, %v3670
        %v3672 = vpop.f32.mrb[0].mxu0
        %v3673 = vadd.f32 %v3480, %v3672
        %3674 = vmatprep.mubr.bf16.mxu0 %v602
        %3675 = vmatmul.mubr.bf16.gmra.mrb[0].mxu0 %v601
        %v3676 = vpop.f32.mrb[0].mxu0
        %v3677 = vadd.f32 %v3484, %v3676
        %v3678 = vpop.f32.mrb[0].mxu0
        %v3679 = vadd.f32 %v3486, %v3678
        %v3680 = vpop.f32.mrb[0].mxu0
        %v3681 = vadd.f32 %v3488, %v3680
        %v3682 = vpop.f32.mrb[0].mxu0
        %v3683 = vadd.f32 %v3490, %v3682
        %3684 = vmatprep.mubr.bf16.mxu0 %v610
        %3685 = vmatmul.mubr.bf16.gmra.mrb[0].mxu0 %v609
        %v3686 = vpop.f32.mrb[0].mxu0
        %v3687 = vadd.f32 %v3494, %v3686
        %v3688 = vpop.f32.mrb[0].mxu0
        %v3689 = vadd.f32 %v3496, %v3688
        %v3690 = vpop.f32.mrb[0].mxu0
        %v3691 = vadd.f32 %v3498, %v3690
        %v3692 = vpop.f32.mrb[0].mxu0
        %v3693 = vadd.f32 %v3500, %v3692
        %3694 = vmatprep.mubr.bf16.mxu0 %v618
        %3695 = vmatmul.mubr.bf16.gmra.mrb[0].mxu0 %v617
        %v3696 = vpop.f32.mrb[0].mxu0
        %v3697 = vadd.f32 %v3504, %v3696
        %v3698 = vpop.f32.mrb[0].mxu0
        %v3699 = vadd.f32 %v3506, %v3698
        %v3700 = vpop.f32.mrb[0].mxu0
        %v3701 = vadd.f32 %v3508, %v3700
        %v3702 = vpop.f32.mrb[0].mxu0
        %v3703 = vadd.f32 %v3510, %v3702
        %3704 = vmatprep.mubr.bf16.mxu0 %v626
        %3705 = vmatmul.mubr.bf16.gmra.mrb[0].mxu0 %v625
        %v3706 = vpop.f32.mrb[0].mxu0
        %v3707 = vadd.f32 %v3514, %v3706
        %v3708 = vpop.f32.mrb[0].mxu0
        %v3709 = vadd.f32 %v3516, %v3708
        %v3710 = vpop.f32.mrb[0].mxu0
        %v3711 = vadd.f32 %v3518, %v3710
        %v3712 = vpop.f32.mrb[0].mxu0
        %v3713 = vadd.f32 %v3520, %v3712
        %3714 = vmatprep.mubr.bf16.mxu0 %v634
        %3715 = vmatmul.mubr.bf16.gmra.mrb[0].mxu0 %v633
        %v3716 = vpop.f32.mrb[0].mxu0
        %v3717 = vadd.f32 %v3524, %v3716
        %v3718 = vpop.f32.mrb[0].mxu0
        %v3719 = vadd.f32 %v3526, %v3718
        %v3720 = vpop.f32.mrb[0].mxu0
        %v3721 = vadd.f32 %v3528, %v3720
        %v3722 = vpop.f32.mrb[0].mxu0
        %v3723 = vadd.f32 %v3530, %v3722
        %3724 = vmatprep.mubr.bf16.mxu0 %v642
        %3725 = vmatmul.mubr.bf16.gmra.mrb[0].mxu0 %v641
        %v3726 = vpop.f32.mrb[0].mxu0
        %v3727 = vadd.f32 %v3534, %v3726
        %v3728 = vpop.f32.mrb[0].mxu0
        %v3729 = vadd.f32 %v3536, %v3728
        %v3730 = vpop.f32.mrb[0].mxu0
        %v3731 = vadd.f32 %v3538, %v3730
        %v3732 = vpop.f32.mrb[0].mxu0
        %v3733 = vadd.f32 %v3540, %v3732
        %3734 = vmatprep.mubr.bf16.mxu0 %v650
        %3735 = vmatmul.mubr.bf16.gmra.mrb[0].mxu0 %v649
        %v3736 = vpop.f32.mrb[0].mxu0
        %v3737 = vadd.f32 %v3544, %v3736
        %v3738 = vpop.f32.mrb[0].mxu0
        %v3739 = vadd.f32 %v3546, %v3738
        %v3740 = vpop.f32.mrb[0].mxu0
        %v3741 = vadd.f32 %v3548, %v3740
        %v3742 = vpop.f32.mrb[0].mxu0
        %v3743 = vadd.f32 %v3550, %v3742
        %3744 = vmatprep.mubr.bf16.mxu0 %v658
        %3745 = vmatmul.mubr.bf16.gmra.mrb[0].mxu0 %v657
        %v3746 = vpop.f32.mrb[0].mxu0
        %v3747 = vadd.f32 %v3554, %v3746
        %v3748 = vpop.f32.mrb[0].mxu0
        %v3749 = vadd.f32 %v3556, %v3748
        %v3750 = vpop.f32.mrb[0].mxu0
        %v3751 = vadd.f32 %v3558, %v3750
        %v3752 = vpop.f32.mrb[0].mxu0
        %v3753 = vadd.f32 %v3560, %v3752
        %3754 = vmatprep.mubr.bf16.mxu0 %v666
        %3755 = vmatmul.mubr.bf16.gmra.mrb[0].mxu0 %v665
        %v3756 = vpop.f32.mrb[0].mxu0
        %v3757 = vadd.f32 %v3564, %v3756
        %v3758 = vpop.f32.mrb[0].mxu0
        %v3759 = vadd.f32 %v3566, %v3758
        %v3760 = vpop.f32.mrb[0].mxu0
        %v3761 = vadd.f32 %v3568, %v3760
        %v3762 = vpop.f32.mrb[0].mxu0
        %v3763 = vadd.f32 %v3570, %v3762
        %3764 = vmatprep.mubr.bf16.mxu0 %v674
        %3765 = vmatmul.mubr.bf16.gmra.mrb[0].mxu0 %v673
        %v3766 = vpop.f32.mrb[0].mxu0
        %v3767 = vadd.f32 %v3574, %v3766
        %v3768 = vpop.f32.mrb[0].mxu0
        %v3769 = vadd.f32 %v3576, %v3768
        %v3770 = vpop.f32.mrb[0].mxu0
        %v3771 = vadd.f32 %v3578, %v3770
        %v3772 = vpop.f32.mrb[0].mxu0
        %v3773 = vadd.f32 %v3580, %v3772
        %3774 = vmatprep.mubr.bf16.mxu0 %v682
        %3775 = vmatmul.mubr.bf16.gmra.mrb[0].mxu0 %v681
        %v3776 = vpop.f32.mrb[0].mxu0
        %v3777 = vadd.f32 %v3584, %v3776
        %v3778 = vpop.f32.mrb[0].mxu0
        %v3779 = vadd.f32 %v3586, %v3778
        %v3780 = vpop.f32.mrb[0].mxu0
        %v3781 = vadd.f32 %v3588, %v3780
        %v3782 = vpop.f32.mrb[0].mxu0
        %v3783 = vadd.f32 %v3590, %v3782
        %3784 = vdwg.mxu0
        %v3785 = vpack.c.bf16 %v2859, %v2855
        %v3786 = vpack.c.bf16 %v2861, %v2857
        %v3787 = vpack.c.bf16 %v3631, %v3627
        %v3788 = vpack.c.bf16 %v3633, %v3629
        %v3789 = vpack.c.bf16 %v2869, %v2865
        %v3790 = vpack.c.bf16 %v2871, %v2867
        %v3791 = vpack.c.bf16 %v3641, %v3637
        %v3792 = vpack.c.bf16 %v3643, %v3639
        %v3793 = vpack.c.bf16 %v2879, %v2875
        %v3794 = vpack.c.bf16 %v2881, %v2877
        %v3795 = vpack.c.bf16 %v3651, %v3647
        %v3796 = vpack.c.bf16 %v3653, %v3649
        %v3797 = vpack.c.bf16 %v2889, %v2885
        %v3798 = vpack.c.bf16 %v2891, %v2887
        %v3799 = vpack.c.bf16 %v3661, %v3657
        %v3800 = vpack.c.bf16 %v3663, %v3659
        %v3801 = vpack.c.bf16 %v2899, %v2895
        %v3802 = vpack.c.bf16 %v2901, %v2897
        %v3803 = vpack.c.bf16 %v3671, %v3667
        %v3804 = vpack.c.bf16 %v3673, %v3669
        %v3805 = vpack.c.bf16 %v2909, %v2905
        %v3806 = vpack.c.bf16 %v2911, %v2907
        %v3807 = vpack.c.bf16 %v3681, %v3677
        %v3808 = vpack.c.bf16 %v3683, %v3679
        %v3809 = vpack.c.bf16 %v2919, %v2915
        %v3810 = vpack.c.bf16 %v2921, %v2917
        %v3811 = vpack.c.bf16 %v3691, %v3687
        %v3812 = vpack.c.bf16 %v3693, %v3689
        %v3813 = vpack.c.bf16 %v2929, %v2925
        %v3814 = vpack.c.bf16 %v2931, %v2927
        %v3815 = vpack.c.bf16 %v3701, %v3697
        %v3816 = vpack.c.bf16 %v3703, %v3699
        %v3817 = vpack.c.bf16 %v2939, %v2935
        %v3818 = vpack.c.bf16 %v2941, %v2937
        %v3819 = vpack.c.bf16 %v3711, %v3707
        %v3820 = vpack.c.bf16 %v3713, %v3709
        %v3821 = vpack.c.bf16 %v2949, %v2945
        %v3822 = vpack.c.bf16 %v2951, %v2947
        %v3823 = vpack.c.bf16 %v3721, %v3717
        %v3824 = vpack.c.bf16 %v3723, %v3719
        %v3825 = vpack.c.bf16 %v2959, %v2955
        %v3826 = vpack.c.bf16 %v2961, %v2957
        %v3827 = vpack.c.bf16 %v3731, %v3727
        %v3828 = vpack.c.bf16 %v3733, %v3729
        %v3829 = vpack.c.bf16 %v2969, %v2965
        %v3830 = vpack.c.bf16 %v2971, %v2967
        %v3831 = vpack.c.bf16 %v3741, %v3737
        %v3832 = vpack.c.bf16 %v3743, %v3739
        %v3833 = vpack.c.bf16 %v2979, %v2975
        %v3834 = vpack.c.bf16 %v2981, %v2977
        %v3835 = vpack.c.bf16 %v3751, %v3747
        %v3836 = vpack.c.bf16 %v3753, %v3749
        %v3837 = vpack.c.bf16 %v2989, %v2985
        %v3838 = vpack.c.bf16 %v2991, %v2987
        %v3839 = vpack.c.bf16 %v3761, %v3757
        %v3840 = vpack.c.bf16 %v3763, %v3759
        %v3841 = vpack.c.bf16 %v2999, %v2995
        %v3842 = vpack.c.bf16 %v3001, %v2997
        %v3843 = vpack.c.bf16 %v3771, %v3767
        %v3844 = vpack.c.bf16 %v3773, %v3769
        %v3845 = vpack.c.bf16 %v3009, %v3005
        %v3846 = vpack.c.bf16 %v3011, %v3007
        %v3847 = vpack.c.bf16 %v3781, %v3777
        %v3848 = vpack.c.bf16 %v3783, %v3779
        %v3849 = vtanh.bf16.pop %v3785
        %v3850 = vtanh.bf16.pop %v3786
        %v3851 = vtanh.bf16.pop %v3789
        %v3852 = vtanh.bf16.pop %v3790
        %v3853 = vtanh.bf16.pop %v3793
        %v3854 = vtanh.bf16.pop %v3794
        %v3855 = vtanh.bf16.pop %v3797
        %v3856 = vtanh.bf16.pop %v3798
        %v3857 = vtanh.bf16.pop %v3801
        %v3858 = vtanh.bf16.pop %v3802
        %v3859 = vtanh.bf16.pop %v3805
        %v3860 = vtanh.bf16.pop %v3806
        %v3861 = vtanh.bf16.pop %v3809
        %v3862 = vtanh.bf16.pop %v3810
        %v3863 = vtanh.bf16.pop %v3813
        %v3864 = vtanh.bf16.pop %v3814
        %v3865 = vtanh.bf16.pop %v3817
        %v3866 = vtanh.bf16.pop %v3818
        %v3867 = vtanh.bf16.pop %v3821
        %v3868 = vtanh.bf16.pop %v3822
        %v3869 = vtanh.bf16.pop %v3825
        %v3870 = vtanh.bf16.pop %v3826
        %v3871 = vtanh.bf16.pop %v3829
        %v3872 = vtanh.bf16.pop %v3830
        %v3873 = vtanh.bf16.pop %v3833
        %v3874 = vtanh.bf16.pop %v3834
        %v3875 = vtanh.bf16.pop %v3837
        %v3876 = vtanh.bf16.pop %v3838
        %v3877 = vtanh.bf16.pop %v3841
        %v3878 = vtanh.bf16.pop %v3842
        %v3879 = vtanh.bf16.pop %v3845
        %v3880 = vtanh.bf16.pop %v3846
        %v3881 = vxor.u32 %v3787, 2147516416
        %v3882 = vxor.u32 %v3788, 2147516416
        %v3883 = vxor.u32 %v3791, 2147516416
        %v3884 = vxor.u32 %v3792, 2147516416
        %v3885 = vxor.u32 %v3795, 2147516416
        %v3886 = vxor.u32 %v3796, 2147516416
        %v3887 = vxor.u32 %v3799, 2147516416
        %v3888 = vxor.u32 %v3800, 2147516416
        %v3889 = vxor.u32 %v3803, 2147516416
        %v3890 = vxor.u32 %v3804, 2147516416
        %v3891 = vxor.u32 %v3807, 2147516416
        %v3892 = vxor.u32 %v3808, 2147516416
        %v3893 = vxor.u32 %v3811, 2147516416
        %v3894 = vxor.u32 %v3812, 2147516416
        %v3895 = vxor.u32 %v3815, 2147516416
        %v3896 = vxor.u32 %v3816, 2147516416
        %v3897 = vxor.u32 %v3819, 2147516416
        %v3898 = vxor.u32 %v3820, 2147516416
        %v3899 = vxor.u32 %v3823, 2147516416
        %v3900 = vxor.u32 %v3824, 2147516416
        %v3901 = vxor.u32 %v3827, 2147516416
        %v3902 = vxor.u32 %v3828, 2147516416
        %v3903 = vxor.u32 %v3831, 2147516416
        %v3904 = vxor.u32 %v3832, 2147516416
        %v3905 = vxor.u32 %v3835, 2147516416
        %v3906 = vxor.u32 %v3836, 2147516416
        %v3907 = vxor.u32 %v3839, 2147516416
        %v3908 = vxor.u32 %v3840, 2147516416
        %v3909 = vxor.u32 %v3843, 2147516416
        %v3910 = vxor.u32 %v3844, 2147516416
        %v3911 = vxor.u32 %v3847, 2147516416
        %v3912 = vxor.u32 %v3848, 2147516416
        %v3914 = vmul.bf16 %v3881, 1069105081
        %v3915 = vpow.bf16.pop %v3914
        %v3917 = vmul.bf16 %v3882, 1069105081
        %v3918 = vpow.bf16.pop %v3917
        %v3920 = vmul.bf16 %v3883, 1069105081
        %v3921 = vpow.bf16.pop %v3920
        %v3923 = vmul.bf16 %v3884, 1069105081
        %v3924 = vpow.bf16.pop %v3923
        %v3926 = vmul.bf16 %v3885, 1069105081
        %v3927 = vpow.bf16.pop %v3926
        %v3929 = vmul.bf16 %v3886, 1069105081
        %v3930 = vpow.bf16.pop %v3929
        %v3932 = vmul.bf16 %v3887, 1069105081
        %v3933 = vpow.bf16.pop %v3932
        %v3935 = vmul.bf16 %v3888, 1069105081
        %v3936 = vpow.bf16.pop %v3935
        %v3938 = vmul.bf16 %v3889, 1069105081
        %v3939 = vpow.bf16.pop %v3938
        %v3941 = vmul.bf16 %v3890, 1069105081
        %v3942 = vpow.bf16.pop %v3941
        %v3944 = vmul.bf16 %v3891, 1069105081
        %v3945 = vpow.bf16.pop %v3944
        %v3947 = vmul.bf16 %v3892, 1069105081
        %v3948 = vpow.bf16.pop %v3947
        %v3950 = vmul.bf16 %v3893, 1069105081
        %v3951 = vpow.bf16.pop %v3950
        %v3953 = vmul.bf16 %v3894, 1069105081
        %v3954 = vpow.bf16.pop %v3953
        %v3956 = vmul.bf16 %v3895, 1069105081
        %v3957 = vpow.bf16.pop %v3956
        %v3959 = vmul.bf16 %v3896, 1069105081
        %v3960 = vpow.bf16.pop %v3959
        %v3962 = vmul.bf16 %v3897, 1069105081
        %v3963 = vpow.bf16.pop %v3962
        %v3965 = vmul.bf16 %v3898, 1069105081
        %v3966 = vpow.bf16.pop %v3965
        %v3968 = vmul.bf16 %v3899, 1069105081
        %v3969 = vpow.bf16.pop %v3968
        %v3971 = vmul.bf16 %v3900, 1069105081
        %v3972 = vpow.bf16.pop %v3971
        %v3974 = vmul.bf16 %v3901, 1069105081
        %v3975 = vpow.bf16.pop %v3974
        %v3977 = vmul.bf16 %v3902, 1069105081
        %v3978 = vpow.bf16.pop %v3977
        %v3980 = vmul.bf16 %v3903, 1069105081
        %v3981 = vpow.bf16.pop %v3980
        %v3983 = vmul.bf16 %v3904, 1069105081
        %v3984 = vpow.bf16.pop %v3983
        %v3986 = vmul.bf16 %v3905, 1069105081
        %v3987 = vpow.bf16.pop %v3986
        %v3989 = vmul.bf16 %v3906, 1069105081
        %v3990 = vpow.bf16.pop %v3989
        %v3992 = vmul.bf16 %v3907, 1069105081
        %v3993 = vpow.bf16.pop %v3992
        %v3995 = vmul.bf16 %v3908, 1069105081
        %v3996 = vpow.bf16.pop %v3995
        %v3998 = vmul.bf16 %v3909, 1069105081
        %v3999 = vpow.bf16.pop %v3998
        %v4001 = vmul.bf16 %v3910, 1069105081
        %v4002 = vpow.bf16.pop %v4001
        %v4004 = vmul.bf16 %v3911, 1069105081
        %v4005 = vpow.bf16.pop %v4004
        %v4007 = vmul.bf16 %v3912, 1069105081
        %v4008 = vpow.bf16.pop %v4007
        %v4009 = vadd.bf16 %v3915, 1065369472
        %v4010 = vadd.bf16 %v3918, 1065369472
        %v4011 = vadd.bf16 %v3921, 1065369472
        %v4012 = vadd.bf16 %v3924, 1065369472
        %v4013 = vadd.bf16 %v3927, 1065369472
        %v4014 = vadd.bf16 %v3930, 1065369472
        %v4015 = vadd.bf16 %v3933, 1065369472
        %v4016 = vadd.bf16 %v3936, 1065369472
        %v4017 = vadd.bf16 %v3939, 1065369472
        %v4018 = vadd.bf16 %v3942, 1065369472
        %v4019 = vadd.bf16 %v3945, 1065369472
        %v4020 = vadd.bf16 %v3948, 1065369472
        %v4021 = vadd.bf16 %v3951, 1065369472
        %v4022 = vadd.bf16 %v3954, 1065369472
        %v4023 = vadd.bf16 %v3957, 1065369472
        %v4024 = vadd.bf16 %v3960, 1065369472
        %v4025 = vadd.bf16 %v3963, 1065369472
        %v4026 = vadd.bf16 %v3966, 1065369472
        %v4027 = vadd.bf16 %v3969, 1065369472
        %v4028 = vadd.bf16 %v3972, 1065369472
        %v4029 = vadd.bf16 %v3975, 1065369472
        %v4030 = vadd.bf16 %v3978, 1065369472
        %v4031 = vadd.bf16 %v3981, 1065369472
        %v4032 = vadd.bf16 %v3984, 1065369472
        %v4033 = vadd.bf16 %v3987, 1065369472
        %v4034 = vadd.bf16 %v3990, 1065369472
        %v4035 = vadd.bf16 %v3993, 1065369472
        %v4036 = vadd.bf16 %v3996, 1065369472
        %v4037 = vadd.bf16 %v3999, 1065369472
        %v4038 = vadd.bf16 %v4002, 1065369472
        %v4039 = vadd.bf16 %v4005, 1065369472
        %v4040 = vadd.bf16 %v4008, 1065369472
        %v4041 = vrcp.bf16.pop %v4009
        %v4042 = vmul.bf16 1065369472, %v4041
        %v4043 = vrcp.bf16.pop %v4010
        %v4044 = vmul.bf16 1065369472, %v4043
        %v4045 = vrcp.bf16.pop %v4011
        %v4046 = vmul.bf16 1065369472, %v4045
        %v4047 = vrcp.bf16.pop %v4012
        %v4048 = vmul.bf16 1065369472, %v4047
        %v4049 = vrcp.bf16.pop %v4013
        %v4050 = vmul.bf16 1065369472, %v4049
        %v4051 = vrcp.bf16.pop %v4014
        %v4052 = vmul.bf16 1065369472, %v4051
        %v4053 = vrcp.bf16.pop %v4015
        %v4054 = vmul.bf16 1065369472, %v4053
        %v4055 = vrcp.bf16.pop %v4016
        %v4056 = vmul.bf16 1065369472, %v4055
        %v4057 = vrcp.bf16.pop %v4017
        %v4058 = vmul.bf16 1065369472, %v4057
        %v4059 = vrcp.bf16.pop %v4018
        %v4060 = vmul.bf16 1065369472, %v4059
        %v4061 = vrcp.bf16.pop %v4019
        %v4062 = vmul.bf16 1065369472, %v4061
        %v4063 = vrcp.bf16.pop %v4020
        %v4064 = vmul.bf16 1065369472, %v4063
        %v4065 = vrcp.bf16.pop %v4021
        %v4066 = vmul.bf16 1065369472, %v4065
        %v4067 = vrcp.bf16.pop %v4022
        %v4068 = vmul.bf16 1065369472, %v4067
        %v4069 = vrcp.bf16.pop %v4023
        %v4070 = vmul.bf16 1065369472, %v4069
        %v4071 = vrcp.bf16.pop %v4024
        %v4072 = vmul.bf16 1065369472, %v4071
        %v4073 = vrcp.bf16.pop %v4025
        %v4074 = vmul.bf16 1065369472, %v4073
        %v4075 = vrcp.bf16.pop %v4026
        %v4076 = vmul.bf16 1065369472, %v4075
        %v4077 = vrcp.bf16.pop %v4027
        %v4078 = vmul.bf16 1065369472, %v4077
        %v4079 = vrcp.bf16.pop %v4028
        %v4080 = vmul.bf16 1065369472, %v4079
        %v4081 = vrcp.bf16.pop %v4029
        %v4082 = vmul.bf16 1065369472, %v4081
        %v4083 = vrcp.bf16.pop %v4030
        %v4084 = vmul.bf16 1065369472, %v4083
        %v4085 = vrcp.bf16.pop %v4031
        %v4086 = vmul.bf16 1065369472, %v4085
        %v4087 = vrcp.bf16.pop %v4032
        %v4088 = vmul.bf16 1065369472, %v4087
        %v4089 = vrcp.bf16.pop %v4033
        %v4090 = vmul.bf16 1065369472, %v4089
        %v4091 = vrcp.bf16.pop %v4034
        %v4092 = vmul.bf16 1065369472, %v4091
        %v4093 = vrcp.bf16.pop %v4035
        %v4094 = vmul.bf16 1065369472, %v4093
        %v4095 = vrcp.bf16.pop %v4036
        %v4096 = vmul.bf16 1065369472, %v4095
        %v4097 = vrcp.bf16.pop %v4037
        %v4098 = vmul.bf16 1065369472, %v4097
        %v4099 = vrcp.bf16.pop %v4038
        %v4100 = vmul.bf16 1065369472, %v4099
        %v4101 = vrcp.bf16.pop %v4039
        %v4102 = vmul.bf16 1065369472, %v4101
        %v4103 = vrcp.bf16.pop %v4040
        %v4104 = vmul.bf16 1065369472, %v4103
        %v4105 = vmul.bf16 %v3849, %v4042
        %v4106 = vmul.bf16 %v3850, %v4044
        %v4107 = vmul.bf16 %v3851, %v4046
        %v4108 = vmul.bf16 %v3852, %v4048
        %v4109 = vmul.bf16 %v3853, %v4050
        %v4110 = vmul.bf16 %v3854, %v4052
        %v4111 = vmul.bf16 %v3855, %v4054
        %v4112 = vmul.bf16 %v3856, %v4056
        %v4113 = vmul.bf16 %v3857, %v4058
        %v4114 = vmul.bf16 %v3858, %v4060
        %v4115 = vmul.bf16 %v3859, %v4062
        %v4116 = vmul.bf16 %v3860, %v4064
        %v4117 = vmul.bf16 %v3861, %v4066
        %v4118 = vmul.bf16 %v3862, %v4068
        %v4119 = vmul.bf16 %v3863, %v4070
        %v4120 = vmul.bf16 %v3864, %v4072
        %v4121 = vmul.bf16 %v3865, %v4074
        %v4122 = vmul.bf16 %v3866, %v4076
        %v4123 = vmul.bf16 %v3867, %v4078
        %v4124 = vmul.bf16 %v3868, %v4080
        %v4125 = vmul.bf16 %v3869, %v4082
        %v4126 = vmul.bf16 %v3870, %v4084
        %v4127 = vmul.bf16 %v3871, %v4086
        %v4128 = vmul.bf16 %v3872, %v4088
        %v4129 = vmul.bf16 %v3873, %v4090
        %v4130 = vmul.bf16 %v3874, %v4092
        %v4131 = vmul.bf16 %v3875, %v4094
        %v4132 = vmul.bf16 %v3876, %v4096
        %v4133 = vmul.bf16 %v3877, %v4098
        %v4134 = vmul.bf16 %v3878, %v4100
        %v4135 = vmul.bf16 %v3879, %v4102
        %v4136 = vmul.bf16 %v3880, %v4104
        %v4137 = vld [vmem:[#allocation8] sm:$0xff]
        %v4138 = vld [vmem:[%s4] sm:$0xff]
        %4140 = vset.pattern.permute.xlu0 0
        %4141 = vperm.xlu0 %4140, %v4138
        %v4142 = vpop.permute.xlu0 %4141
        %v4145 = vunpack.c.l.b16 %v4137
        %v4146 = vunpack.c.h.b16 %v4137
        %v4147 = vpack.c.b16 %v4145, %v4145
        %v4148 = vpack.c.b16 %v4146, %v4146
        %4151 = vmatprep.subr.bf16.mxu0 %v4106
        %4152 = vmatpush1.bf16.xpose.msra.mxu0 %v4105
        %4153 = vmatprep.subr.bf16.mxu0 %v4108
        %4154 = vmatpush1.bf16.xpose.msra.mxu0 %v4107
        %4155 = vmatprep.subr.bf16.mxu0 %v4110
        %4156 = vmatpush1.bf16.xpose.msra.mxu0 %v4109
        %4157 = vmatprep.subr.bf16.mxu0 %v4112
        %4158 = vmatpush1.bf16.xpose.msra.mxu0 %v4111
        %4159 = vmatprep.subr.bf16.mxu0 %v4114
        %4160 = vmatpush1.bf16.xpose.msra.mxu0 %v4113
        %4161 = vmatprep.subr.bf16.mxu0 %v4116
        %4162 = vmatpush1.bf16.xpose.msra.mxu0 %v4115
        %4163 = vmatprep.subr.bf16.mxu0 %v4118
        %4164 = vmatpush1.bf16.xpose.msra.mxu0 %v4117
        %4165 = vmatprep.subr.bf16.mxu0 %v4120
        %4166 = vmatpush1.bf16.xpose.msra.mxu0 %v4119
        %4167 = vmatprep.subr.bf16.mxu0 %v4122
        %4168 = vmatpush1.bf16.xpose.msra.mxu0 %v4121
        %4169 = vmatprep.subr.bf16.mxu0 %v4124
        %4170 = vmatpush1.bf16.xpose.msra.mxu0 %v4123
        %4171 = vmatprep.subr.bf16.mxu0 %v4126
        %4172 = vmatpush1.bf16.xpose.msra.mxu0 %v4125
        %4173 = vmatprep.subr.bf16.mxu0 %v4128
        %4174 = vmatpush1.bf16.xpose.msra.mxu0 %v4127
        %4175 = vmatprep.subr.bf16.mxu0 %v4130
        %4176 = vmatpush1.bf16.xpose.msra.mxu0 %v4129
        %4177 = vmatprep.subr.bf16.mxu0 %v4132
        %4178 = vmatpush1.bf16.xpose.msra.mxu0 %v4131
        %4179 = vmatprep.subr.bf16.mxu0 %v4134
        %4180 = vmatpush1.bf16.xpose.msra.mxu0 %v4133
        %4181 = vmatprep.subr.bf16.mxu0 %v4136
        %4182 = vmatpush1.bf16.xpose.msra.mxu0 %v4135
        %4183 = vmatprep.mubr.bf16.mxu0 %v4148
        %4184 = vmatmul.mubr.bf16.gmra.mrb[0].mxu0 %v4147
        %v4185 = vpop.f32.mrb[0].mxu0
        %v4186 = vadd.f32 %v4142, %v4185
        %v4187 = vpop.f32.mrb[0].mxu0
        %v4188 = vadd.f32 %v4142, %v4187
        %v4189 = vpop.f32.mrb[0].mxu0
        %v4190 = vpop.f32.mrb[0].mxu0
        %4191 = vdwg.mxu0
        %4192 = vst [vmem:[%s290] sm:$0xff] %v4186
        %4193 = vst [vmem:[%s290 + $0x8] sm:$0xff] %v4188
        %s4194 = sand.u32 %s142, 1
        %s4195 = scalar_lea.sflag [#allocation4], %s4194
        %s4196 = sand.u32 %s142, 1
        %s4197 = smul.addr %s4196, 16
        %s4198 = scalar_lea.vmem [#allocation10], %s4197
        // Predicated region
        $region57: #{tpu_custom_call.1} parent=39 // pred_check
          %p4199 = pneg %p152
        $region58: #{tpu_custom_call.1} parent=39 // pred_check_branch
          %4201 = sbr.rel (%p4199) target = $region60
        $region59: #{tpu_custom_call.1} parent=39 // pred_region
          %s4202 = smul.u32 2, %s24
          %s4204 = ssub.s32 256, 256
          %4205 = vsyncadd %s4195, %s4204
          %s4206 = smul.addr %s4202, 128
          %s4207 = scalar_lea.hbm %s5, %s4206
          %s4209 = sshll.u32 %s4198, 4
          %s4210 = int_to_ptr.vmem [resolvable:$true] %s4209
          %4212 = dma.vmem_to_hbm [thread:$0]  %s4210, 256, %s4207, %s4195
        $region60: #{tpu_custom_call.1} parent=39 // pred_fallthru
          _
      $region40: #{tpu_custom_call.1} parent=5 // pred_fallthru
        _
      %p4213 = scmp.le.s32.totalorder 2, %s19
      // Predicated region
      $region61: #{tpu_custom_call.1} parent=5 // pred_check
        %p4214 = pneg %p4213
      $region62: #{tpu_custom_call.1} parent=5 // pred_check_branch
        %4216 = sbr.rel (%p4214) target = $region64
      $region63: #{tpu_custom_call.1} parent=5 // pred_region
        %s4217 = ssub.s32 %s19, 2
        // Predicated region
        $region65: #{tpu_custom_call.1} parent=63 // pred_check
          %p4218 = pneg %p158
        $region66: #{tpu_custom_call.1} parent=63 // pred_check_branch
          %4220 = sbr.rel (%p4218) target = $region68
        $region67: #{tpu_custom_call.1} parent=63 // pred_region
          %s4221 = sand.u32 %s143, 1
          %s4222 = scalar_lea.sflag [#allocation4], %s4221
          %s4223 = sand.u32 %s143, 1
          %s4224 = smul.addr %s4223, 16
          %s4225 = scalar_lea.vmem [#allocation10], %s4224
          %4226 = dma.done %s4222, 256
        $region68: #{tpu_custom_call.1} parent=63 // pred_fallthru
          _
      $region64: #{tpu_custom_call.1} parent=5 // pred_fallthru
        _
    $region6: #{tpu_custom_call.1} parent=1 // loop_footer
      %s23 = sadd.s32 1, %s19
    $region7: #{tpu_custom_call.1} parent=1 // loop_footer_branch
      %18 = sbr.rel target = $region3
    $region8: #{tpu_custom_call.1} parent=1 // loop_exit
      _
    %4227 = vsyncpa [#allocation3], 1
    %s4228 = scalar_lea.sflag [#allocation3], 1
    %4229 = vsyncpa %s4228, 1
    %4230 = vsyncpa [#allocation6], 1
    %4231 = vsyncpa [#allocation9], 1
    %4232 = vsyncpa [#allocation4], 1
    %s4233 = scalar_lea.sflag [#allocation4], 1
    %4234 = vsyncpa %s4233, 1

</llo_original>
